<compile_context>
chip_gen: v7x
topology: tpu7x:2x2x1
jax: 0.10.0
libtpu: 0.0.40
codegen_flags: <defaults>
</compile_context>

<pallas_src>
import numpy as np
import jax
import jax.numpy as jnp
from jax import lax
from jax.experimental import pallas as pl
from jax.experimental.pallas import tpu as pltpu

# ----------------------------- configuration -------------------------------
B = 2                      # batch
H = W = 8                  # spatial resolution
C = 32                     # channels
NUM_HEADS = 4
WINDOW = 4                 # window size
SHIFT = 2                  # > 0 -> shifted window attention (SW-MSA)
MLP_RATIO = 4.0
EPS = 1e-5

N = WINDOW * WINDOW        # tokens per window (16)
HEAD_DIM = C // NUM_HEADS  # 8
HIDDEN = int(C * MLP_RATIO)
SCALE = HEAD_DIM ** (-0.5)
L = H * W                  # tokens per image (64)
TOKENS = B * L             # total tokens (128)

# fp32 keeps tight parity with the fp32 PyTorch module; set to jnp.bfloat16 on
# v6e/v7x to feed the bf16-native MXU (fp32 accumulation is kept regardless).
MATMUL_DTYPE = jnp.float32

assert H % WINDOW == 0 and W % WINDOW == 0
# TODO(synk): the F.pad path (H or W not divisible by window_size) is not
# folded into the fused kernel; it is not exercised at these shapes.


# ------------------------------ fused kernel --------------------------------
def _mm(a, b):
    return jnp.dot(a.astype(MATMUL_DTYPE), b.astype(MATMUL_DTYPE),
                   preferred_element_type=jnp.float32)


def _layernorm(x, g, b):
    mu = jnp.mean(x, axis=-1, keepdims=True)
    xc = x - mu
    var = jnp.mean(xc * xc, axis=-1, keepdims=True)
    return xc * lax.rsqrt(var + EPS) * g + b


def swin_block_kernel(x_ref, bias_ref,
                      ln1g_ref, ln1b_ref,
                      wqkv_ref, bqkv_ref, wproj_ref, bproj_ref,
                      ln2g_ref, ln2b_ref,
                      w1_ref, b1_ref, w2_ref, b2_ref,
                      o_ref):
    x = x_ref[...]                                         # (L, C): one batch's tokens
    # ---- LayerNorm 1 ----
    xn = _layernorm(x, ln1g_ref[...], ln1b_ref[...])
    # ---- QKV projection, all tokens / all windows at once ----
    qkv = _mm(xn, wqkv_ref[...]) + bqkv_ref[...]           # (L, 3C)
    # ---- SW-MSA: dense (L, L) scores per head; shifted-window structure,
    #      relative-position bias and shift mask are all inside bias_ref ----
    head_outs = []
    for h in range(NUM_HEADS):
        q = qkv[:, h * HEAD_DIM:(h + 1) * HEAD_DIM] * SCALE
        k = qkv[:, C + h * HEAD_DIM:C + (h + 1) * HEAD_DIM]
        v = qkv[:, 2 * C + h * HEAD_DIM:2 * C + (h + 1) * HEAD_DIM]
        s = lax.dot_general(q.astype(MATMUL_DTYPE), k.astype(MATMUL_DTYPE),
                            (((1,), (1,)), ((), ())),
                            preferred_element_type=jnp.float32)       # (L, L)
        s = s + bias_ref[h]
        m = jnp.max(s, axis=-1, keepdims=True)
        e = jnp.exp(s - m)
        p = e * pl.reciprocal(jnp.sum(e, axis=-1, keepdims=True), approx=True)
        head_outs.append(_mm(p, v))                                    # (L, hd)
    attn = jnp.concatenate(head_outs, axis=-1)                         # (L, C)
    attn = _mm(attn, wproj_ref[...]) + bproj_ref[...]
    # ---- residual 1 (drop_path / dropout are identity at rate 0.0) ----
    y = x + attn
    # ---- LayerNorm 2 + MLP (exact-erf GELU) + residual 2 ----
    yn = _layernorm(y, ln2g_ref[...], ln2b_ref[...])
    h1 = _mm(yn, w1_ref[...]) + b1_ref[...]                            # (L, HIDDEN)
    h1 = 0.5 * h1 * (1.0 + lax.erf(h1 * np.float32(1.0 / np.sqrt(2.0))))
    o_ref[...] = y + _mm(h1, w2_ref[...]) + b2_ref[...]


# --------------------- attention bias construction (host) -------------------
def build_relative_position_bias(table):
    """(num_heads, N, N) relative-position bias, exactly as in WindowAttention."""
    coords = np.stack(np.meshgrid(np.arange(WINDOW), np.arange(WINDOW),
                                  indexing='ij'))                  # (2, Wh, Ww)
    cf = coords.reshape(2, -1)                                     # (2, N)
    rel = cf[:, :, None] - cf[:, None, :]                          # (2, N, N)
    rel = rel.transpose(1, 2, 0).copy()
    rel[:, :, 0] += WINDOW - 1
    rel[:, :, 1] += WINDOW - 1
    rel[:, :, 0] *= 2 * WINDOW - 1
    idx = rel.sum(-1)                                              # (N, N)
    bias = table[idx.reshape(-1)].reshape(N, N, NUM_HEADS)
    return jnp.transpose(bias, (2, 0, 1))                          # (nH, N, N)


def _token_geometry():
    """Static per-token shifted-window geometry (identical for every batch)."""
    pos = np.arange(L)
    hh, ww = pos // W, pos % W
    # coordinates after roll(-SHIFT): original (h, w) lands at (hs, ws)
    hs = (hh - SHIFT) % H if SHIFT > 0 else hh
    ws = (ww - SHIFT) % W if SHIFT > 0 else ww
    win_id = (hs // WINDOW) * (W // WINDOW) + (ws // WINDOW)        # (L,)
    n_in_win = (hs % WINDOW) * WINDOW + (ws % WINDOW)               # (L,)
    same_win = win_id[:, None] == win_id[None, :]                   # (L, L) bool
    if SHIFT > 0:
        # same region labelling as Swin's BasicLayer mask_matrix
        img_mask = np.zeros((H, W), np.int32)
        cnt = 0
        for hsl in (slice(0, -WINDOW), slice(-WINDOW, -SHIFT), slice(-SHIFT, None)):
            for wsl in (slice(0, -WINDOW), slice(-WINDOW, -SHIFT), slice(-SHIFT, None)):
                img_mask[hsl, wsl] = cnt
                cnt += 1
        region = img_mask[hs, ws]                                   # (L,)
        shift_mask = np.where(region[:, None] == region[None, :], 0.0, -100.0)
    else:
        shift_mask = np.zeros((L, L))
    return same_win, shift_mask.astype(np.float32), n_in_win.astype(np.int32)


_SAME_WIN, _SHIFT_MASK, _N_IN_WIN = _token_geometry()


def build_block_bias(rel_bias):
    """(num_heads, L, L) additive attention bias in ORIGINAL token order:
    rel-pos bias + shift mask inside a shifted window, -1e9 outside it."""
    rel_full = rel_bias[:, _N_IN_WIN[:, None], _N_IN_WIN[None, :]]  # (nH, L, L)
    return jnp.where(jnp.asarray(_SAME_WIN)[None],
                     rel_full + jnp.asarray(_SHIFT_MASK)[None],
                     jnp.float32(-1e9))


# ------------------------------- forward pass -------------------------------
@jax.jit
def swin_block_forward(x, params):
    """x: (B, L, C) -> (B, L, C) fused SwinTransformerBlock forward."""
    rel_bias = build_relative_position_bias(params['relb_table'])   # (nH, N, N)
    bias = build_block_bias(rel_bias)                                # (nH, L, L)
    x2d = x.reshape(TOKENS, C)

    out = pl.pallas_call(
        swin_block_kernel,
        out_shape=jax.ShapeDtypeStruct((TOKENS, C), jnp.float32),
        grid=(B,),
        in_specs=[
            pl.BlockSpec((L, C), lambda b: (b, 0)),                  # x (per-batch slab)
            pl.BlockSpec((NUM_HEADS, L, L), lambda b: (0, 0, 0)),    # attn bias (resident)
            pl.BlockSpec((1, C), lambda b: (0, 0)),                  # ln1 gamma
            pl.BlockSpec((1, C), lambda b: (0, 0)),                  # ln1 beta
            pl.BlockSpec((C, 3 * C), lambda b: (0, 0)),              # W_qkv
            pl.BlockSpec((1, 3 * C), lambda b: (0, 0)),              # b_qkv
            pl.BlockSpec((C, C), lambda b: (0, 0)),                  # W_proj
            pl.BlockSpec((1, C), lambda b: (0, 0)),                  # b_proj
            pl.BlockSpec((1, C), lambda b: (0, 0)),                  # ln2 gamma
            pl.BlockSpec((1, C), lambda b: (0, 0)),                  # ln2 beta
            pl.BlockSpec((C, HIDDEN), lambda b: (0, 0)),             # W_fc1
            pl.BlockSpec((1, HIDDEN), lambda b: (0, 0)),             # b_fc1
            pl.BlockSpec((HIDDEN, C), lambda b: (0, 0)),             # W_fc2
            pl.BlockSpec((1, C), lambda b: (0, 0)),                  # b_fc2
        ],
        out_specs=pl.BlockSpec((L, C), lambda b: (b, 0)),
        compiler_params=pltpu.CompilerParams(
            dimension_semantics=("parallel",)),
    )(x2d, bias,
      params['ln1_g'], params['ln1_b'],
      params['qkv_w'], params['qkv_b'], params['proj_w'], params['proj_b'],
      params['ln2_g'], params['ln2_b'],
      params['fc1_w'], params['fc1_b'], params['fc2_w'], params['fc2_b'])
    return out.reshape(B, L, C)


# -------------------------- pure-JAX reference check ------------------------
def window_partition_jax(x, window_size):
    Bb, Hh, Ww, Cc = x.shape
    x = x.reshape(Bb, Hh // window_size, window_size,
                  Ww // window_size, window_size, Cc)
    return x.transpose(0, 1, 3, 2, 4, 5).reshape(-1, window_size, window_size, Cc)


def window_reverse_jax(windows, window_size, Hh, Ww):
    Bb = windows.shape[0] // ((Hh // window_size) * (Ww // window_size))
    x = windows.reshape(Bb, Hh // window_size, Ww // window_size,
                        window_size, window_size, -1)
    return x.transpose(0, 1, 3, 2, 4, 5).reshape(Bb, Hh, Ww, -1)


def build_attn_mask(Hp, Wp):
    """Same construction as Swin's BasicLayer mask_matrix (0 / -100)."""
    img_mask = np.zeros((1, Hp, Wp, 1), dtype=np.float32)
    h_slices = (slice(0, -WINDOW), slice(-WINDOW, -SHIFT), slice(-SHIFT, None))
    w_slices = (slice(0, -WINDOW), slice(-WINDOW, -SHIFT), slice(-SHIFT, None))
    cnt = 0
    for hs in h_slices:
        for ws in w_slices:
            img_mask[:, hs, ws, :] = cnt
            cnt += 1
    mw = window_partition_jax(jnp.asarray(img_mask), WINDOW).reshape(-1, N)
    attn_mask = mw[:, None, :] - mw[:, :, None]
    return jnp.where(attn_mask != 0, -100.0, 0.0).astype(jnp.float32)  # (nW,N,N)


def reference_forward(x, p, rel_bias, mask_matrix):
    def ln(v, g, b):
        mu = jnp.mean(v, -1, keepdims=True)
        var = jnp.mean((v - mu) ** 2, -1, keepdims=True)
        return (v - mu) / jnp.sqrt(var + EPS) * g + b

    Bb, Ll, Cc = x.shape
    shortcut = x
    xn = ln(x, p['ln1_g'][0], p['ln1_b'][0]).reshape(Bb, H, W, Cc)
    shifted = jnp.roll(xn, (-SHIFT, -SHIFT), axis=(1, 2)) if SHIFT > 0 else xn
    xw = window_partition_jax(shifted, WINDOW).reshape(-1, N, Cc)

    qkv = xw @ p['qkv_w'] + p['qkv_b'][0]
    qkv = qkv.reshape(-1, N, 3, NUM_HEADS, HEAD_DIM).transpose(2, 0, 3, 1, 4)
    q, k, v = qkv[0] * SCALE, qkv[1], qkv[2]
    attn = jnp.einsum('bhnd,bhmd->bhnm', q, k) + rel_bias[None]
    if SHIFT > 0:
        nW = mask_matrix.shape[0]
        attn = attn.reshape(-1, nW, NUM_HEADS, N, N) + mask_matrix[None, :, None]
        attn = attn.reshape(-1, NUM_HEADS, N, N)
    attn = jax.nn.softmax(attn, axis=-1)
    out = jnp.einsum('bhnm,bhmd->bhnd', attn, v).transpose(0, 2, 1, 3)
    out = out.reshape(-1, N, Cc) @ p['proj_w'] + p['proj_b'][0]
    out = out.reshape(-1, WINDOW, WINDOW, Cc)
    sx = window_reverse_jax(out, WINDOW, H, W)
    xr = jnp.roll(sx, (SHIFT, SHIFT), axis=(1, 2)) if SHIFT > 0 else sx
    xr = xr.reshape(Bb, Ll, Cc)

    y = shortcut + xr
    h = ln(y, p['ln2_g'][0], p['ln2_b'][0])
    h1 = h @ p['fc1_w'] + p['fc1_b'][0]
    h1 = 0.5 * h1 * (1.0 + lax.erf(h1 / jnp.sqrt(2.0)))
    return y + h1 @ p['fc2_w'] + p['fc2_b'][0]


# ---------------------------------- main ------------------------------------
def init_params(key):
    ks = jax.random.split(key, 8)

    def nrm(k, shape, std=0.02):
        return (std * jax.random.normal(k, shape)).astype(jnp.float32)

    return {
        'ln1_g': jnp.ones((1, C), jnp.float32),
        'ln1_b': jnp.zeros((1, C), jnp.float32),
        'qkv_w': nrm(ks[0], (C, 3 * C)),            # stored as (in, out)
        'qkv_b': nrm(ks[1], (1, 3 * C)),
        'proj_w': nrm(ks[2], (C, C)),
        'proj_b': nrm(ks[3], (1, C)),
        'relb_table': nrm(ks[4], ((2 * WINDOW - 1) * (2 * WINDOW - 1), NUM_HEADS)),
        'ln2_g': jnp.ones((1, C), jnp.float32),
        'ln2_b': jnp.zeros((1, C), jnp.float32),
        'fc1_w': nrm(ks[5], (C, HIDDEN)),
        'fc1_b': nrm(ks[6], (1, HIDDEN)),
        'fc2_w': nrm(ks[7], (HIDDEN, C)),
        'fc2_b': jnp.zeros((1, C), jnp.float32),
    }


if __name__ == "__main__":
    key = jax.random.PRNGKey(0)
    kx, kp = jax.random.split(key)
    x = jax.random.normal(kx, (B, L, C), dtype=jnp.float32)
    params = init_params(kp)

    out = swin_block_forward(x, params)
    out = jax.block_until_ready(out)

    rel_bias = build_relative_position_bias(params['relb_table'])   # (nH, N, N)
    mask_matrix = build_attn_mask(H, W)                              # (nW, N, N)
    ref = reference_forward(x, params, rel_bias, mask_matrix)

    assert out.shape == (B, L, C)
    assert bool(jnp.all(jnp.isfinite(out)))
    # tolerance accommodates the approximate (EUP) softmax reciprocal
    np.testing.assert_allclose(np.asarray(out), np.asarray(ref),
                               rtol=2e-3, atol=2e-3)
    print("KERNEL_OK")
</pallas_src>

<mosaic_0001>
module attributes {stable_mosaic.version = 11 : i64} {
  func.func @swin_block_kernel(%arg0: i32, %arg1: memref<64x32xf32, #tpu.memory_space<vmem>>, %arg2: memref<4x64x64xf32, #tpu.memory_space<vmem>>, %arg3: memref<1x32xf32, #tpu.memory_space<vmem>>, %arg4: memref<1x32xf32, #tpu.memory_space<vmem>>, %arg5: memref<32x96xf32, #tpu.memory_space<vmem>>, %arg6: memref<1x96xf32, #tpu.memory_space<vmem>>, %arg7: memref<32x32xf32, #tpu.memory_space<vmem>>, %arg8: memref<1x32xf32, #tpu.memory_space<vmem>>, %arg9: memref<1x32xf32, #tpu.memory_space<vmem>>, %arg10: memref<1x32xf32, #tpu.memory_space<vmem>>, %arg11: memref<32x128xf32, #tpu.memory_space<vmem>>, %arg12: memref<1x128xf32, #tpu.memory_space<vmem>>, %arg13: memref<128x32xf32, #tpu.memory_space<vmem>>, %arg14: memref<1x32xf32, #tpu.memory_space<vmem>>, %arg15: memref<64x32xf32, #tpu.memory_space<vmem>>) attributes {dimension_semantics = [#tpu.dimension_semantics<parallel>], iteration_bounds = array<i64: 2>, scalar_prefetch = 0 : i64, scratch_operands = 0 : i64, tpu.core_type = #tpu.core_type<tc>, window_params = [{transform_indices = @transform_0, window_bounds = array<i64: 64, 32>}, {pipeline_mode = #tpu.pipeline_mode<synchronous>, transform_indices = @transform_1, window_bounds = array<i64: 4, 64, 64>}, {pipeline_mode = #tpu.pipeline_mode<synchronous>, transform_indices = @transform_2, window_bounds = array<i64: 1, 32>}, {pipeline_mode = #tpu.pipeline_mode<synchronous>, transform_indices = @transform_3, window_bounds = array<i64: 1, 32>}, {pipeline_mode = #tpu.pipeline_mode<synchronous>, transform_indices = @transform_4, window_bounds = array<i64: 32, 96>}, {pipeline_mode = #tpu.pipeline_mode<synchronous>, transform_indices = @transform_5, window_bounds = array<i64: 1, 96>}, {pipeline_mode = #tpu.pipeline_mode<synchronous>, transform_indices = @transform_6, window_bounds = array<i64: 32, 32>}, {pipeline_mode = #tpu.pipeline_mode<synchronous>, transform_indices = @transform_7, window_bounds = array<i64: 1, 32>}, {pipeline_mode = #tpu.pipeline_mode<synchronous>, transform_indices = @transform_8, window_bounds = array<i64: 1, 32>}, {pipeline_mode = #tpu.pipeline_mode<synchronous>, transform_indices = @transform_9, window_bounds = array<i64: 1, 32>}, {pipeline_mode = #tpu.pipeline_mode<synchronous>, transform_indices = @transform_10, window_bounds = array<i64: 32, 128>}, {pipeline_mode = #tpu.pipeline_mode<synchronous>, transform_indices = @transform_11, window_bounds = array<i64: 1, 128>}, {pipeline_mode = #tpu.pipeline_mode<synchronous>, transform_indices = @transform_12, window_bounds = array<i64: 128, 32>}, {pipeline_mode = #tpu.pipeline_mode<synchronous>, transform_indices = @transform_13, window_bounds = array<i64: 1, 32>}, {transform_indices = @transform_14, window_bounds = array<i64: 64, 32>}]} {
    %c0 = arith.constant 0 : index
    %c0_0 = arith.constant 0 : index
    %0 = vector.load %arg1[%c0, %c0_0] : memref<64x32xf32, #tpu.memory_space<vmem>>, vector<64x32xf32>
    %c0_1 = arith.constant 0 : index
    %c0_2 = arith.constant 0 : index
    %1 = vector.load %arg3[%c0_1, %c0_2] : memref<1x32xf32, #tpu.memory_space<vmem>>, vector<1x32xf32>
    %c0_3 = arith.constant 0 : index
    %c0_4 = arith.constant 0 : index
    %2 = vector.load %arg4[%c0_3, %c0_4] : memref<1x32xf32, #tpu.memory_space<vmem>>, vector<1x32xf32>
    %cst = arith.constant dense<0.000000e+00> : vector<64xf32>
    %3 = vector.multi_reduction <add>, %0, %cst [1] : vector<64x32xf32> to vector<64xf32>
    %4 = vector.shape_cast %3 : vector<64xf32> to vector<64x1xf32>
    %cst_5 = arith.constant 3.200000e+01 : f32
    %5 = vector.broadcast %cst_5 : f32 to vector<64x1xf32>
    %6 = arith.divf %4, %5 : vector<64x1xf32>
    %7 = vector.broadcast %6 : vector<64x1xf32> to vector<64x32xf32>
    %8 = arith.subf %0, %7 : vector<64x32xf32>
    %9 = arith.mulf %8, %8 : vector<64x32xf32>
    %cst_6 = arith.constant dense<0.000000e+00> : vector<64xf32>
    %10 = vector.multi_reduction <add>, %9, %cst_6 [1] : vector<64x32xf32> to vector<64xf32>
    %11 = vector.shape_cast %10 : vector<64xf32> to vector<64x1xf32>
    %cst_7 = arith.constant 3.200000e+01 : f32
    %12 = vector.broadcast %cst_7 : f32 to vector<64x1xf32>
    %13 = arith.divf %11, %12 : vector<64x1xf32>
    %cst_8 = arith.constant 9.99999974E-6 : f32
    %14 = vector.broadcast %cst_8 : f32 to vector<64x1xf32>
    %15 = arith.addf %13, %14 : vector<64x1xf32>
    %16 = math.rsqrt %15 : vector<64x1xf32>
    %17 = vector.broadcast %16 : vector<64x1xf32> to vector<64x32xf32>
    %18 = arith.mulf %8, %17 : vector<64x32xf32>
    %19 = vector.broadcast %1 : vector<1x32xf32> to vector<64x32xf32>
    %20 = arith.mulf %18, %19 : vector<64x32xf32>
    %21 = vector.broadcast %2 : vector<1x32xf32> to vector<64x32xf32>
    %22 = arith.addf %20, %21 : vector<64x32xf32>
    %c0_9 = arith.constant 0 : index
    %c0_10 = arith.constant 0 : index
    %23 = vector.load %arg5[%c0_9, %c0_10] : memref<32x96xf32, #tpu.memory_space<vmem>>, vector<32x96xf32>
    %cst_11 = arith.constant dense<0.000000e+00> : vector<64x96xf32>
    %24 = tpu.matmul %22, %23, %cst_11 {dimension_numbers = #tpu.dot_dimension_numbers<[1], [0], [0], [1], [0, 0, 1, 1], [], []>} : vector<64x32xf32>, vector<32x96xf32>, vector<64x96xf32> -> vector<64x96xf32>
    %c0_12 = arith.constant 0 : index
    %c0_13 = arith.constant 0 : index
    %25 = vector.load %arg6[%c0_12, %c0_13] : memref<1x96xf32, #tpu.memory_space<vmem>>, vector<1x96xf32>
    %26 = vector.broadcast %25 : vector<1x96xf32> to vector<64x96xf32>
    %27 = arith.addf %24, %26 : vector<64x96xf32>
    %28 = vector.extract_strided_slice %27 {offsets = [0, 0], sizes = [64, 8], strides = [1, 1]} : vector<64x96xf32> to vector<64x8xf32>
    %cst_14 = arith.constant 0.353553385 : f32
    %29 = vector.broadcast %cst_14 : f32 to vector<64x8xf32>
    %30 = arith.mulf %28, %29 : vector<64x8xf32>
    %31 = vector.extract_strided_slice %27 {offsets = [0, 32], sizes = [64, 8], strides = [1, 1]} : vector<64x96xf32> to vector<64x8xf32>
    %32 = vector.extract_strided_slice %27 {offsets = [0, 64], sizes = [64, 8], strides = [1, 1]} : vector<64x96xf32> to vector<64x8xf32>
    %cst_15 = arith.constant dense<0.000000e+00> : vector<64x64xf32>
    %33 = tpu.matmul %30, %31, %cst_15 {dimension_numbers = #tpu.dot_dimension_numbers<[1], [1], [0], [0], [0, 0, 1, 0], [], []>} : vector<64x8xf32>, vector<64x8xf32>, vector<64x64xf32> -> vector<64x64xf32>
    %c0_16 = arith.constant 0 : index
    %c0_17 = arith.constant 0 : index
    %c0_18 = arith.constant 0 : index
    %34 = vector.load %arg2[%c0_16, %c0_17, %c0_18] : memref<4x64x64xf32, #tpu.memory_space<vmem>>, vector<1x64x64xf32>
    %35 = vector.shape_cast %34 : vector<1x64x64xf32> to vector<64x64xf32>
    %36 = arith.addf %33, %35 : vector<64x64xf32>
    %cst_19 = arith.constant dense<0xFF800000> : vector<64xf32>
    %37 = vector.multi_reduction <maximumf>, %36, %cst_19 [1] : vector<64x64xf32> to vector<64xf32>
    %38 = vector.shape_cast %37 : vector<64xf32> to vector<64x1xf32>
    %39 = vector.broadcast %38 : vector<64x1xf32> to vector<64x64xf32>
    %40 = arith.subf %36, %39 : vector<64x64xf32>
    %41 = math.exp %40 : vector<64x64xf32>
    %cst_20 = arith.constant dense<0.000000e+00> : vector<64xf32>
    %42 = vector.multi_reduction <add>, %41, %cst_20 [1] : vector<64x64xf32> to vector<64xf32>
    %43 = vector.shape_cast %42 : vector<64xf32> to vector<64x1xf32>
    %44 = tpu.reciprocal %43 {approx = true} : vector<64x1xf32> -> vector<64x1xf32>
    %45 = vector.broadcast %44 : vector<64x1xf32> to vector<64x64xf32>
    %46 = arith.mulf %41, %45 : vector<64x64xf32>
    %cst_21 = arith.constant dense<0.000000e+00> : vector<64x8xf32>
    %47 = tpu.matmul %46, %32, %cst_21 {dimension_numbers = #tpu.dot_dimension_numbers<[1], [0], [0], [1], [0, 0, 1, 1], [], []>} : vector<64x64xf32>, vector<64x8xf32>, vector<64x8xf32> -> vector<64x8xf32>
    %48 = vector.extract_strided_slice %27 {offsets = [0, 8], sizes = [64, 8], strides = [1, 1]} : vector<64x96xf32> to vector<64x8xf32>
    %cst_22 = arith.constant 0.353553385 : f32
    %49 = vector.broadcast %cst_22 : f32 to vector<64x8xf32>
    %50 = arith.mulf %48, %49 : vector<64x8xf32>
    %51 = vector.extract_strided_slice %27 {offsets = [0, 40], sizes = [64, 8], strides = [1, 1]} : vector<64x96xf32> to vector<64x8xf32>
    %52 = vector.extract_strided_slice %27 {offsets = [0, 72], sizes = [64, 8], strides = [1, 1]} : vector<64x96xf32> to vector<64x8xf32>
    %cst_23 = arith.constant dense<0.000000e+00> : vector<64x64xf32>
    %53 = tpu.matmul %50, %51, %cst_23 {dimension_numbers = #tpu.dot_dimension_numbers<[1], [1], [0], [0], [0, 0, 1, 0], [], []>} : vector<64x8xf32>, vector<64x8xf32>, vector<64x64xf32> -> vector<64x64xf32>
    %c1 = arith.constant 1 : index
    %c0_24 = arith.constant 0 : index
    %c0_25 = arith.constant 0 : index
    %54 = vector.load %arg2[%c1, %c0_24, %c0_25] : memref<4x64x64xf32, #tpu.memory_space<vmem>>, vector<1x64x64xf32>
    %55 = vector.shape_cast %54 : vector<1x64x64xf32> to vector<64x64xf32>
    %56 = arith.addf %53, %55 : vector<64x64xf32>
    %cst_26 = arith.constant dense<0xFF800000> : vector<64xf32>
    %57 = vector.multi_reduction <maximumf>, %56, %cst_26 [1] : vector<64x64xf32> to vector<64xf32>
    %58 = vector.shape_cast %57 : vector<64xf32> to vector<64x1xf32>
    %59 = vector.broadcast %58 : vector<64x1xf32> to vector<64x64xf32>
    %60 = arith.subf %56, %59 : vector<64x64xf32>
    %61 = math.exp %60 : vector<64x64xf32>
    %cst_27 = arith.constant dense<0.000000e+00> : vector<64xf32>
    %62 = vector.multi_reduction <add>, %61, %cst_27 [1] : vector<64x64xf32> to vector<64xf32>
    %63 = vector.shape_cast %62 : vector<64xf32> to vector<64x1xf32>
    %64 = tpu.reciprocal %63 {approx = true} : vector<64x1xf32> -> vector<64x1xf32>
    %65 = vector.broadcast %64 : vector<64x1xf32> to vector<64x64xf32>
    %66 = arith.mulf %61, %65 : vector<64x64xf32>
    %cst_28 = arith.constant dense<0.000000e+00> : vector<64x8xf32>
    %67 = tpu.matmul %66, %52, %cst_28 {dimension_numbers = #tpu.dot_dimension_numbers<[1], [0], [0], [1], [0, 0, 1, 1], [], []>} : vector<64x64xf32>, vector<64x8xf32>, vector<64x8xf32> -> vector<64x8xf32>
    %68 = vector.extract_strided_slice %27 {offsets = [0, 16], sizes = [64, 8], strides = [1, 1]} : vector<64x96xf32> to vector<64x8xf32>
    %cst_29 = arith.constant 0.353553385 : f32
    %69 = vector.broadcast %cst_29 : f32 to vector<64x8xf32>
    %70 = arith.mulf %68, %69 : vector<64x8xf32>
    %71 = vector.extract_strided_slice %27 {offsets = [0, 48], sizes = [64, 8], strides = [1, 1]} : vector<64x96xf32> to vector<64x8xf32>
    %72 = vector.extract_strided_slice %27 {offsets = [0, 80], sizes = [64, 8], strides = [1, 1]} : vector<64x96xf32> to vector<64x8xf32>
    %cst_30 = arith.constant dense<0.000000e+00> : vector<64x64xf32>
    %73 = tpu.matmul %70, %71, %cst_30 {dimension_numbers = #tpu.dot_dimension_numbers<[1], [1], [0], [0], [0, 0, 1, 0], [], []>} : vector<64x8xf32>, vector<64x8xf32>, vector<64x64xf32> -> vector<64x64xf32>
    %c2 = arith.constant 2 : index
    %c0_31 = arith.constant 0 : index
    %c0_32 = arith.constant 0 : index
    %74 = vector.load %arg2[%c2, %c0_31, %c0_32] : memref<4x64x64xf32, #tpu.memory_space<vmem>>, vector<1x64x64xf32>
    %75 = vector.shape_cast %74 : vector<1x64x64xf32> to vector<64x64xf32>
    %76 = arith.addf %73, %75 : vector<64x64xf32>
    %cst_33 = arith.constant dense<0xFF800000> : vector<64xf32>
    %77 = vector.multi_reduction <maximumf>, %76, %cst_33 [1] : vector<64x64xf32> to vector<64xf32>
    %78 = vector.shape_cast %77 : vector<64xf32> to vector<64x1xf32>
    %79 = vector.broadcast %78 : vector<64x1xf32> to vector<64x64xf32>
    %80 = arith.subf %76, %79 : vector<64x64xf32>
    %81 = math.exp %80 : vector<64x64xf32>
    %cst_34 = arith.constant dense<0.000000e+00> : vector<64xf32>
    %82 = vector.multi_reduction <add>, %81, %cst_34 [1] : vector<64x64xf32> to vector<64xf32>
    %83 = vector.shape_cast %82 : vector<64xf32> to vector<64x1xf32>
    %84 = tpu.reciprocal %83 {approx = true} : vector<64x1xf32> -> vector<64x1xf32>
    %85 = vector.broadcast %84 : vector<64x1xf32> to vector<64x64xf32>
    %86 = arith.mulf %81, %85 : vector<64x64xf32>
    %cst_35 = arith.constant dense<0.000000e+00> : vector<64x8xf32>
    %87 = tpu.matmul %86, %72, %cst_35 {dimension_numbers = #tpu.dot_dimension_numbers<[1], [0], [0], [1], [0, 0, 1, 1], [], []>} : vector<64x64xf32>, vector<64x8xf32>, vector<64x8xf32> -> vector<64x8xf32>
    %88 = vector.extract_strided_slice %27 {offsets = [0, 24], sizes = [64, 8], strides = [1, 1]} : vector<64x96xf32> to vector<64x8xf32>
    %cst_36 = arith.constant 0.353553385 : f32
    %89 = vector.broadcast %cst_36 : f32 to vector<64x8xf32>
    %90 = arith.mulf %88, %89 : vector<64x8xf32>
    %91 = vector.extract_strided_slice %27 {offsets = [0, 56], sizes = [64, 8], strides = [1, 1]} : vector<64x96xf32> to vector<64x8xf32>
    %92 = vector.extract_strided_slice %27 {offsets = [0, 88], sizes = [64, 8], strides = [1, 1]} : vector<64x96xf32> to vector<64x8xf32>
    %cst_37 = arith.constant dense<0.000000e+00> : vector<64x64xf32>
    %93 = tpu.matmul %90, %91, %cst_37 {dimension_numbers = #tpu.dot_dimension_numbers<[1], [1], [0], [0], [0, 0, 1, 0], [], []>} : vector<64x8xf32>, vector<64x8xf32>, vector<64x64xf32> -> vector<64x64xf32>
    %c3 = arith.constant 3 : index
    %c0_38 = arith.constant 0 : index
    %c0_39 = arith.constant 0 : index
    %94 = vector.load %arg2[%c3, %c0_38, %c0_39] : memref<4x64x64xf32, #tpu.memory_space<vmem>>, vector<1x64x64xf32>
    %95 = vector.shape_cast %94 : vector<1x64x64xf32> to vector<64x64xf32>
    %96 = arith.addf %93, %95 : vector<64x64xf32>
    %cst_40 = arith.constant dense<0xFF800000> : vector<64xf32>
    %97 = vector.multi_reduction <maximumf>, %96, %cst_40 [1] : vector<64x64xf32> to vector<64xf32>
    %98 = vector.shape_cast %97 : vector<64xf32> to vector<64x1xf32>
    %99 = vector.broadcast %98 : vector<64x1xf32> to vector<64x64xf32>
    %100 = arith.subf %96, %99 : vector<64x64xf32>
    %101 = math.exp %100 : vector<64x64xf32>
    %cst_41 = arith.constant dense<0.000000e+00> : vector<64xf32>
    %102 = vector.multi_reduction <add>, %101, %cst_41 [1] : vector<64x64xf32> to vector<64xf32>
    %103 = vector.shape_cast %102 : vector<64xf32> to vector<64x1xf32>
    %104 = tpu.reciprocal %103 {approx = true} : vector<64x1xf32> -> vector<64x1xf32>
    %105 = vector.broadcast %104 : vector<64x1xf32> to vector<64x64xf32>
    %106 = arith.mulf %101, %105 : vector<64x64xf32>
    %cst_42 = arith.constant dense<0.000000e+00> : vector<64x8xf32>
    %107 = tpu.matmul %106, %92, %cst_42 {dimension_numbers = #tpu.dot_dimension_numbers<[1], [0], [0], [1], [0, 0, 1, 1], [], []>} : vector<64x64xf32>, vector<64x8xf32>, vector<64x8xf32> -> vector<64x8xf32>
    %108 = tpu.concatenate %47, %67, %87, %107 in 1 : vector<64x8xf32>, vector<64x8xf32>, vector<64x8xf32>, vector<64x8xf32> -> vector<64x32xf32>
    %c0_43 = arith.constant 0 : index
    %c0_44 = arith.constant 0 : index
    %109 = vector.load %arg7[%c0_43, %c0_44] : memref<32x32xf32, #tpu.memory_space<vmem>>, vector<32x32xf32>
    %cst_45 = arith.constant dense<0.000000e+00> : vector<64x32xf32>
    %110 = tpu.matmul %108, %109, %cst_45 {dimension_numbers = #tpu.dot_dimension_numbers<[1], [0], [0], [1], [0, 0, 1, 1], [], []>} : vector<64x32xf32>, vector<32x32xf32>, vector<64x32xf32> -> vector<64x32xf32>
    %c0_46 = arith.constant 0 : index
    %c0_47 = arith.constant 0 : index
    %111 = vector.load %arg8[%c0_46, %c0_47] : memref<1x32xf32, #tpu.memory_space<vmem>>, vector<1x32xf32>
    %112 = vector.broadcast %111 : vector<1x32xf32> to vector<64x32xf32>
    %113 = arith.addf %110, %112 : vector<64x32xf32>
    %114 = arith.addf %0, %113 : vector<64x32xf32>
    %c0_48 = arith.constant 0 : index
    %c0_49 = arith.constant 0 : index
    %115 = vector.load %arg9[%c0_48, %c0_49] : memref<1x32xf32, #tpu.memory_space<vmem>>, vector<1x32xf32>
    %c0_50 = arith.constant 0 : index
    %c0_51 = arith.constant 0 : index
    %116 = vector.load %arg10[%c0_50, %c0_51] : memref<1x32xf32, #tpu.memory_space<vmem>>, vector<1x32xf32>
    %cst_52 = arith.constant dense<0.000000e+00> : vector<64xf32>
    %117 = vector.multi_reduction <add>, %114, %cst_52 [1] : vector<64x32xf32> to vector<64xf32>
    %118 = vector.shape_cast %117 : vector<64xf32> to vector<64x1xf32>
    %cst_53 = arith.constant 3.200000e+01 : f32
    %119 = vector.broadcast %cst_53 : f32 to vector<64x1xf32>
    %120 = arith.divf %118, %119 : vector<64x1xf32>
    %121 = vector.broadcast %120 : vector<64x1xf32> to vector<64x32xf32>
    %122 = arith.subf %114, %121 : vector<64x32xf32>
    %123 = arith.mulf %122, %122 : vector<64x32xf32>
    %cst_54 = arith.constant dense<0.000000e+00> : vector<64xf32>
    %124 = vector.multi_reduction <add>, %123, %cst_54 [1] : vector<64x32xf32> to vector<64xf32>
    %125 = vector.shape_cast %124 : vector<64xf32> to vector<64x1xf32>
    %cst_55 = arith.constant 3.200000e+01 : f32
    %126 = vector.broadcast %cst_55 : f32 to vector<64x1xf32>
    %127 = arith.divf %125, %126 : vector<64x1xf32>
    %cst_56 = arith.constant 9.99999974E-6 : f32
    %128 = vector.broadcast %cst_56 : f32 to vector<64x1xf32>
    %129 = arith.addf %127, %128 : vector<64x1xf32>
    %130 = math.rsqrt %129 : vector<64x1xf32>
    %131 = vector.broadcast %130 : vector<64x1xf32> to vector<64x32xf32>
    %132 = arith.mulf %122, %131 : vector<64x32xf32>
    %133 = vector.broadcast %115 : vector<1x32xf32> to vector<64x32xf32>
    %134 = arith.mulf %132, %133 : vector<64x32xf32>
    %135 = vector.broadcast %116 : vector<1x32xf32> to vector<64x32xf32>
    %136 = arith.addf %134, %135 : vector<64x32xf32>
    %c0_57 = arith.constant 0 : index
    %c0_58 = arith.constant 0 : index
    %137 = vector.load %arg11[%c0_57, %c0_58] : memref<32x128xf32, #tpu.memory_space<vmem>>, vector<32x128xf32>
    %cst_59 = arith.constant dense<0.000000e+00> : vector<64x128xf32>
    %138 = tpu.matmul %136, %137, %cst_59 {dimension_numbers = #tpu.dot_dimension_numbers<[1], [0], [0], [1], [0, 0, 1, 1], [], []>} : vector<64x32xf32>, vector<32x128xf32>, vector<64x128xf32> -> vector<64x128xf32>
    %c0_60 = arith.constant 0 : index
    %c0_61 = arith.constant 0 : index
    %139 = vector.load %arg12[%c0_60, %c0_61] : memref<1x128xf32, #tpu.memory_space<vmem>>, vector<1x128xf32>
    %140 = vector.broadcast %139 : vector<1x128xf32> to vector<64x128xf32>
    %141 = arith.addf %138, %140 : vector<64x128xf32>
    %cst_62 = arith.constant 5.000000e-01 : f32
    %142 = vector.broadcast %cst_62 : f32 to vector<64x128xf32>
    %143 = arith.mulf %142, %141 : vector<64x128xf32>
    %cst_63 = arith.constant 0.707106769 : f32
    %144 = vector.broadcast %cst_63 : f32 to vector<64x128xf32>
    %145 = arith.mulf %141, %144 : vector<64x128xf32>
    %146 = math.erf %145 : vector<64x128xf32>
    %cst_64 = arith.constant 1.000000e+00 : f32
    %147 = vector.broadcast %cst_64 : f32 to vector<64x128xf32>
    %148 = arith.addf %147, %146 : vector<64x128xf32>
    %149 = arith.mulf %143, %148 : vector<64x128xf32>
    %c0_65 = arith.constant 0 : index
    %c0_66 = arith.constant 0 : index
    %150 = vector.load %arg13[%c0_65, %c0_66] : memref<128x32xf32, #tpu.memory_space<vmem>>, vector<128x32xf32>
    %cst_67 = arith.constant dense<0.000000e+00> : vector<64x32xf32>
    %151 = tpu.matmul %149, %150, %cst_67 {dimension_numbers = #tpu.dot_dimension_numbers<[1], [0], [0], [1], [0, 0, 1, 1], [], []>} : vector<64x128xf32>, vector<128x32xf32>, vector<64x32xf32> -> vector<64x32xf32>
    %152 = arith.addf %114, %151 : vector<64x32xf32>
    %c0_68 = arith.constant 0 : index
    %c0_69 = arith.constant 0 : index
    %153 = vector.load %arg14[%c0_68, %c0_69] : memref<1x32xf32, #tpu.memory_space<vmem>>, vector<1x32xf32>
    %154 = vector.broadcast %153 : vector<1x32xf32> to vector<64x32xf32>
    %155 = arith.addf %152, %154 : vector<64x32xf32>
    %c0_70 = arith.constant 0 : index
    %c0_71 = arith.constant 0 : index
    %156 = vector.load %arg15[%c0_70, %c0_71] : memref<64x32xf32, #tpu.memory_space<vmem>>, vector<64x32xf32>
    tpu.vector_store %arg15[%c0_70, %c0_71], %155 {strides = array<i32>} : memref<64x32xf32, #tpu.memory_space<vmem>>, vector<64x32xf32>,
    return
  }
  func.func @transform_0(%arg0: i32) -> (i32, i32) {
    %c0_i32 = arith.constant 0 : i32
    %c0_i32_0 = arith.constant 0 : i32
    return %arg0, %c0_i32 : i32, i32
  }
  func.func @transform_1(%arg0: i32) -> (i32, i32, i32) {
    %c0_i32 = arith.constant 0 : i32
    %c0_i32_0 = arith.constant 0 : i32
    %c0_i32_1 = arith.constant 0 : i32
    %c0_i32_2 = arith.constant 0 : i32
    return %c0_i32, %c0_i32_0, %c0_i32_1 : i32, i32, i32
  }
  func.func @transform_2(%arg0: i32) -> (i32, i32) {
    %c0_i32 = arith.constant 0 : i32
    %c0_i32_0 = arith.constant 0 : i32
    %c0_i32_1 = arith.constant 0 : i32
    return %c0_i32, %c0_i32_0 : i32, i32
  }
  func.func @transform_3(%arg0: i32) -> (i32, i32) {
    %c0_i32 = arith.constant 0 : i32
    %c0_i32_0 = arith.constant 0 : i32
    %c0_i32_1 = arith.constant 0 : i32
    return %c0_i32, %c0_i32_0 : i32, i32
  }
  func.func @transform_4(%arg0: i32) -> (i32, i32) {
    %c0_i32 = arith.constant 0 : i32
    %c0_i32_0 = arith.constant 0 : i32
    %c0_i32_1 = arith.constant 0 : i32
    return %c0_i32, %c0_i32_0 : i32, i32
  }
  func.func @transform_5(%arg0: i32) -> (i32, i32) {
    %c0_i32 = arith.constant 0 : i32
    %c0_i32_0 = arith.constant 0 : i32
    %c0_i32_1 = arith.constant 0 : i32
    return %c0_i32, %c0_i32_0 : i32, i32
  }
  func.func @transform_6(%arg0: i32) -> (i32, i32) {
    %c0_i32 = arith.constant 0 : i32
    %c0_i32_0 = arith.constant 0 : i32
    %c0_i32_1 = arith.constant 0 : i32
    return %c0_i32, %c0_i32_0 : i32, i32
  }
  func.func @transform_7(%arg0: i32) -> (i32, i32) {
    %c0_i32 = arith.constant 0 : i32
    %c0_i32_0 = arith.constant 0 : i32
    %c0_i32_1 = arith.constant 0 : i32
    return %c0_i32, %c0_i32_0 : i32, i32
  }
  func.func @transform_8(%arg0: i32) -> (i32, i32) {
    %c0_i32 = arith.constant 0 : i32
    %c0_i32_0 = arith.constant 0 : i32
    %c0_i32_1 = arith.constant 0 : i32
    return %c0_i32, %c0_i32_0 : i32, i32
  }
  func.func @transform_9(%arg0: i32) -> (i32, i32) {
    %c0_i32 = arith.constant 0 : i32
    %c0_i32_0 = arith.constant 0 : i32
    %c0_i32_1 = arith.constant 0 : i32
    return %c0_i32, %c0_i32_0 : i32, i32
  }
  func.func @transform_10(%arg0: i32) -> (i32, i32) {
    %c0_i32 = arith.constant 0 : i32
    %c0_i32_0 = arith.constant 0 : i32
    %c0_i32_1 = arith.constant 0 : i32
    return %c0_i32, %c0_i32_0 : i32, i32
  }
  func.func @transform_11(%arg0: i32) -> (i32, i32) {
    %c0_i32 = arith.constant 0 : i32
    %c0_i32_0 = arith.constant 0 : i32
    %c0_i32_1 = arith.constant 0 : i32
    return %c0_i32, %c0_i32_0 : i32, i32
  }
  func.func @transform_12(%arg0: i32) -> (i32, i32) {
    %c0_i32 = arith.constant 0 : i32
    %c0_i32_0 = arith.constant 0 : i32
    %c0_i32_1 = arith.constant 0 : i32
    return %c0_i32, %c0_i32_0 : i32, i32
  }
  func.func @transform_13(%arg0: i32) -> (i32, i32) {
    %c0_i32 = arith.constant 0 : i32
    %c0_i32_0 = arith.constant 0 : i32
    %c0_i32_1 = arith.constant 0 : i32
    return %c0_i32, %c0_i32_0 : i32, i32
  }
  func.func @transform_14(%arg0: i32) -> (i32, i32) {
    %c0_i32 = arith.constant 0 : i32
    %c0_i32_0 = arith.constant 0 : i32
    return %arg0, %c0_i32 : i32, i32
  }
}

</mosaic_0001>

<llo_original>
// kernel: swin_block_forward.1
$region0: #{swin_block_forward.1}
  #allocation0 [shape = 'u32[]', space=smem, size = 0x4, offset = 0x4, fixed_abs, tag = 'smem constant byte address 0x4 - core index']
  #allocation1 [shape = 'u32[144,128]{1,0:T(1,128)}', space=vmem, size = 0x12000, scoped, tag = 'internal scratch']
  %s0 = inlined_call_operand.vmem [shape: f32[128,32], index: 0, kind: input, shape index: {}]
  %s1 = inlined_call_operand.vmem [shape: f32[4,64,64], index: 1, kind: input, shape index: {}]
  %s2 = inlined_call_operand.vmem [shape: f32[1,32], index: 2, kind: input, shape index: {}]
  %s3 = inlined_call_operand.vmem [shape: f32[1,32], index: 3, kind: input, shape index: {}]
  %s4 = inlined_call_operand.vmem [shape: f32[32,96], index: 4, kind: input, shape index: {}]
  %s5 = inlined_call_operand.vmem [shape: f32[1,96], index: 5, kind: input, shape index: {}]
  %s6 = inlined_call_operand.vmem [shape: f32[32,32], index: 6, kind: input, shape index: {}]
  %s7 = inlined_call_operand.vmem [shape: f32[1,32], index: 7, kind: input, shape index: {}]
  %s8 = inlined_call_operand.vmem [shape: f32[1,32], index: 8, kind: input, shape index: {}]
  %s9 = inlined_call_operand.vmem [shape: f32[1,32], index: 9, kind: input, shape index: {}]
  %s10 = inlined_call_operand.vmem [shape: f32[32,128], index: 10, kind: input, shape index: {}]
  %s11 = inlined_call_operand.vmem [shape: f32[1,128], index: 11, kind: input, shape index: {}]
  %s12 = inlined_call_operand.vmem [shape: f32[128,32], index: 12, kind: input, shape index: {}]
  %s13 = inlined_call_operand.vmem [shape: f32[1,32], index: 13, kind: input, shape index: {}]
  %s14 = inlined_call_operand.vmem [shape: f32[128,32], index: 14, kind: output, shape index: {}]
  %s15 = sld [smem:[#allocation0]]
  $region89: #{swin_block_forward.1} parent=0
    _
  %s17 = ssub.s32 1, %s15
  %s18 = scalar_select 0, %s17, %s15
  loop: start=0, step=1, limit=4
  $region2: #{swin_block_forward.1} parent=0 // loop_pre_header
    _
  $region3: #{swin_block_forward.1} parent=0 // loop_header
    %s20 = sphi 0, %s24
    %p21 = scmp.ge.s32.totalorder %s20, 4
    %s30 = sphi 0, %s32
    %s33 = sphi 0, %s30
    %s34 = sphi 0, %s33
    %s50 = sphi 0, %s34
    %s54 = sphi 0, %s54
    %s56 = sphi 0, %s54
    %s57 = sphi 0, %s56
    %s71 = sphi 0, %s57
    %s75 = sphi 0, %s75
    %s77 = sphi 0, %s75
    %s78 = sphi 0, %s77
    %s92 = sphi 0, %s78
    %s96 = sphi 0, %s96
    %s98 = sphi 0, %s96
    %s99 = sphi 0, %s98
    %s113 = sphi 0, %s99
    %s117 = sphi 0, %s117
    %s119 = sphi 0, %s117
    %s120 = sphi 0, %s119
    %s134 = sphi 0, %s120
    %s138 = sphi 0, %s138
    %s140 = sphi 0, %s138
    %s141 = sphi 0, %s140
    %s155 = sphi 0, %s141
    %s159 = sphi 0, %s159
    %s161 = sphi 0, %s159
    %s162 = sphi 0, %s161
    %s176 = sphi 0, %s162
    %s180 = sphi 0, %s180
    %s182 = sphi 0, %s180
    %s183 = sphi 0, %s182
    %s197 = sphi 0, %s183
    %s201 = sphi 0, %s201
    %s203 = sphi 0, %s201
    %s204 = sphi 0, %s203
    %s218 = sphi 0, %s204
    %s222 = sphi 0, %s222
    %s224 = sphi 0, %s222
    %s225 = sphi 0, %s224
    %s239 = sphi 0, %s225
    %s243 = sphi 0, %s243
    %s245 = sphi 0, %s243
    %s246 = sphi 0, %s245
    %s260 = sphi 0, %s246
    %s264 = sphi 0, %s264
    %s266 = sphi 0, %s264
    %s267 = sphi 0, %s266
    %s281 = sphi 0, %s267
    %s285 = sphi 0, %s285
    %s287 = sphi 0, %s285
    %s288 = sphi 0, %s287
    %s302 = sphi 0, %s288
    %s306 = sphi 0, %s306
    %s308 = sphi 0, %s306
    %s309 = sphi 0, %s308
    %s323 = sphi 0, %s309
    %s329 = sphi 0, %s331
    %s332 = sphi 0, %s329
    %s333 = sphi 0, %s332
    %s349 = sphi 0, %s333
  $region4: #{swin_block_forward.1} parent=0 // loop_header_branch
    %23 = sbr.rel (%p21) target = $region8
  $region5: #{swin_block_forward.1} parent=0 // loop_body
    %s25 = ssub.s32 %s20, 1
    %s26 = ssub.s32 %s20, 2
    %s27 = sadd.s32 %s20, 1
    %s28 = ssub.s32 %s20, %s27
    %p29 = scmp.eq.s32.totalorder %s28, 0
    %s31 = sadd.s32 %s30, 1
    %s32 = scalar_select %p29, %s30, %s31
    %p35 = pneg %p29
    %p36 = scmp.eq.s32.totalorder %s20, 1
    %p37 = por %p35, %p36
    %p38 = scmp.ne.s32.totalorder %s30, %s33
    %p39 = scmp.eq.s32.totalorder %s20, 0
    %p40 = por %p38, %p39
    %p41 = scmp.ne.s32.totalorder %s30, %s33
    %p42 = scmp.eq.s32.totalorder %s25, 1
    %p43 = por %p41, %p42
    %p44 = scmp.ne.s32.totalorder %s33, %s34
    %p45 = scmp.eq.s32.totalorder %s25, 0
    %p46 = por %p44, %p45
    %p47 = scmp.ne.s32.totalorder %s33, %s34
    %p48 = scmp.eq.s32.totalorder %s26, 1
    %p49 = por %p47, %p48
    %p51 = scmp.ne.s32.totalorder %s34, %s50
    %p52 = scmp.eq.s32.totalorder %s26, 0
    %p53 = por %p51, %p52
    %s55 = sadd.s32 %s54, 1
    %p58 = scmp.eq.s32.totalorder %s20, 1
    %p59 = scmp.ne.s32.totalorder %s54, %s56
    %p60 = scmp.eq.s32.totalorder %s20, 0
    %p61 = por %p59, %p60
    %p62 = scmp.ne.s32.totalorder %s54, %s56
    %p63 = scmp.eq.s32.totalorder %s25, 1
    %p64 = por %p62, %p63
    %p65 = scmp.ne.s32.totalorder %s56, %s57
    %p66 = scmp.eq.s32.totalorder %s25, 0
    %p67 = por %p65, %p66
    %p68 = scmp.ne.s32.totalorder %s56, %s57
    %p69 = scmp.eq.s32.totalorder %s26, 1
    %p70 = por %p68, %p69
    %p72 = scmp.ne.s32.totalorder %s57, %s71
    %p73 = scmp.eq.s32.totalorder %s26, 0
    %p74 = por %p72, %p73
    %s76 = sadd.s32 %s75, 1
    %p79 = scmp.eq.s32.totalorder %s20, 1
    %p80 = scmp.ne.s32.totalorder %s75, %s77
    %p81 = scmp.eq.s32.totalorder %s20, 0
    %p82 = por %p80, %p81
    %p83 = scmp.ne.s32.totalorder %s75, %s77
    %p84 = scmp.eq.s32.totalorder %s25, 1
    %p85 = por %p83, %p84
    %p86 = scmp.ne.s32.totalorder %s77, %s78
    %p87 = scmp.eq.s32.totalorder %s25, 0
    %p88 = por %p86, %p87
    %p89 = scmp.ne.s32.totalorder %s77, %s78
    %p90 = scmp.eq.s32.totalorder %s26, 1
    %p91 = por %p89, %p90
    %p93 = scmp.ne.s32.totalorder %s78, %s92
    %p94 = scmp.eq.s32.totalorder %s26, 0
    %p95 = por %p93, %p94
    %s97 = sadd.s32 %s96, 1
    %p100 = scmp.eq.s32.totalorder %s20, 1
    %p101 = scmp.ne.s32.totalorder %s96, %s98
    %p102 = scmp.eq.s32.totalorder %s20, 0
    %p103 = por %p101, %p102
    %p104 = scmp.ne.s32.totalorder %s96, %s98
    %p105 = scmp.eq.s32.totalorder %s25, 1
    %p106 = por %p104, %p105
    %p107 = scmp.ne.s32.totalorder %s98, %s99
    %p108 = scmp.eq.s32.totalorder %s25, 0
    %p109 = por %p107, %p108
    %p110 = scmp.ne.s32.totalorder %s98, %s99
    %p111 = scmp.eq.s32.totalorder %s26, 1
    %p112 = por %p110, %p111
    %p114 = scmp.ne.s32.totalorder %s99, %s113
    %p115 = scmp.eq.s32.totalorder %s26, 0
    %p116 = por %p114, %p115
    %s118 = sadd.s32 %s117, 1
    %p121 = scmp.eq.s32.totalorder %s20, 1
    %p122 = scmp.ne.s32.totalorder %s117, %s119
    %p123 = scmp.eq.s32.totalorder %s20, 0
    %p124 = por %p122, %p123
    %p125 = scmp.ne.s32.totalorder %s117, %s119
    %p126 = scmp.eq.s32.totalorder %s25, 1
    %p127 = por %p125, %p126
    %p128 = scmp.ne.s32.totalorder %s119, %s120
    %p129 = scmp.eq.s32.totalorder %s25, 0
    %p130 = por %p128, %p129
    %p131 = scmp.ne.s32.totalorder %s119, %s120
    %p132 = scmp.eq.s32.totalorder %s26, 1
    %p133 = por %p131, %p132
    %p135 = scmp.ne.s32.totalorder %s120, %s134
    %p136 = scmp.eq.s32.totalorder %s26, 0
    %p137 = por %p135, %p136
    %s139 = sadd.s32 %s138, 1
    %p142 = scmp.eq.s32.totalorder %s20, 1
    %p143 = scmp.ne.s32.totalorder %s138, %s140
    %p144 = scmp.eq.s32.totalorder %s20, 0
    %p145 = por %p143, %p144
    %p146 = scmp.ne.s32.totalorder %s138, %s140
    %p147 = scmp.eq.s32.totalorder %s25, 1
    %p148 = por %p146, %p147
    %p149 = scmp.ne.s32.totalorder %s140, %s141
    %p150 = scmp.eq.s32.totalorder %s25, 0
    %p151 = por %p149, %p150
    %p152 = scmp.ne.s32.totalorder %s140, %s141
    %p153 = scmp.eq.s32.totalorder %s26, 1
    %p154 = por %p152, %p153
    %p156 = scmp.ne.s32.totalorder %s141, %s155
    %p157 = scmp.eq.s32.totalorder %s26, 0
    %p158 = por %p156, %p157
    %s160 = sadd.s32 %s159, 1
    %p163 = scmp.eq.s32.totalorder %s20, 1
    %p164 = scmp.ne.s32.totalorder %s159, %s161
    %p165 = scmp.eq.s32.totalorder %s20, 0
    %p166 = por %p164, %p165
    %p167 = scmp.ne.s32.totalorder %s159, %s161
    %p168 = scmp.eq.s32.totalorder %s25, 1
    %p169 = por %p167, %p168
    %p170 = scmp.ne.s32.totalorder %s161, %s162
    %p171 = scmp.eq.s32.totalorder %s25, 0
    %p172 = por %p170, %p171
    %p173 = scmp.ne.s32.totalorder %s161, %s162
    %p174 = scmp.eq.s32.totalorder %s26, 1
    %p175 = por %p173, %p174
    %p177 = scmp.ne.s32.totalorder %s162, %s176
    %p178 = scmp.eq.s32.totalorder %s26, 0
    %p179 = por %p177, %p178
    %s181 = sadd.s32 %s180, 1
    %p184 = scmp.eq.s32.totalorder %s20, 1
    %p185 = scmp.ne.s32.totalorder %s180, %s182
    %p186 = scmp.eq.s32.totalorder %s20, 0
    %p187 = por %p185, %p186
    %p188 = scmp.ne.s32.totalorder %s180, %s182
    %p189 = scmp.eq.s32.totalorder %s25, 1
    %p190 = por %p188, %p189
    %p191 = scmp.ne.s32.totalorder %s182, %s183
    %p192 = scmp.eq.s32.totalorder %s25, 0
    %p193 = por %p191, %p192
    %p194 = scmp.ne.s32.totalorder %s182, %s183
    %p195 = scmp.eq.s32.totalorder %s26, 1
    %p196 = por %p194, %p195
    %p198 = scmp.ne.s32.totalorder %s183, %s197
    %p199 = scmp.eq.s32.totalorder %s26, 0
    %p200 = por %p198, %p199
    %s202 = sadd.s32 %s201, 1
    %p205 = scmp.eq.s32.totalorder %s20, 1
    %p206 = scmp.ne.s32.totalorder %s201, %s203
    %p207 = scmp.eq.s32.totalorder %s20, 0
    %p208 = por %p206, %p207
    %p209 = scmp.ne.s32.totalorder %s201, %s203
    %p210 = scmp.eq.s32.totalorder %s25, 1
    %p211 = por %p209, %p210
    %p212 = scmp.ne.s32.totalorder %s203, %s204
    %p213 = scmp.eq.s32.totalorder %s25, 0
    %p214 = por %p212, %p213
    %p215 = scmp.ne.s32.totalorder %s203, %s204
    %p216 = scmp.eq.s32.totalorder %s26, 1
    %p217 = por %p215, %p216
    %p219 = scmp.ne.s32.totalorder %s204, %s218
    %p220 = scmp.eq.s32.totalorder %s26, 0
    %p221 = por %p219, %p220
    %s223 = sadd.s32 %s222, 1
    %p226 = scmp.eq.s32.totalorder %s20, 1
    %p227 = scmp.ne.s32.totalorder %s222, %s224
    %p228 = scmp.eq.s32.totalorder %s20, 0
    %p229 = por %p227, %p228
    %p230 = scmp.ne.s32.totalorder %s222, %s224
    %p231 = scmp.eq.s32.totalorder %s25, 1
    %p232 = por %p230, %p231
    %p233 = scmp.ne.s32.totalorder %s224, %s225
    %p234 = scmp.eq.s32.totalorder %s25, 0
    %p235 = por %p233, %p234
    %p236 = scmp.ne.s32.totalorder %s224, %s225
    %p237 = scmp.eq.s32.totalorder %s26, 1
    %p238 = por %p236, %p237
    %p240 = scmp.ne.s32.totalorder %s225, %s239
    %p241 = scmp.eq.s32.totalorder %s26, 0
    %p242 = por %p240, %p241
    %s244 = sadd.s32 %s243, 1
    %p247 = scmp.eq.s32.totalorder %s20, 1
    %p248 = scmp.ne.s32.totalorder %s243, %s245
    %p249 = scmp.eq.s32.totalorder %s20, 0
    %p250 = por %p248, %p249
    %p251 = scmp.ne.s32.totalorder %s243, %s245
    %p252 = scmp.eq.s32.totalorder %s25, 1
    %p253 = por %p251, %p252
    %p254 = scmp.ne.s32.totalorder %s245, %s246
    %p255 = scmp.eq.s32.totalorder %s25, 0
    %p256 = por %p254, %p255
    %p257 = scmp.ne.s32.totalorder %s245, %s246
    %p258 = scmp.eq.s32.totalorder %s26, 1
    %p259 = por %p257, %p258
    %p261 = scmp.ne.s32.totalorder %s246, %s260
    %p262 = scmp.eq.s32.totalorder %s26, 0
    %p263 = por %p261, %p262
    %s265 = sadd.s32 %s264, 1
    %p268 = scmp.eq.s32.totalorder %s20, 1
    %p269 = scmp.ne.s32.totalorder %s264, %s266
    %p270 = scmp.eq.s32.totalorder %s20, 0
    %p271 = por %p269, %p270
    %p272 = scmp.ne.s32.totalorder %s264, %s266
    %p273 = scmp.eq.s32.totalorder %s25, 1
    %p274 = por %p272, %p273
    %p275 = scmp.ne.s32.totalorder %s266, %s267
    %p276 = scmp.eq.s32.totalorder %s25, 0
    %p277 = por %p275, %p276
    %p278 = scmp.ne.s32.totalorder %s266, %s267
    %p279 = scmp.eq.s32.totalorder %s26, 1
    %p280 = por %p278, %p279
    %p282 = scmp.ne.s32.totalorder %s267, %s281
    %p283 = scmp.eq.s32.totalorder %s26, 0
    %p284 = por %p282, %p283
    %s286 = sadd.s32 %s285, 1
    %p289 = scmp.eq.s32.totalorder %s20, 1
    %p290 = scmp.ne.s32.totalorder %s285, %s287
    %p291 = scmp.eq.s32.totalorder %s20, 0
    %p292 = por %p290, %p291
    %p293 = scmp.ne.s32.totalorder %s285, %s287
    %p294 = scmp.eq.s32.totalorder %s25, 1
    %p295 = por %p293, %p294
    %p296 = scmp.ne.s32.totalorder %s287, %s288
    %p297 = scmp.eq.s32.totalorder %s25, 0
    %p298 = por %p296, %p297
    %p299 = scmp.ne.s32.totalorder %s287, %s288
    %p300 = scmp.eq.s32.totalorder %s26, 1
    %p301 = por %p299, %p300
    %p303 = scmp.ne.s32.totalorder %s288, %s302
    %p304 = scmp.eq.s32.totalorder %s26, 0
    %p305 = por %p303, %p304
    %s307 = sadd.s32 %s306, 1
    %p310 = scmp.eq.s32.totalorder %s20, 1
    %p311 = scmp.ne.s32.totalorder %s306, %s308
    %p312 = scmp.eq.s32.totalorder %s20, 0
    %p313 = por %p311, %p312
    %p314 = scmp.ne.s32.totalorder %s306, %s308
    %p315 = scmp.eq.s32.totalorder %s25, 1
    %p316 = por %p314, %p315
    %p317 = scmp.ne.s32.totalorder %s308, %s309
    %p318 = scmp.eq.s32.totalorder %s25, 0
    %p319 = por %p317, %p318
    %p320 = scmp.ne.s32.totalorder %s308, %s309
    %p321 = scmp.eq.s32.totalorder %s26, 1
    %p322 = por %p320, %p321
    %p324 = scmp.ne.s32.totalorder %s309, %s323
    %p325 = scmp.eq.s32.totalorder %s26, 0
    %p326 = por %p324, %p325
    %s327 = ssub.s32 %s20, %s27
    %p328 = scmp.eq.s32.totalorder %s327, 0
    %s330 = sadd.s32 %s329, 1
    %s331 = scalar_select %p328, %s329, %s330
    %p334 = pneg %p328
    %p335 = scmp.eq.s32.totalorder %s20, 1
    %p336 = por %p334, %p335
    %p337 = scmp.ne.s32.totalorder %s329, %s332
    %p338 = scmp.eq.s32.totalorder %s20, 0
    %p339 = por %p337, %p338
    %p340 = scmp.ne.s32.totalorder %s329, %s332
    %p341 = scmp.eq.s32.totalorder %s25, 1
    %p342 = por %p340, %p341
    %p343 = scmp.ne.s32.totalorder %s332, %s333
    %p344 = scmp.eq.s32.totalorder %s25, 0
    %p345 = por %p343, %p344
    %p346 = scmp.ne.s32.totalorder %s332, %s333
    %p347 = scmp.eq.s32.totalorder %s26, 1
    %p348 = por %p346, %p347
    %p350 = scmp.ne.s32.totalorder %s333, %s349
    %p351 = scmp.eq.s32.totalorder %s26, 0
    %p352 = por %p350, %p351
    %p353 = scmp.le.s32.totalorder 1, %s20
    %p354 = scmp.lt.s32.totalorder %s20, 3
    %p355 = pnand %p353, %p354
    %p356 = pneg %p355
    // Predicated region
    $region9: #{swin_block_forward.1} parent=5 // pred_check
      _
    $region10: #{swin_block_forward.1} parent=5 // pred_check_branch
      %358 = sbr.rel (%p355) target = $region12
    $region11: #{swin_block_forward.1} parent=5 // pred_region
      %s359 = ssub.s32 %s20, 1
      // Predicated region
      $region13: #{swin_block_forward.1} parent=11 // pred_check
        %p360 = pneg %p67
      $region14: #{swin_block_forward.1} parent=11 // pred_check_branch
        %362 = sbr.rel (%p360) target = $region16
      $region15: #{swin_block_forward.1} parent=11 // pred_region
        _
      $region16: #{swin_block_forward.1} parent=11 // pred_fallthru
        _
      // Predicated region
      $region17: #{swin_block_forward.1} parent=11 // pred_check
        %p363 = pneg %p88
      $region18: #{swin_block_forward.1} parent=11 // pred_check_branch
        %365 = sbr.rel (%p363) target = $region20
      $region19: #{swin_block_forward.1} parent=11 // pred_region
        _
      $region20: #{swin_block_forward.1} parent=11 // pred_fallthru
        _
      // Predicated region
      $region21: #{swin_block_forward.1} parent=11 // pred_check
        %p366 = pneg %p109
      $region22: #{swin_block_forward.1} parent=11 // pred_check_branch
        %368 = sbr.rel (%p366) target = $region24
      $region23: #{swin_block_forward.1} parent=11 // pred_region
        _
      $region24: #{swin_block_forward.1} parent=11 // pred_fallthru
        _
      // Predicated region
      $region25: #{swin_block_forward.1} parent=11 // pred_check
        %p369 = pneg %p130
      $region26: #{swin_block_forward.1} parent=11 // pred_check_branch
        %371 = sbr.rel (%p369) target = $region28
      $region27: #{swin_block_forward.1} parent=11 // pred_region
        _
      $region28: #{swin_block_forward.1} parent=11 // pred_fallthru
        _
      // Predicated region
      $region29: #{swin_block_forward.1} parent=11 // pred_check
        %p372 = pneg %p151
      $region30: #{swin_block_forward.1} parent=11 // pred_check_branch
        %374 = sbr.rel (%p372) target = $region32
      $region31: #{swin_block_forward.1} parent=11 // pred_region
        _
      $region32: #{swin_block_forward.1} parent=11 // pred_fallthru
        _
      // Predicated region
      $region33: #{swin_block_forward.1} parent=11 // pred_check
        %p375 = pneg %p172
      $region34: #{swin_block_forward.1} parent=11 // pred_check_branch
        %377 = sbr.rel (%p375) target = $region36
      $region35: #{swin_block_forward.1} parent=11 // pred_region
        _
      $region36: #{swin_block_forward.1} parent=11 // pred_fallthru
        _
      // Predicated region
      $region37: #{swin_block_forward.1} parent=11 // pred_check
        %p378 = pneg %p193
      $region38: #{swin_block_forward.1} parent=11 // pred_check_branch
        %380 = sbr.rel (%p378) target = $region40
      $region39: #{swin_block_forward.1} parent=11 // pred_region
        _
      $region40: #{swin_block_forward.1} parent=11 // pred_fallthru
        _
      // Predicated region
      $region41: #{swin_block_forward.1} parent=11 // pred_check
        %p381 = pneg %p214
      $region42: #{swin_block_forward.1} parent=11 // pred_check_branch
        %383 = sbr.rel (%p381) target = $region44
      $region43: #{swin_block_forward.1} parent=11 // pred_region
        _
      $region44: #{swin_block_forward.1} parent=11 // pred_fallthru
        _
      // Predicated region
      $region45: #{swin_block_forward.1} parent=11 // pred_check
        %p384 = pneg %p235
      $region46: #{swin_block_forward.1} parent=11 // pred_check_branch
        %386 = sbr.rel (%p384) target = $region48
      $region47: #{swin_block_forward.1} parent=11 // pred_region
        _
      $region48: #{swin_block_forward.1} parent=11 // pred_fallthru
        _
      // Predicated region
      $region49: #{swin_block_forward.1} parent=11 // pred_check
        %p387 = pneg %p256
      $region50: #{swin_block_forward.1} parent=11 // pred_check_branch
        %389 = sbr.rel (%p387) target = $region52
      $region51: #{swin_block_forward.1} parent=11 // pred_region
        _
      $region52: #{swin_block_forward.1} parent=11 // pred_fallthru
        _
      // Predicated region
      $region53: #{swin_block_forward.1} parent=11 // pred_check
        %p390 = pneg %p277
      $region54: #{swin_block_forward.1} parent=11 // pred_check_branch
        %392 = sbr.rel (%p390) target = $region56
      $region55: #{swin_block_forward.1} parent=11 // pred_region
        _
      $region56: #{swin_block_forward.1} parent=11 // pred_fallthru
        _
      // Predicated region
      $region57: #{swin_block_forward.1} parent=11 // pred_check
        %p393 = pneg %p298
      $region58: #{swin_block_forward.1} parent=11 // pred_check_branch
        %395 = sbr.rel (%p393) target = $region60
      $region59: #{swin_block_forward.1} parent=11 // pred_region
        _
      $region60: #{swin_block_forward.1} parent=11 // pred_fallthru
        _
      // Predicated region
      $region61: #{swin_block_forward.1} parent=11 // pred_check
        %p396 = pneg %p319
      $region62: #{swin_block_forward.1} parent=11 // pred_check_branch
        %398 = sbr.rel (%p396) target = $region64
      $region63: #{swin_block_forward.1} parent=11 // pred_region
        _
      $region64: #{swin_block_forward.1} parent=11 // pred_fallthru
        _
    $region12: #{swin_block_forward.1} parent=5 // pred_fallthru
      _
    %p399 = scmp.lt.s32.totalorder %s20, 2
    // Predicated region
    $region65: #{swin_block_forward.1} parent=5 // pred_check
      %p400 = pneg %p399
    $region66: #{swin_block_forward.1} parent=5 // pred_check_branch
      %402 = sbr.rel (%p400) target = $region68
    $region67: #{swin_block_forward.1} parent=5 // pred_region
      // Predicated region
      $region69: #{swin_block_forward.1} parent=67 // pred_check
        %p403 = pneg %p40
      $region70: #{swin_block_forward.1} parent=67 // pred_check_branch
        %405 = sbr.rel (%p403) target = $region72
      $region71: #{swin_block_forward.1} parent=67 // pred_region
        %s406 = smul.u32 8, %s20
        %p407 = scmp.lt.s32.totalorder %s406, 15
        %s408 = scalar_select %p407, %s406, 15
        %s409 = smul.addr %s408, 8
        %s410 = scalar_lea.vmem %s0, %s409
        %s411 = smul.u32 8, %s20
      $region72: #{swin_block_forward.1} parent=67 // pred_fallthru
        _
    $region68: #{swin_block_forward.1} parent=5 // pred_fallthru
      _
    %p412 = scmp.le.s32.totalorder 1, %s20
    %p413 = scmp.lt.s32.totalorder %s20, 3
    %p414 = pnand %p412, %p413
    %p415 = pneg %p414
    // Predicated region
    $region73: #{swin_block_forward.1} parent=5 // pred_check
      _
    $region74: #{swin_block_forward.1} parent=5 // pred_check_branch
      %417 = sbr.rel (%p414) target = $region76
    $region75: #{swin_block_forward.1} parent=5 // pred_region
      %s418 = ssub.s32 %s20, 1
      %s419 = smul.u32 8, %s25
      %p420 = scmp.lt.s32.totalorder %s419, 15
      %s421 = scalar_select %p420, %s419, 15
      %s422 = smul.addr %s421, 8
      %s423 = scalar_lea.vmem %s0, %s422
      %p424 = pneg %p46
      %p425 = pneg %p43
      %p426 = pneg %p67
      %p427 = pneg %p64
      %p428 = pneg %p88
      %p429 = pneg %p85
      %p430 = pneg %p109
      %p431 = pneg %p106
      %p432 = pneg %p130
      %p433 = pneg %p127
      %p434 = pneg %p151
      %p435 = pneg %p148
      %p436 = pneg %p172
      %p437 = pneg %p169
      %p438 = pneg %p193
      %p439 = pneg %p190
      %p440 = pneg %p214
      %p441 = pneg %p211
      %p442 = pneg %p235
      %p443 = pneg %p232
      %p444 = pneg %p256
      %p445 = pneg %p253
      %p446 = pneg %p277
      %p447 = pneg %p274
      %p448 = pneg %p298
      %p449 = pneg %p295
      %p450 = pneg %p319
      %p451 = pneg %p316
      %p452 = pneg %p345
      %p453 = pneg %p342
      %s454 = smul.u32 8, %s25
      %p455 = scmp.lt.s32.totalorder %s454, 15
      %s456 = scalar_select %p455, %s454, 15
      %s457 = smul.addr %s456, 8
      %s458 = scalar_lea.vmem %s14, %s457
      %s459 = smul.u32 8, %s25
      %p460 = scmp.lt.s32.totalorder %s459, 15
      %s461 = scalar_select %p460, %s459, 15
      %s462 = smul.addr %s461, 8
      %s463 = scalar_lea.vmem %s0, %s462
      %s464 = smul.u32 8, %s25
      %s465 = smul.u32 8, %s25
      %p466 = scmp.lt.s32.totalorder %s465, 15
      %s467 = scalar_select %p466, %s465, 15
      %s468 = smul.addr %s467, 8
      %s469 = scalar_lea.vmem %s14, %s468
      %s470 = smul.u32 8, %s25
      %v471 = vld [vmem:[%s463] sm:$0xff]
      %v472 = vld [vmem:[%s463 + $0x8] sm:$0xff]
      %v473 = vld [vmem:[%s463 + $0x10] sm:$0xff]
      %v474 = vld [vmem:[%s463 + $0x18] sm:$0xff]
      %v475 = vld [vmem:[%s463 + $0x20] sm:$0xff]
      %v476 = vld [vmem:[%s463 + $0x28] sm:$0xff]
      %v477 = vld [vmem:[%s463 + $0x30] sm:$0xff]
      %v478 = vld [vmem:[%s463 + $0x38] sm:$0xff]
      %v479 = vld [vmem:[%s2] sm:$0x1]
      %v480 = vld [vmem:[%s3] sm:$0x1]
      %vm481 = vcmask 261120
      %v482 = vsel %vm481, %v471, 0.0
      %483 = vadd.xlane.f32.xlu0 %v482
      %v484 = vpop.xlane.xlu0 %483
      %v485 = vsel %vm481, %v472, 0.0
      %486 = vadd.xlane.f32.xlu0 %v485
      %v487 = vpop.xlane.xlu0 %486
      %v488 = vsel %vm481, %v473, 0.0
      %489 = vadd.xlane.f32.xlu0 %v488
      %v490 = vpop.xlane.xlu0 %489
      %v491 = vsel %vm481, %v474, 0.0
      %492 = vadd.xlane.f32.xlu0 %v491
      %v493 = vpop.xlane.xlu0 %492
      %v494 = vsel %vm481, %v475, 0.0
      %495 = vadd.xlane.f32.xlu0 %v494
      %v496 = vpop.xlane.xlu0 %495
      %v497 = vsel %vm481, %v476, 0.0
      %498 = vadd.xlane.f32.xlu0 %v497
      %v499 = vpop.xlane.xlu0 %498
      %v500 = vsel %vm481, %v477, 0.0
      %501 = vadd.xlane.f32.xlu0 %v500
      %v502 = vpop.xlane.xlu0 %501
      %v503 = vsel %vm481, %v478, 0.0
      %504 = vadd.xlane.f32.xlu0 %v503
      %v505 = vpop.xlane.xlu0 %504
      %v506 = vrcp.pop 32.0
      %v507 = vmul.f32 %v484, %v506
      %v508 = vmul.f32 %v487, %v506
      %v509 = vmul.f32 %v490, %v506
      %v510 = vmul.f32 %v493, %v506
      %v511 = vmul.f32 %v496, %v506
      %v512 = vmul.f32 %v499, %v506
      %v513 = vmul.f32 %v502, %v506
      %v514 = vmul.f32 %v505, %v506
      %v515 = vsub.f32 %v471, %v507
      %v516 = vsub.f32 %v472, %v508
      %v517 = vsub.f32 %v473, %v509
      %v518 = vsub.f32 %v474, %v510
      %v519 = vsub.f32 %v475, %v511
      %v520 = vsub.f32 %v476, %v512
      %v521 = vsub.f32 %v477, %v513
      %v522 = vsub.f32 %v478, %v514
      %v523 = vmul.f32 %v515, %v515
      %v524 = vmul.f32 %v516, %v516
      %v525 = vmul.f32 %v517, %v517
      %v526 = vmul.f32 %v518, %v518
      %v527 = vmul.f32 %v519, %v519
      %v528 = vmul.f32 %v520, %v520
      %v529 = vmul.f32 %v521, %v521
      %v530 = vmul.f32 %v522, %v522
      %v531 = vsel %vm481, %v523, 0.0
      %532 = vadd.xlane.f32.xlu0 %v531
      %v533 = vpop.xlane.xlu0 %532
      %v534 = vsel %vm481, %v524, 0.0
      %535 = vadd.xlane.f32.xlu0 %v534
      %v536 = vpop.xlane.xlu0 %535
      %v537 = vsel %vm481, %v525, 0.0
      %538 = vadd.xlane.f32.xlu0 %v537
      %v539 = vpop.xlane.xlu0 %538
      %v540 = vsel %vm481, %v526, 0.0
      %541 = vadd.xlane.f32.xlu0 %v540
      %v542 = vpop.xlane.xlu0 %541
      %v543 = vsel %vm481, %v527, 0.0
      %544 = vadd.xlane.f32.xlu0 %v543
      %v545 = vpop.xlane.xlu0 %544
      %v546 = vsel %vm481, %v528, 0.0
      %547 = vadd.xlane.f32.xlu0 %v546
      %v548 = vpop.xlane.xlu0 %547
      %v549 = vsel %vm481, %v529, 0.0
      %550 = vadd.xlane.f32.xlu0 %v549
      %v551 = vpop.xlane.xlu0 %550
      %v552 = vsel %vm481, %v530, 0.0
      %553 = vadd.xlane.f32.xlu0 %v552
      %v554 = vpop.xlane.xlu0 %553
      %v555 = vmul.f32 %v533, %v506
      %v556 = vmul.f32 %v536, %v506
      %v557 = vmul.f32 %v539, %v506
      %v558 = vmul.f32 %v542, %v506
      %v559 = vmul.f32 %v545, %v506
      %v560 = vmul.f32 %v548, %v506
      %v561 = vmul.f32 %v551, %v506
      %v562 = vmul.f32 %v554, %v506
      %v563 = vadd.f32 %v555, 1e-05
      %v564 = vadd.f32 %v556, 1e-05
      %v565 = vadd.f32 %v557, 1e-05
      %v566 = vadd.f32 %v558, 1e-05
      %v567 = vadd.f32 %v559, 1e-05
      %v568 = vadd.f32 %v560, 1e-05
      %v569 = vadd.f32 %v561, 1e-05
      %v570 = vadd.f32 %v562, 1e-05
      %v571 = vrsqrt.pop %v563
      %v572 = vrsqrt.pop %v564
      %v573 = vrsqrt.pop %v565
      %v574 = vrsqrt.pop %v566
      %v575 = vrsqrt.pop %v567
      %v576 = vrsqrt.pop %v568
      %v577 = vrsqrt.pop %v569
      %v578 = vrsqrt.pop %v570
      %v579 = vmul.f32 %v515, %v571
      %v580 = vmul.f32 %v516, %v572
      %v581 = vmul.f32 %v517, %v573
      %v582 = vmul.f32 %v518, %v574
      %v583 = vmul.f32 %v519, %v575
      %v584 = vmul.f32 %v520, %v576
      %v585 = vmul.f32 %v521, %v577
      %v586 = vmul.f32 %v522, %v578
      %v588 = vlaneseq
      %v589 = vshrl.u32 %v588, 7
      %v590 = vsub.s32 0, %v589
      %v591 = vrot.slane %v479, %v590
      %v593 = vmul.f32 %v579, %v591
      %v594 = vmul.f32 %v580, %v591
      %v595 = vmul.f32 %v581, %v591
      %v596 = vmul.f32 %v582, %v591
      %v597 = vmul.f32 %v583, %v591
      %v598 = vmul.f32 %v584, %v591
      %v599 = vmul.f32 %v585, %v591
      %v600 = vmul.f32 %v586, %v591
      %v602 = vlaneseq
      %v603 = vshrl.u32 %v602, 7
      %v604 = vsub.s32 0, %v603
      %v605 = vrot.slane %v480, %v604
      %v607 = vadd.f32 %v593, %v605
      %v608 = vadd.f32 %v594, %v605
      %v609 = vadd.f32 %v595, %v605
      %v610 = vadd.f32 %v596, %v605
      %v611 = vadd.f32 %v597, %v605
      %v612 = vadd.f32 %v598, %v605
      %v613 = vadd.f32 %v599, %v605
      %v614 = vadd.f32 %v600, %v605
      %v615 = vld [vmem:[%s4] sm:$0xff]
      %v616 = vld [vmem:[%s4 + $0x8] sm:$0xff]
      %v617 = vld [vmem:[%s4 + $0x10] sm:$0xff]
      %v618 = vld [vmem:[%s4 + $0x18] sm:$0xff]
      %v619 = vld [vmem:[%s5] sm:$0x1]
      %v621 = vlaneseq
      %v622 = vshrl.u32 %v621, 7
      %v623 = vsub.s32 0, %v622
      %v624 = vrot.slane %v619, %v623
      %v627 = vsel %vm481, %v607, 0
      %v630 = vsel %vm481, %v608, 0
      %v633 = vsel %vm481, %v609, 0
      %v636 = vsel %vm481, %v610, 0
      %v639 = vsel %vm481, %v611, 0
      %v642 = vsel %vm481, %v612, 0
      %v645 = vsel %vm481, %v613, 0
      %v648 = vsel %vm481, %v614, 0
      %650 = vmatprep.subr.mxu0 0.0
      %651 = vmatpush1.msra.mxu0 %v615
      %652 = vmatprep.subr.mxu0 0.0
      %653 = vmatpush1.msra.mxu0 %v616
      %654 = vmatprep.subr.mxu0 0.0
      %655 = vmatpush1.msra.mxu0 %v617
      %656 = vmatprep.subr.mxu0 0.0
      %657 = vmatpush1.msra.mxu0 %v618
      %658 = vmatprep.subr.mxu0 0.0
      %659 = vmatpush1.msra.mxu0 0.0
      %660 = vmatprep.subr.mxu0 0.0
      %661 = vmatpush1.msra.mxu0 0.0
      %662 = vmatprep.subr.mxu0 0.0
      %663 = vmatpush1.msra.mxu0 0.0
      %664 = vmatprep.subr.mxu0 0.0
      %665 = vmatpush1.msra.mxu0 0.0
      %666 = vmatprep.subr.mxu0 0.0
      %667 = vmatpush1.msra.mxu0 0.0
      %668 = vmatprep.subr.mxu0 0.0
      %669 = vmatpush1.msra.mxu0 0.0
      %670 = vmatprep.subr.mxu0 0.0
      %671 = vmatpush1.msra.mxu0 0.0
      %672 = vmatprep.subr.mxu0 0.0
      %673 = vmatpush1.msra.mxu0 0.0
      %674 = vmatprep.subr.mxu0 0.0
      %675 = vmatpush1.msra.mxu0 0.0
      %676 = vmatprep.subr.mxu0 0.0
      %677 = vmatpush1.msra.mxu0 0.0
      %678 = vmatprep.subr.mxu0 0.0
      %679 = vmatpush1.msra.mxu0 0.0
      %680 = vmatprep.subr.mxu0 0.0
      %681 = vmatpush1.msra.mxu0 0.0
      %682 = vmatprep.subr.mxu0 0.0
      %683 = vmatpush1.msra.mxu0 0.0
      %684 = vmatprep.subr.mxu0 0.0
      %685 = vmatpush1.msra.mxu0 0.0
      %686 = vmatprep.subr.mxu0 0.0
      %687 = vmatpush1.msra.mxu0 0.0
      %688 = vmatprep.subr.mxu0 0.0
      %689 = vmatpush1.msra.mxu0 0.0
      %690 = vmatprep.subr.mxu0 0.0
      %691 = vmatpush1.msra.mxu0 0.0
      %692 = vmatprep.subr.mxu0 0.0
      %693 = vmatpush1.msra.mxu0 0.0
      %694 = vmatprep.subr.mxu0 0.0
      %695 = vmatpush1.msra.mxu0 0.0
      %696 = vmatprep.subr.mxu0 0.0
      %697 = vmatpush1.msra.mxu0 0.0
      %698 = vmatprep.subr.mxu0 0.0
      %699 = vmatpush1.msra.mxu0 0.0
      %700 = vmatprep.subr.mxu0 0.0
      %701 = vmatpush1.msra.mxu0 0.0
      %702 = vmatprep.subr.mxu0 0.0
      %703 = vmatpush1.msra.mxu0 0.0
      %704 = vmatprep.subr.mxu0 0.0
      %705 = vmatpush1.msra.mxu0 0.0
      %706 = vmatprep.subr.mxu0 0.0
      %707 = vmatpush1.msra.mxu0 0.0
      %708 = vmatprep.subr.mxu0 0.0
      %709 = vmatpush1.msra.mxu0 0.0
      %710 = vmatprep.subr.mxu0 0.0
      %711 = vmatpush1.msra.mxu0 0.0
      %712 = vmatprep.subr.mxu0 0.0
      %713 = vmatpush1.msra.mxu0 0.0
      %714 = vmatprep.mubr.f32.mxu0 0.0
      %715 = vmatmul.mubr.f32.gmra.mrb[0].mxu0 %v627
      %v716 = vpop.f32.mrb[0].mxu0
      %v717 = vadd.f32 %v624, %v716
      %v718 = vpop.f32.mrb[0].mxu0
      %719 = vmatprep.mubr.f32.mxu0 0.0
      %720 = vmatmul.mubr.f32.gmra.mrb[0].mxu0 %v630
      %v721 = vpop.f32.mrb[0].mxu0
      %v722 = vadd.f32 %v624, %v721
      %v723 = vpop.f32.mrb[0].mxu0
      %724 = vmatprep.mubr.f32.mxu0 0.0
      %725 = vmatmul.mubr.f32.gmra.mrb[0].mxu0 %v633
      %v726 = vpop.f32.mrb[0].mxu0
      %v727 = vadd.f32 %v624, %v726
      %v728 = vpop.f32.mrb[0].mxu0
      %729 = vmatprep.mubr.f32.mxu0 0.0
      %730 = vmatmul.mubr.f32.gmra.mrb[0].mxu0 %v636
      %v731 = vpop.f32.mrb[0].mxu0
      %v732 = vadd.f32 %v624, %v731
      %v733 = vpop.f32.mrb[0].mxu0
      %734 = vmatprep.mubr.f32.mxu0 0.0
      %735 = vmatmul.mubr.f32.gmra.mrb[0].mxu0 %v639
      %v736 = vpop.f32.mrb[0].mxu0
      %v737 = vadd.f32 %v624, %v736
      %v738 = vpop.f32.mrb[0].mxu0
      %739 = vmatprep.mubr.f32.mxu0 0.0
      %740 = vmatmul.mubr.f32.gmra.mrb[0].mxu0 %v642
      %v741 = vpop.f32.mrb[0].mxu0
      %v742 = vadd.f32 %v624, %v741
      %v743 = vpop.f32.mrb[0].mxu0
      %744 = vmatprep.mubr.f32.mxu0 0.0
      %745 = vmatmul.mubr.f32.gmra.mrb[0].mxu0 %v645
      %v746 = vpop.f32.mrb[0].mxu0
      %v747 = vadd.f32 %v624, %v746
      %v748 = vpop.f32.mrb[0].mxu0
      %749 = vmatprep.mubr.f32.mxu0 0.0
      %750 = vmatmul.mubr.f32.gmra.mrb[0].mxu0 %v648
      %v751 = vpop.f32.mrb[0].mxu0
      %v752 = vadd.f32 %v624, %v751
      %v753 = vpop.f32.mrb[0].mxu0
      %754 = vdwg.mxu0
      %v755 = vmul.f32 %v717, 0.35355338
      %v756 = vmul.f32 %v722, 0.35355338
      %v757 = vmul.f32 %v727, 0.35355338
      %v758 = vmul.f32 %v732, 0.35355338
      %v759 = vmul.f32 %v737, 0.35355338
      %v760 = vmul.f32 %v742, 0.35355338
      %v761 = vmul.f32 %v747, 0.35355338
      %v762 = vmul.f32 %v752, 0.35355338
      %v763 = vld [vmem:[%s1] sm:$0xff]
      %v764 = vld [vmem:[%s1 + $0x8] sm:$0xff]
      %v765 = vld [vmem:[%s1 + $0x10] sm:$0xff]
      %v766 = vld [vmem:[%s1 + $0x18] sm:$0xff]
      %v767 = vld [vmem:[%s1 + $0x20] sm:$0xff]
      %v768 = vld [vmem:[%s1 + $0x28] sm:$0xff]
      %v769 = vld [vmem:[%s1 + $0x30] sm:$0xff]
      %v770 = vld [vmem:[%s1 + $0x38] sm:$0xff]
      %779 = vrot.lane.b32.xlu0 %v717, 96
      %v780 = vpop.permute.xlu0 %779
      %781 = vrot.lane.b32.xlu0 %v722, 96
      %v782 = vpop.permute.xlu0 %781
      %783 = vrot.lane.b32.xlu0 %v727, 96
      %v784 = vpop.permute.xlu0 %783
      %785 = vrot.lane.b32.xlu0 %v732, 96
      %v786 = vpop.permute.xlu0 %785
      %787 = vrot.lane.b32.xlu0 %v737, 96
      %v788 = vpop.permute.xlu0 %787
      %789 = vrot.lane.b32.xlu0 %v742, 96
      %v790 = vpop.permute.xlu0 %789
      %791 = vrot.lane.b32.xlu0 %v747, 96
      %v792 = vpop.permute.xlu0 %791
      %793 = vrot.lane.b32.xlu0 %v752, 96
      %v794 = vpop.permute.xlu0 %793
      %vm795 = vcmask 64512
      %v797 = vsel %vm795, %v755, 0
      %v800 = vsel %vm795, %v756, 0
      %v803 = vsel %vm795, %v757, 0
      %v806 = vsel %vm795, %v758, 0
      %v809 = vsel %vm795, %v759, 0
      %v812 = vsel %vm795, %v760, 0
      %v815 = vsel %vm795, %v761, 0
      %v818 = vsel %vm795, %v762, 0
      %v820 = vsel %vm795, %v780, 0
      %v822 = vsel %vm795, %v782, 0
      %v824 = vsel %vm795, %v784, 0
      %v826 = vsel %vm795, %v786, 0
      %v828 = vsel %vm795, %v788, 0
      %v830 = vsel %vm795, %v790, 0
      %v832 = vsel %vm795, %v792, 0
      %v834 = vsel %vm795, %v794, 0
      %836 = vmatprep.subr.mxu0 0.0
      %837 = vmatpush1.xpose.msra.mxu0 %v820
      %838 = vmatprep.subr.mxu0 0.0
      %839 = vmatpush1.xpose.msra.mxu0 %v822
      %840 = vmatprep.subr.mxu0 0.0
      %841 = vmatpush1.xpose.msra.mxu0 %v824
      %842 = vmatprep.subr.mxu0 0.0
      %843 = vmatpush1.xpose.msra.mxu0 %v826
      %844 = vmatprep.subr.mxu0 0.0
      %845 = vmatpush1.xpose.msra.mxu0 %v828
      %846 = vmatprep.subr.mxu0 0.0
      %847 = vmatpush1.xpose.msra.mxu0 %v830
      %848 = vmatprep.subr.mxu0 0.0
      %849 = vmatpush1.xpose.msra.mxu0 %v832
      %850 = vmatprep.subr.mxu0 0.0
      %851 = vmatpush1.xpose.msra.mxu0 %v834
      %852 = vmatprep.subr.mxu0 0.0
      %853 = vmatpush1.xpose.msra.mxu0 0.0
      %854 = vmatprep.subr.mxu0 0.0
      %855 = vmatpush1.xpose.msra.mxu0 0.0
      %856 = vmatprep.subr.mxu0 0.0
      %857 = vmatpush1.xpose.msra.mxu0 0.0
      %858 = vmatprep.subr.mxu0 0.0
      %859 = vmatpush1.xpose.msra.mxu0 0.0
      %860 = vmatprep.subr.mxu0 0.0
      %861 = vmatpush1.xpose.msra.mxu0 0.0
      %862 = vmatprep.subr.mxu0 0.0
      %863 = vmatpush1.xpose.msra.mxu0 0.0
      %864 = vmatprep.subr.mxu0 0.0
      %865 = vmatpush1.xpose.msra.mxu0 0.0
      %866 = vmatprep.subr.mxu0 0.0
      %867 = vmatpush1.xpose.msra.mxu0 0.0
      %868 = vmatprep.subr.mxu0 0.0
      %869 = vmatpush1.xpose.msra.mxu0 0.0
      %870 = vmatprep.subr.mxu0 0.0
      %871 = vmatpush1.xpose.msra.mxu0 0.0
      %872 = vmatprep.subr.mxu0 0.0
      %873 = vmatpush1.xpose.msra.mxu0 0.0
      %874 = vmatprep.subr.mxu0 0.0
      %875 = vmatpush1.xpose.msra.mxu0 0.0
      %876 = vmatprep.subr.mxu0 0.0
      %877 = vmatpush1.xpose.msra.mxu0 0.0
      %878 = vmatprep.subr.mxu0 0.0
      %879 = vmatpush1.xpose.msra.mxu0 0.0
      %880 = vmatprep.subr.mxu0 0.0
      %881 = vmatpush1.xpose.msra.mxu0 0.0
      %882 = vmatprep.subr.mxu0 0.0
      %883 = vmatpush1.xpose.msra.mxu0 0.0
      %884 = vmatprep.subr.mxu0 0.0
      %885 = vmatpush1.xpose.msra.mxu0 0.0
      %886 = vmatprep.subr.mxu0 0.0
      %887 = vmatpush1.xpose.msra.mxu0 0.0
      %888 = vmatprep.subr.mxu0 0.0
      %889 = vmatpush1.xpose.msra.mxu0 0.0
      %890 = vmatprep.subr.mxu0 0.0
      %891 = vmatpush1.xpose.msra.mxu0 0.0
      %892 = vmatprep.subr.mxu0 0.0
      %893 = vmatpush1.xpose.msra.mxu0 0.0
      %894 = vmatprep.subr.mxu0 0.0
      %895 = vmatpush1.xpose.msra.mxu0 0.0
      %896 = vmatprep.subr.mxu0 0.0
      %897 = vmatpush1.xpose.msra.mxu0 0.0
      %898 = vmatprep.subr.mxu0 0.0
      %899 = vmatpush1.xpose.msra.mxu0 0.0
      %900 = vmatprep.mubr.f32.mxu0 0.0
      %901 = vmatmul.mubr.f32.gmra.mrb[0].mxu0 %v797
      %v902 = vpop.f32.mrb[0].mxu0
      %v903 = vadd.f32 %v763, %v902
      %v904 = vpop.f32.mrb[0].mxu0
      %905 = vmatprep.mubr.f32.mxu0 0.0
      %906 = vmatmul.mubr.f32.gmra.mrb[0].mxu0 %v800
      %v907 = vpop.f32.mrb[0].mxu0
      %v908 = vadd.f32 %v764, %v907
      %v909 = vpop.f32.mrb[0].mxu0
      %910 = vmatprep.mubr.f32.mxu0 0.0
      %911 = vmatmul.mubr.f32.gmra.mrb[0].mxu0 %v803
      %v912 = vpop.f32.mrb[0].mxu0
      %v913 = vadd.f32 %v765, %v912
      %v914 = vpop.f32.mrb[0].mxu0
      %915 = vmatprep.mubr.f32.mxu0 0.0
      %916 = vmatmul.mubr.f32.gmra.mrb[0].mxu0 %v806
      %v917 = vpop.f32.mrb[0].mxu0
      %v918 = vadd.f32 %v766, %v917
      %v919 = vpop.f32.mrb[0].mxu0
      %920 = vmatprep.mubr.f32.mxu0 0.0
      %921 = vmatmul.mubr.f32.gmra.mrb[0].mxu0 %v809
      %v922 = vpop.f32.mrb[0].mxu0
      %v923 = vadd.f32 %v767, %v922
      %v924 = vpop.f32.mrb[0].mxu0
      %925 = vmatprep.mubr.f32.mxu0 0.0
      %926 = vmatmul.mubr.f32.gmra.mrb[0].mxu0 %v812
      %v927 = vpop.f32.mrb[0].mxu0
      %v928 = vadd.f32 %v768, %v927
      %v929 = vpop.f32.mrb[0].mxu0
      %930 = vmatprep.mubr.f32.mxu0 0.0
      %931 = vmatmul.mubr.f32.gmra.mrb[0].mxu0 %v815
      %v932 = vpop.f32.mrb[0].mxu0
      %v933 = vadd.f32 %v769, %v932
      %v934 = vpop.f32.mrb[0].mxu0
      %935 = vmatprep.mubr.f32.mxu0 0.0
      %936 = vmatmul.mubr.f32.gmra.mrb[0].mxu0 %v818
      %v937 = vpop.f32.mrb[0].mxu0
      %v938 = vadd.f32 %v770, %v937
      %v939 = vpop.f32.mrb[0].mxu0
      %940 = vdwg.mxu0
      %vm941 = vcmask 523264
      %v942 = vsel %vm941, %v903, -inf
      %943 = vmax.xlane.f32.xlu0 %v942
      %v944 = vpop.xlane.xlu0 %943
      %v945 = vsel %vm941, %v908, -inf
      %946 = vmax.xlane.f32.xlu0 %v945
      %v947 = vpop.xlane.xlu0 %946
      %v948 = vsel %vm941, %v913, -inf
      %949 = vmax.xlane.f32.xlu0 %v948
      %v950 = vpop.xlane.xlu0 %949
      %v951 = vsel %vm941, %v918, -inf
      %952 = vmax.xlane.f32.xlu0 %v951
      %v953 = vpop.xlane.xlu0 %952
      %v954 = vsel %vm941, %v923, -inf
      %955 = vmax.xlane.f32.xlu0 %v954
      %v956 = vpop.xlane.xlu0 %955
      %v957 = vsel %vm941, %v928, -inf
      %958 = vmax.xlane.f32.xlu0 %v957
      %v959 = vpop.xlane.xlu0 %958
      %v960 = vsel %vm941, %v933, -inf
      %961 = vmax.xlane.f32.xlu0 %v960
      %v962 = vpop.xlane.xlu0 %961
      %v963 = vsel %vm941, %v938, -inf
      %964 = vmax.xlane.f32.xlu0 %v963
      %v965 = vpop.xlane.xlu0 %964
      %v966 = vsub.f32 %v903, %v944
      %v967 = vsub.f32 %v908, %v947
      %v968 = vsub.f32 %v913, %v950
      %v969 = vsub.f32 %v918, %v953
      %v970 = vsub.f32 %v923, %v956
      %v971 = vsub.f32 %v928, %v959
      %v972 = vsub.f32 %v933, %v962
      %v973 = vsub.f32 %v938, %v965
      %v974 = vmul.f32 %v966, 1.442695
      %v975 = vpow.pop %v974
      %v976 = vmul.f32 %v967, 1.442695
      %v977 = vpow.pop %v976
      %v978 = vmul.f32 %v968, 1.442695
      %v979 = vpow.pop %v978
      %v980 = vmul.f32 %v969, 1.442695
      %v981 = vpow.pop %v980
      %v982 = vmul.f32 %v970, 1.442695
      %v983 = vpow.pop %v982
      %v984 = vmul.f32 %v971, 1.442695
      %v985 = vpow.pop %v984
      %v986 = vmul.f32 %v972, 1.442695
      %v987 = vpow.pop %v986
      %v988 = vmul.f32 %v973, 1.442695
      %v989 = vpow.pop %v988
      %v990 = vsel %vm941, %v975, 0.0
      %991 = vadd.xlane.f32.xlu0 %v990
      %v992 = vpop.xlane.xlu0 %991
      %v993 = vsel %vm941, %v977, 0.0
      %994 = vadd.xlane.f32.xlu0 %v993
      %v995 = vpop.xlane.xlu0 %994
      %v996 = vsel %vm941, %v979, 0.0
      %997 = vadd.xlane.f32.xlu0 %v996
      %v998 = vpop.xlane.xlu0 %997
      %v999 = vsel %vm941, %v981, 0.0
      %1000 = vadd.xlane.f32.xlu0 %v999
      %v1001 = vpop.xlane.xlu0 %1000
      %v1002 = vsel %vm941, %v983, 0.0
      %1003 = vadd.xlane.f32.xlu0 %v1002
      %v1004 = vpop.xlane.xlu0 %1003
      %v1005 = vsel %vm941, %v985, 0.0
      %1006 = vadd.xlane.f32.xlu0 %v1005
      %v1007 = vpop.xlane.xlu0 %1006
      %v1008 = vsel %vm941, %v987, 0.0
      %1009 = vadd.xlane.f32.xlu0 %v1008
      %v1010 = vpop.xlane.xlu0 %1009
      %v1011 = vsel %vm941, %v989, 0.0
      %1012 = vadd.xlane.f32.xlu0 %v1011
      %v1013 = vpop.xlane.xlu0 %1012
      %v1014 = vrcp.pop %v992
      %v1015 = vrcp.pop %v995
      %v1016 = vrcp.pop %v998
      %v1017 = vrcp.pop %v1001
      %v1018 = vrcp.pop %v1004
      %v1019 = vrcp.pop %v1007
      %v1020 = vrcp.pop %v1010
      %v1021 = vrcp.pop %v1013
      %v1022 = vmul.f32 %v975, %v1014
      %v1023 = vmul.f32 %v977, %v1015
      %v1024 = vmul.f32 %v979, %v1016
      %v1025 = vmul.f32 %v981, %v1017
      %v1026 = vmul.f32 %v983, %v1018
      %v1027 = vmul.f32 %v985, %v1019
      %v1028 = vmul.f32 %v987, %v1020
      %v1029 = vmul.f32 %v989, %v1021
      %1030 = vrot.lane.b32.xlu0 %v717, 64
      %v1031 = vpop.permute.xlu0 %1030
      %1032 = vrot.lane.b32.xlu0 %v722, 64
      %v1033 = vpop.permute.xlu0 %1032
      %1034 = vrot.lane.b32.xlu0 %v727, 64
      %v1035 = vpop.permute.xlu0 %1034
      %1036 = vrot.lane.b32.xlu0 %v732, 64
      %v1037 = vpop.permute.xlu0 %1036
      %1038 = vrot.lane.b32.xlu0 %v737, 64
      %v1039 = vpop.permute.xlu0 %1038
      %1040 = vrot.lane.b32.xlu0 %v742, 64
      %v1041 = vpop.permute.xlu0 %1040
      %1042 = vrot.lane.b32.xlu0 %v747, 64
      %v1043 = vpop.permute.xlu0 %1042
      %1044 = vrot.lane.b32.xlu0 %v752, 64
      %v1045 = vpop.permute.xlu0 %1044
      %v1055 = vsel %vm941, %v1022, 0
      %v1058 = vsel %vm941, %v1023, 0
      %v1061 = vsel %vm941, %v1024, 0
      %v1064 = vsel %vm941, %v1025, 0
      %v1067 = vsel %vm941, %v1026, 0
      %v1070 = vsel %vm941, %v1027, 0
      %v1073 = vsel %vm941, %v1028, 0
      %v1076 = vsel %vm941, %v1029, 0
      %1078 = vmatprep.subr.mxu0 0.0
      %1079 = vmatpush1.msra.mxu0 %v1031
      %1080 = vmatprep.subr.mxu0 0.0
      %1081 = vmatpush1.msra.mxu0 %v1033
      %1082 = vmatprep.subr.mxu0 0.0
      %1083 = vmatpush1.msra.mxu0 %v1035
      %1084 = vmatprep.subr.mxu0 0.0
      %1085 = vmatpush1.msra.mxu0 %v1037
      %1086 = vmatprep.subr.mxu0 0.0
      %1087 = vmatpush1.msra.mxu0 %v1039
      %1088 = vmatprep.subr.mxu0 0.0
      %1089 = vmatpush1.msra.mxu0 %v1041
      %1090 = vmatprep.subr.mxu0 0.0
      %1091 = vmatpush1.msra.mxu0 %v1043
      %1092 = vmatprep.subr.mxu0 0.0
      %1093 = vmatpush1.msra.mxu0 %v1045
      %1094 = vmatprep.subr.mxu0 0.0
      %1095 = vmatpush1.msra.mxu0 0.0
      %1096 = vmatprep.subr.mxu0 0.0
      %1097 = vmatpush1.msra.mxu0 0.0
      %1098 = vmatprep.subr.mxu0 0.0
      %1099 = vmatpush1.msra.mxu0 0.0
      %1100 = vmatprep.subr.mxu0 0.0
      %1101 = vmatpush1.msra.mxu0 0.0
      %1102 = vmatprep.subr.mxu0 0.0
      %1103 = vmatpush1.msra.mxu0 0.0
      %1104 = vmatprep.subr.mxu0 0.0
      %1105 = vmatpush1.msra.mxu0 0.0
      %1106 = vmatprep.subr.mxu0 0.0
      %1107 = vmatpush1.msra.mxu0 0.0
      %1108 = vmatprep.subr.mxu0 0.0
      %1109 = vmatpush1.msra.mxu0 0.0
      %1110 = vmatprep.subr.mxu0 0.0
      %1111 = vmatpush1.msra.mxu0 0.0
      %1112 = vmatprep.subr.mxu0 0.0
      %1113 = vmatpush1.msra.mxu0 0.0
      %1114 = vmatprep.subr.mxu0 0.0
      %1115 = vmatpush1.msra.mxu0 0.0
      %1116 = vmatprep.subr.mxu0 0.0
      %1117 = vmatpush1.msra.mxu0 0.0
      %1118 = vmatprep.subr.mxu0 0.0
      %1119 = vmatpush1.msra.mxu0 0.0
      %1120 = vmatprep.subr.mxu0 0.0
      %1121 = vmatpush1.msra.mxu0 0.0
      %1122 = vmatprep.subr.mxu0 0.0
      %1123 = vmatpush1.msra.mxu0 0.0
      %1124 = vmatprep.subr.mxu0 0.0
      %1125 = vmatpush1.msra.mxu0 0.0
      %1126 = vmatprep.subr.mxu0 0.0
      %1127 = vmatpush1.msra.mxu0 0.0
      %1128 = vmatprep.subr.mxu0 0.0
      %1129 = vmatpush1.msra.mxu0 0.0
      %1130 = vmatprep.subr.mxu0 0.0
      %1131 = vmatpush1.msra.mxu0 0.0
      %1132 = vmatprep.subr.mxu0 0.0
      %1133 = vmatpush1.msra.mxu0 0.0
      %1134 = vmatprep.subr.mxu0 0.0
      %1135 = vmatpush1.msra.mxu0 0.0
      %1136 = vmatprep.subr.mxu0 0.0
      %1137 = vmatpush1.msra.mxu0 0.0
      %1138 = vmatprep.subr.mxu0 0.0
      %1139 = vmatpush1.msra.mxu0 0.0
      %1140 = vmatprep.subr.mxu0 0.0
      %1141 = vmatpush1.msra.mxu0 0.0
      %1142 = vmatprep.mubr.f32.mxu0 0.0
      %1143 = vmatmul.mubr.f32.gmra.mrb[0].mxu0 %v1055
      %v1144 = vpop.f32.mrb[0].mxu0
      %v1145 = vadd.f32 0.0, %v1144
      %v1146 = vpop.f32.mrb[0].mxu0
      %1147 = vmatprep.mubr.f32.mxu0 0.0
      %1148 = vmatmul.mubr.f32.gmra.mrb[0].mxu0 %v1058
      %v1149 = vpop.f32.mrb[0].mxu0
      %v1150 = vadd.f32 0.0, %v1149
      %v1151 = vpop.f32.mrb[0].mxu0
      %1152 = vmatprep.mubr.f32.mxu0 0.0
      %1153 = vmatmul.mubr.f32.gmra.mrb[0].mxu0 %v1061
      %v1154 = vpop.f32.mrb[0].mxu0
      %v1155 = vadd.f32 0.0, %v1154
      %v1156 = vpop.f32.mrb[0].mxu0
      %1157 = vmatprep.mubr.f32.mxu0 0.0
      %1158 = vmatmul.mubr.f32.gmra.mrb[0].mxu0 %v1064
      %v1159 = vpop.f32.mrb[0].mxu0
      %v1160 = vadd.f32 0.0, %v1159
      %v1161 = vpop.f32.mrb[0].mxu0
      %1162 = vmatprep.mubr.f32.mxu0 0.0
      %1163 = vmatmul.mubr.f32.gmra.mrb[0].mxu0 %v1067
      %v1164 = vpop.f32.mrb[0].mxu0
      %v1165 = vadd.f32 0.0, %v1164
      %v1166 = vpop.f32.mrb[0].mxu0
      %1167 = vmatprep.mubr.f32.mxu0 0.0
      %1168 = vmatmul.mubr.f32.gmra.mrb[0].mxu0 %v1070
      %v1169 = vpop.f32.mrb[0].mxu0
      %v1170 = vadd.f32 0.0, %v1169
      %v1171 = vpop.f32.mrb[0].mxu0
      %1172 = vmatprep.mubr.f32.mxu0 0.0
      %1173 = vmatmul.mubr.f32.gmra.mrb[0].mxu0 %v1073
      %v1174 = vpop.f32.mrb[0].mxu0
      %v1175 = vadd.f32 0.0, %v1174
      %v1176 = vpop.f32.mrb[0].mxu0
      %1177 = vmatprep.mubr.f32.mxu0 0.0
      %1178 = vmatmul.mubr.f32.gmra.mrb[0].mxu0 %v1076
      %v1179 = vpop.f32.mrb[0].mxu0
      %v1180 = vadd.f32 0.0, %v1179
      %v1181 = vpop.f32.mrb[0].mxu0
      %1182 = vdwg.mxu0
      %s1183 = scalar_lea.vmem %s1, 64
      %v1184 = vld [vmem:[%s1183] sm:$0xff]
      %v1185 = vld [vmem:[%s1183 + $0x8] sm:$0xff]
      %v1186 = vld [vmem:[%s1183 + $0x10] sm:$0xff]
      %v1187 = vld [vmem:[%s1183 + $0x18] sm:$0xff]
      %v1188 = vld [vmem:[%s1183 + $0x20] sm:$0xff]
      %v1189 = vld [vmem:[%s1183 + $0x28] sm:$0xff]
      %v1190 = vld [vmem:[%s1183 + $0x30] sm:$0xff]
      %v1191 = vld [vmem:[%s1183 + $0x38] sm:$0xff]
      %1192 = vrot.lane.b32.xlu0 %v755, 120
      %v1193 = vpop.permute.xlu0 %1192
      %1194 = vrot.lane.b32.xlu0 %v756, 120
      %v1195 = vpop.permute.xlu0 %1194
      %1196 = vrot.lane.b32.xlu0 %v757, 120
      %v1197 = vpop.permute.xlu0 %1196
      %1198 = vrot.lane.b32.xlu0 %v758, 120
      %v1199 = vpop.permute.xlu0 %1198
      %1200 = vrot.lane.b32.xlu0 %v759, 120
      %v1201 = vpop.permute.xlu0 %1200
      %1202 = vrot.lane.b32.xlu0 %v760, 120
      %v1203 = vpop.permute.xlu0 %1202
      %1204 = vrot.lane.b32.xlu0 %v761, 120
      %v1205 = vpop.permute.xlu0 %1204
      %1206 = vrot.lane.b32.xlu0 %v762, 120
      %v1207 = vpop.permute.xlu0 %1206
      %1208 = vrot.lane.b32.xlu0 %v717, 88
      %v1209 = vpop.permute.xlu0 %1208
      %1210 = vrot.lane.b32.xlu0 %v722, 88
      %v1211 = vpop.permute.xlu0 %1210
      %1212 = vrot.lane.b32.xlu0 %v727, 88
      %v1213 = vpop.permute.xlu0 %1212
      %1214 = vrot.lane.b32.xlu0 %v732, 88
      %v1215 = vpop.permute.xlu0 %1214
      %1216 = vrot.lane.b32.xlu0 %v737, 88
      %v1217 = vpop.permute.xlu0 %1216
      %1218 = vrot.lane.b32.xlu0 %v742, 88
      %v1219 = vpop.permute.xlu0 %1218
      %1220 = vrot.lane.b32.xlu0 %v747, 88
      %v1221 = vpop.permute.xlu0 %1220
      %1222 = vrot.lane.b32.xlu0 %v752, 88
      %v1223 = vpop.permute.xlu0 %1222
      %v1224 = vsel %vm795, %v1193, 0
      %v1226 = vsel %vm795, %v1195, 0
      %v1228 = vsel %vm795, %v1197, 0
      %v1230 = vsel %vm795, %v1199, 0
      %v1232 = vsel %vm795, %v1201, 0
      %v1234 = vsel %vm795, %v1203, 0
      %v1236 = vsel %vm795, %v1205, 0
      %v1238 = vsel %vm795, %v1207, 0
      %v1240 = vsel %vm795, %v1209, 0
      %v1242 = vsel %vm795, %v1211, 0
      %v1244 = vsel %vm795, %v1213, 0
      %v1246 = vsel %vm795, %v1215, 0
      %v1248 = vsel %vm795, %v1217, 0
      %v1250 = vsel %vm795, %v1219, 0
      %v1252 = vsel %vm795, %v1221, 0
      %v1254 = vsel %vm795, %v1223, 0
      %1256 = vmatprep.subr.mxu0 0.0
      %1257 = vmatpush1.xpose.msra.mxu0 %v1240
      %1258 = vmatprep.subr.mxu0 0.0
      %1259 = vmatpush1.xpose.msra.mxu0 %v1242
      %1260 = vmatprep.subr.mxu0 0.0
      %1261 = vmatpush1.xpose.msra.mxu0 %v1244
      %1262 = vmatprep.subr.mxu0 0.0
      %1263 = vmatpush1.xpose.msra.mxu0 %v1246
      %1264 = vmatprep.subr.mxu0 0.0
      %1265 = vmatpush1.xpose.msra.mxu0 %v1248
      %1266 = vmatprep.subr.mxu0 0.0
      %1267 = vmatpush1.xpose.msra.mxu0 %v1250
      %1268 = vmatprep.subr.mxu0 0.0
      %1269 = vmatpush1.xpose.msra.mxu0 %v1252
      %1270 = vmatprep.subr.mxu0 0.0
      %1271 = vmatpush1.xpose.msra.mxu0 %v1254
      %1272 = vmatprep.subr.mxu0 0.0
      %1273 = vmatpush1.xpose.msra.mxu0 0.0
      %1274 = vmatprep.subr.mxu0 0.0
      %1275 = vmatpush1.xpose.msra.mxu0 0.0
      %1276 = vmatprep.subr.mxu0 0.0
      %1277 = vmatpush1.xpose.msra.mxu0 0.0
      %1278 = vmatprep.subr.mxu0 0.0
      %1279 = vmatpush1.xpose.msra.mxu0 0.0
      %1280 = vmatprep.subr.mxu0 0.0
      %1281 = vmatpush1.xpose.msra.mxu0 0.0
      %1282 = vmatprep.subr.mxu0 0.0
      %1283 = vmatpush1.xpose.msra.mxu0 0.0
      %1284 = vmatprep.subr.mxu0 0.0
      %1285 = vmatpush1.xpose.msra.mxu0 0.0
      %1286 = vmatprep.subr.mxu0 0.0
      %1287 = vmatpush1.xpose.msra.mxu0 0.0
      %1288 = vmatprep.subr.mxu0 0.0
      %1289 = vmatpush1.xpose.msra.mxu0 0.0
      %1290 = vmatprep.subr.mxu0 0.0
      %1291 = vmatpush1.xpose.msra.mxu0 0.0
      %1292 = vmatprep.subr.mxu0 0.0
      %1293 = vmatpush1.xpose.msra.mxu0 0.0
      %1294 = vmatprep.subr.mxu0 0.0
      %1295 = vmatpush1.xpose.msra.mxu0 0.0
      %1296 = vmatprep.subr.mxu0 0.0
      %1297 = vmatpush1.xpose.msra.mxu0 0.0
      %1298 = vmatprep.subr.mxu0 0.0
      %1299 = vmatpush1.xpose.msra.mxu0 0.0
      %1300 = vmatprep.subr.mxu0 0.0
      %1301 = vmatpush1.xpose.msra.mxu0 0.0
      %1302 = vmatprep.subr.mxu0 0.0
      %1303 = vmatpush1.xpose.msra.mxu0 0.0
      %1304 = vmatprep.subr.mxu0 0.0
      %1305 = vmatpush1.xpose.msra.mxu0 0.0
      %1306 = vmatprep.subr.mxu0 0.0
      %1307 = vmatpush1.xpose.msra.mxu0 0.0
      %1308 = vmatprep.subr.mxu0 0.0
      %1309 = vmatpush1.xpose.msra.mxu0 0.0
      %1310 = vmatprep.subr.mxu0 0.0
      %1311 = vmatpush1.xpose.msra.mxu0 0.0
      %1312 = vmatprep.subr.mxu0 0.0
      %1313 = vmatpush1.xpose.msra.mxu0 0.0
      %1314 = vmatprep.subr.mxu0 0.0
      %1315 = vmatpush1.xpose.msra.mxu0 0.0
      %1316 = vmatprep.subr.mxu0 0.0
      %1317 = vmatpush1.xpose.msra.mxu0 0.0
      %1318 = vmatprep.subr.mxu0 0.0
      %1319 = vmatpush1.xpose.msra.mxu0 0.0
      %1320 = vmatprep.mubr.f32.mxu0 0.0
      %1321 = vmatmul.mubr.f32.gmra.mrb[0].mxu0 %v1224
      %v1322 = vpop.f32.mrb[0].mxu0
      %v1323 = vadd.f32 %v1184, %v1322
      %v1324 = vpop.f32.mrb[0].mxu0
      %1325 = vmatprep.mubr.f32.mxu0 0.0
      %1326 = vmatmul.mubr.f32.gmra.mrb[0].mxu0 %v1226
      %v1327 = vpop.f32.mrb[0].mxu0
      %v1328 = vadd.f32 %v1185, %v1327
      %v1329 = vpop.f32.mrb[0].mxu0
      %1330 = vmatprep.mubr.f32.mxu0 0.0
      %1331 = vmatmul.mubr.f32.gmra.mrb[0].mxu0 %v1228
      %v1332 = vpop.f32.mrb[0].mxu0
      %v1333 = vadd.f32 %v1186, %v1332
      %v1334 = vpop.f32.mrb[0].mxu0
      %1335 = vmatprep.mubr.f32.mxu0 0.0
      %1336 = vmatmul.mubr.f32.gmra.mrb[0].mxu0 %v1230
      %v1337 = vpop.f32.mrb[0].mxu0
      %v1338 = vadd.f32 %v1187, %v1337
      %v1339 = vpop.f32.mrb[0].mxu0
      %1340 = vmatprep.mubr.f32.mxu0 0.0
      %1341 = vmatmul.mubr.f32.gmra.mrb[0].mxu0 %v1232
      %v1342 = vpop.f32.mrb[0].mxu0
      %v1343 = vadd.f32 %v1188, %v1342
      %v1344 = vpop.f32.mrb[0].mxu0
      %1345 = vmatprep.mubr.f32.mxu0 0.0
      %1346 = vmatmul.mubr.f32.gmra.mrb[0].mxu0 %v1234
      %v1347 = vpop.f32.mrb[0].mxu0
      %v1348 = vadd.f32 %v1189, %v1347
      %v1349 = vpop.f32.mrb[0].mxu0
      %1350 = vmatprep.mubr.f32.mxu0 0.0
      %1351 = vmatmul.mubr.f32.gmra.mrb[0].mxu0 %v1236
      %v1352 = vpop.f32.mrb[0].mxu0
      %v1353 = vadd.f32 %v1190, %v1352
      %v1354 = vpop.f32.mrb[0].mxu0
      %1355 = vmatprep.mubr.f32.mxu0 0.0
      %1356 = vmatmul.mubr.f32.gmra.mrb[0].mxu0 %v1238
      %v1357 = vpop.f32.mrb[0].mxu0
      %v1358 = vadd.f32 %v1191, %v1357
      %v1359 = vpop.f32.mrb[0].mxu0
      %1360 = vdwg.mxu0
      %v1361 = vsel %vm941, %v1323, -inf
      %1362 = vmax.xlane.f32.xlu0 %v1361
      %v1363 = vpop.xlane.xlu0 %1362
      %v1364 = vsel %vm941, %v1328, -inf
      %1365 = vmax.xlane.f32.xlu0 %v1364
      %v1366 = vpop.xlane.xlu0 %1365
      %v1367 = vsel %vm941, %v1333, -inf
      %1368 = vmax.xlane.f32.xlu0 %v1367
      %v1369 = vpop.xlane.xlu0 %1368
      %v1370 = vsel %vm941, %v1338, -inf
      %1371 = vmax.xlane.f32.xlu0 %v1370
      %v1372 = vpop.xlane.xlu0 %1371
      %v1373 = vsel %vm941, %v1343, -inf
      %1374 = vmax.xlane.f32.xlu0 %v1373
      %v1375 = vpop.xlane.xlu0 %1374
      %v1376 = vsel %vm941, %v1348, -inf
      %1377 = vmax.xlane.f32.xlu0 %v1376
      %v1378 = vpop.xlane.xlu0 %1377
      %v1379 = vsel %vm941, %v1353, -inf
      %1380 = vmax.xlane.f32.xlu0 %v1379
      %v1381 = vpop.xlane.xlu0 %1380
      %v1382 = vsel %vm941, %v1358, -inf
      %1383 = vmax.xlane.f32.xlu0 %v1382
      %v1384 = vpop.xlane.xlu0 %1383
      %v1385 = vsub.f32 %v1323, %v1363
      %v1386 = vsub.f32 %v1328, %v1366
      %v1387 = vsub.f32 %v1333, %v1369
      %v1388 = vsub.f32 %v1338, %v1372
      %v1389 = vsub.f32 %v1343, %v1375
      %v1390 = vsub.f32 %v1348, %v1378
      %v1391 = vsub.f32 %v1353, %v1381
      %v1392 = vsub.f32 %v1358, %v1384
      %v1393 = vmul.f32 %v1385, 1.442695
      %v1394 = vpow.pop %v1393
      %v1395 = vmul.f32 %v1386, 1.442695
      %v1396 = vpow.pop %v1395
      %v1397 = vmul.f32 %v1387, 1.442695
      %v1398 = vpow.pop %v1397
      %v1399 = vmul.f32 %v1388, 1.442695
      %v1400 = vpow.pop %v1399
      %v1401 = vmul.f32 %v1389, 1.442695
      %v1402 = vpow.pop %v1401
      %v1403 = vmul.f32 %v1390, 1.442695
      %v1404 = vpow.pop %v1403
      %v1405 = vmul.f32 %v1391, 1.442695
      %v1406 = vpow.pop %v1405
      %v1407 = vmul.f32 %v1392, 1.442695
      %v1408 = vpow.pop %v1407
      %v1409 = vsel %vm941, %v1394, 0.0
      %1410 = vadd.xlane.f32.xlu0 %v1409
      %v1411 = vpop.xlane.xlu0 %1410
      %v1412 = vsel %vm941, %v1396, 0.0
      %1413 = vadd.xlane.f32.xlu0 %v1412
      %v1414 = vpop.xlane.xlu0 %1413
      %v1415 = vsel %vm941, %v1398, 0.0
      %1416 = vadd.xlane.f32.xlu0 %v1415
      %v1417 = vpop.xlane.xlu0 %1416
      %v1418 = vsel %vm941, %v1400, 0.0
      %1419 = vadd.xlane.f32.xlu0 %v1418
      %v1420 = vpop.xlane.xlu0 %1419
      %v1421 = vsel %vm941, %v1402, 0.0
      %1422 = vadd.xlane.f32.xlu0 %v1421
      %v1423 = vpop.xlane.xlu0 %1422
      %v1424 = vsel %vm941, %v1404, 0.0
      %1425 = vadd.xlane.f32.xlu0 %v1424
      %v1426 = vpop.xlane.xlu0 %1425
      %v1427 = vsel %vm941, %v1406, 0.0
      %1428 = vadd.xlane.f32.xlu0 %v1427
      %v1429 = vpop.xlane.xlu0 %1428
      %v1430 = vsel %vm941, %v1408, 0.0
      %1431 = vadd.xlane.f32.xlu0 %v1430
      %v1432 = vpop.xlane.xlu0 %1431
      %v1433 = vrcp.pop %v1411
      %v1434 = vrcp.pop %v1414
      %v1435 = vrcp.pop %v1417
      %v1436 = vrcp.pop %v1420
      %v1437 = vrcp.pop %v1423
      %v1438 = vrcp.pop %v1426
      %v1439 = vrcp.pop %v1429
      %v1440 = vrcp.pop %v1432
      %v1441 = vmul.f32 %v1394, %v1433
      %v1442 = vmul.f32 %v1396, %v1434
      %v1443 = vmul.f32 %v1398, %v1435
      %v1444 = vmul.f32 %v1400, %v1436
      %v1445 = vmul.f32 %v1402, %v1437
      %v1446 = vmul.f32 %v1404, %v1438
      %v1447 = vmul.f32 %v1406, %v1439
      %v1448 = vmul.f32 %v1408, %v1440
      %1449 = vrot.lane.b32.xlu0 %v717, 56
      %v1450 = vpop.permute.xlu0 %1449
      %1451 = vrot.lane.b32.xlu0 %v722, 56
      %v1452 = vpop.permute.xlu0 %1451
      %1453 = vrot.lane.b32.xlu0 %v727, 56
      %v1454 = vpop.permute.xlu0 %1453
      %1455 = vrot.lane.b32.xlu0 %v732, 56
      %v1456 = vpop.permute.xlu0 %1455
      %1457 = vrot.lane.b32.xlu0 %v737, 56
      %v1458 = vpop.permute.xlu0 %1457
      %1459 = vrot.lane.b32.xlu0 %v742, 56
      %v1460 = vpop.permute.xlu0 %1459
      %1461 = vrot.lane.b32.xlu0 %v747, 56
      %v1462 = vpop.permute.xlu0 %1461
      %1463 = vrot.lane.b32.xlu0 %v752, 56
      %v1464 = vpop.permute.xlu0 %1463
      %v1474 = vsel %vm941, %v1441, 0
      %v1477 = vsel %vm941, %v1442, 0
      %v1480 = vsel %vm941, %v1443, 0
      %v1483 = vsel %vm941, %v1444, 0
      %v1486 = vsel %vm941, %v1445, 0
      %v1489 = vsel %vm941, %v1446, 0
      %v1492 = vsel %vm941, %v1447, 0
      %v1495 = vsel %vm941, %v1448, 0
      %1497 = vmatprep.subr.mxu0 0.0
      %1498 = vmatpush1.msra.mxu0 %v1450
      %1499 = vmatprep.subr.mxu0 0.0
      %1500 = vmatpush1.msra.mxu0 %v1452
      %1501 = vmatprep.subr.mxu0 0.0
      %1502 = vmatpush1.msra.mxu0 %v1454
      %1503 = vmatprep.subr.mxu0 0.0
      %1504 = vmatpush1.msra.mxu0 %v1456
      %1505 = vmatprep.subr.mxu0 0.0
      %1506 = vmatpush1.msra.mxu0 %v1458
      %1507 = vmatprep.subr.mxu0 0.0
      %1508 = vmatpush1.msra.mxu0 %v1460
      %1509 = vmatprep.subr.mxu0 0.0
      %1510 = vmatpush1.msra.mxu0 %v1462
      %1511 = vmatprep.subr.mxu0 0.0
      %1512 = vmatpush1.msra.mxu0 %v1464
      %1513 = vmatprep.subr.mxu0 0.0
      %1514 = vmatpush1.msra.mxu0 0.0
      %1515 = vmatprep.subr.mxu0 0.0
      %1516 = vmatpush1.msra.mxu0 0.0
      %1517 = vmatprep.subr.mxu0 0.0
      %1518 = vmatpush1.msra.mxu0 0.0
      %1519 = vmatprep.subr.mxu0 0.0
      %1520 = vmatpush1.msra.mxu0 0.0
      %1521 = vmatprep.subr.mxu0 0.0
      %1522 = vmatpush1.msra.mxu0 0.0
      %1523 = vmatprep.subr.mxu0 0.0
      %1524 = vmatpush1.msra.mxu0 0.0
      %1525 = vmatprep.subr.mxu0 0.0
      %1526 = vmatpush1.msra.mxu0 0.0
      %1527 = vmatprep.subr.mxu0 0.0
      %1528 = vmatpush1.msra.mxu0 0.0
      %1529 = vmatprep.subr.mxu0 0.0
      %1530 = vmatpush1.msra.mxu0 0.0
      %1531 = vmatprep.subr.mxu0 0.0
      %1532 = vmatpush1.msra.mxu0 0.0
      %1533 = vmatprep.subr.mxu0 0.0
      %1534 = vmatpush1.msra.mxu0 0.0
      %1535 = vmatprep.subr.mxu0 0.0
      %1536 = vmatpush1.msra.mxu0 0.0
      %1537 = vmatprep.subr.mxu0 0.0
      %1538 = vmatpush1.msra.mxu0 0.0
      %1539 = vmatprep.subr.mxu0 0.0
      %1540 = vmatpush1.msra.mxu0 0.0
      %1541 = vmatprep.subr.mxu0 0.0
      %1542 = vmatpush1.msra.mxu0 0.0
      %1543 = vmatprep.subr.mxu0 0.0
      %1544 = vmatpush1.msra.mxu0 0.0
      %1545 = vmatprep.subr.mxu0 0.0
      %1546 = vmatpush1.msra.mxu0 0.0
      %1547 = vmatprep.subr.mxu0 0.0
      %1548 = vmatpush1.msra.mxu0 0.0
      %1549 = vmatprep.subr.mxu0 0.0
      %1550 = vmatpush1.msra.mxu0 0.0
      %1551 = vmatprep.subr.mxu0 0.0
      %1552 = vmatpush1.msra.mxu0 0.0
      %1553 = vmatprep.subr.mxu0 0.0
      %1554 = vmatpush1.msra.mxu0 0.0
      %1555 = vmatprep.subr.mxu0 0.0
      %1556 = vmatpush1.msra.mxu0 0.0
      %1557 = vmatprep.subr.mxu0 0.0
      %1558 = vmatpush1.msra.mxu0 0.0
      %1559 = vmatprep.subr.mxu0 0.0
      %1560 = vmatpush1.msra.mxu0 0.0
      %1561 = vmatprep.mubr.f32.mxu0 0.0
      %1562 = vmatmul.mubr.f32.gmra.mrb[0].mxu0 %v1474
      %v1563 = vpop.f32.mrb[0].mxu0
      %v1564 = vadd.f32 0.0, %v1563
      %v1565 = vpop.f32.mrb[0].mxu0
      %1566 = vmatprep.mubr.f32.mxu0 0.0
      %1567 = vmatmul.mubr.f32.gmra.mrb[0].mxu0 %v1477
      %v1568 = vpop.f32.mrb[0].mxu0
      %v1569 = vadd.f32 0.0, %v1568
      %v1570 = vpop.f32.mrb[0].mxu0
      %1571 = vmatprep.mubr.f32.mxu0 0.0
      %1572 = vmatmul.mubr.f32.gmra.mrb[0].mxu0 %v1480
      %v1573 = vpop.f32.mrb[0].mxu0
      %v1574 = vadd.f32 0.0, %v1573
      %v1575 = vpop.f32.mrb[0].mxu0
      %1576 = vmatprep.mubr.f32.mxu0 0.0
      %1577 = vmatmul.mubr.f32.gmra.mrb[0].mxu0 %v1483
      %v1578 = vpop.f32.mrb[0].mxu0
      %v1579 = vadd.f32 0.0, %v1578
      %v1580 = vpop.f32.mrb[0].mxu0
      %1581 = vmatprep.mubr.f32.mxu0 0.0
      %1582 = vmatmul.mubr.f32.gmra.mrb[0].mxu0 %v1486
      %v1583 = vpop.f32.mrb[0].mxu0
      %v1584 = vadd.f32 0.0, %v1583
      %v1585 = vpop.f32.mrb[0].mxu0
      %1586 = vmatprep.mubr.f32.mxu0 0.0
      %1587 = vmatmul.mubr.f32.gmra.mrb[0].mxu0 %v1489
      %v1588 = vpop.f32.mrb[0].mxu0
      %v1589 = vadd.f32 0.0, %v1588
      %v1590 = vpop.f32.mrb[0].mxu0
      %1591 = vmatprep.mubr.f32.mxu0 0.0
      %1592 = vmatmul.mubr.f32.gmra.mrb[0].mxu0 %v1492
      %v1593 = vpop.f32.mrb[0].mxu0
      %v1594 = vadd.f32 0.0, %v1593
      %v1595 = vpop.f32.mrb[0].mxu0
      %1596 = vmatprep.mubr.f32.mxu0 0.0
      %1597 = vmatmul.mubr.f32.gmra.mrb[0].mxu0 %v1495
      %v1598 = vpop.f32.mrb[0].mxu0
      %v1599 = vadd.f32 0.0, %v1598
      %v1600 = vpop.f32.mrb[0].mxu0
      %1601 = vdwg.mxu0
      %s1602 = scalar_lea.vmem %s1, 128
      %v1603 = vld [vmem:[%s1602] sm:$0xff]
      %v1604 = vld [vmem:[%s1602 + $0x8] sm:$0xff]
      %v1605 = vld [vmem:[%s1602 + $0x10] sm:$0xff]
      %v1606 = vld [vmem:[%s1602 + $0x18] sm:$0xff]
      %v1607 = vld [vmem:[%s1602 + $0x20] sm:$0xff]
      %v1608 = vld [vmem:[%s1602 + $0x28] sm:$0xff]
      %v1609 = vld [vmem:[%s1602 + $0x30] sm:$0xff]
      %v1610 = vld [vmem:[%s1602 + $0x38] sm:$0xff]
      %1611 = vrot.lane.b32.xlu0 %v755, 112
      %v1612 = vpop.permute.xlu0 %1611
      %1613 = vrot.lane.b32.xlu0 %v756, 112
      %v1614 = vpop.permute.xlu0 %1613
      %1615 = vrot.lane.b32.xlu0 %v757, 112
      %v1616 = vpop.permute.xlu0 %1615
      %1617 = vrot.lane.b32.xlu0 %v758, 112
      %v1618 = vpop.permute.xlu0 %1617
      %1619 = vrot.lane.b32.xlu0 %v759, 112
      %v1620 = vpop.permute.xlu0 %1619
      %1621 = vrot.lane.b32.xlu0 %v760, 112
      %v1622 = vpop.permute.xlu0 %1621
      %1623 = vrot.lane.b32.xlu0 %v761, 112
      %v1624 = vpop.permute.xlu0 %1623
      %1625 = vrot.lane.b32.xlu0 %v762, 112
      %v1626 = vpop.permute.xlu0 %1625
      %1627 = vrot.lane.b32.xlu0 %v717, 80
      %v1628 = vpop.permute.xlu0 %1627
      %1629 = vrot.lane.b32.xlu0 %v722, 80
      %v1630 = vpop.permute.xlu0 %1629
      %1631 = vrot.lane.b32.xlu0 %v727, 80
      %v1632 = vpop.permute.xlu0 %1631
      %1633 = vrot.lane.b32.xlu0 %v732, 80
      %v1634 = vpop.permute.xlu0 %1633
      %1635 = vrot.lane.b32.xlu0 %v737, 80
      %v1636 = vpop.permute.xlu0 %1635
      %1637 = vrot.lane.b32.xlu0 %v742, 80
      %v1638 = vpop.permute.xlu0 %1637
      %1639 = vrot.lane.b32.xlu0 %v747, 80
      %v1640 = vpop.permute.xlu0 %1639
      %1641 = vrot.lane.b32.xlu0 %v752, 80
      %v1642 = vpop.permute.xlu0 %1641
      %v1643 = vsel %vm795, %v1612, 0
      %v1645 = vsel %vm795, %v1614, 0
      %v1647 = vsel %vm795, %v1616, 0
      %v1649 = vsel %vm795, %v1618, 0
      %v1651 = vsel %vm795, %v1620, 0
      %v1653 = vsel %vm795, %v1622, 0
      %v1655 = vsel %vm795, %v1624, 0
      %v1657 = vsel %vm795, %v1626, 0
      %v1659 = vsel %vm795, %v1628, 0
      %v1661 = vsel %vm795, %v1630, 0
      %v1663 = vsel %vm795, %v1632, 0
      %v1665 = vsel %vm795, %v1634, 0
      %v1667 = vsel %vm795, %v1636, 0
      %v1669 = vsel %vm795, %v1638, 0
      %v1671 = vsel %vm795, %v1640, 0
      %v1673 = vsel %vm795, %v1642, 0
      %1675 = vmatprep.subr.mxu0 0.0
      %1676 = vmatpush1.xpose.msra.mxu0 %v1659
      %1677 = vmatprep.subr.mxu0 0.0
      %1678 = vmatpush1.xpose.msra.mxu0 %v1661
      %1679 = vmatprep.subr.mxu0 0.0
      %1680 = vmatpush1.xpose.msra.mxu0 %v1663
      %1681 = vmatprep.subr.mxu0 0.0
      %1682 = vmatpush1.xpose.msra.mxu0 %v1665
      %1683 = vmatprep.subr.mxu0 0.0
      %1684 = vmatpush1.xpose.msra.mxu0 %v1667
      %1685 = vmatprep.subr.mxu0 0.0
      %1686 = vmatpush1.xpose.msra.mxu0 %v1669
      %1687 = vmatprep.subr.mxu0 0.0
      %1688 = vmatpush1.xpose.msra.mxu0 %v1671
      %1689 = vmatprep.subr.mxu0 0.0
      %1690 = vmatpush1.xpose.msra.mxu0 %v1673
      %1691 = vmatprep.subr.mxu0 0.0
      %1692 = vmatpush1.xpose.msra.mxu0 0.0
      %1693 = vmatprep.subr.mxu0 0.0
      %1694 = vmatpush1.xpose.msra.mxu0 0.0
      %1695 = vmatprep.subr.mxu0 0.0
      %1696 = vmatpush1.xpose.msra.mxu0 0.0
      %1697 = vmatprep.subr.mxu0 0.0
      %1698 = vmatpush1.xpose.msra.mxu0 0.0
      %1699 = vmatprep.subr.mxu0 0.0
      %1700 = vmatpush1.xpose.msra.mxu0 0.0
      %1701 = vmatprep.subr.mxu0 0.0
      %1702 = vmatpush1.xpose.msra.mxu0 0.0
      %1703 = vmatprep.subr.mxu0 0.0
      %1704 = vmatpush1.xpose.msra.mxu0 0.0
      %1705 = vmatprep.subr.mxu0 0.0
      %1706 = vmatpush1.xpose.msra.mxu0 0.0
      %1707 = vmatprep.subr.mxu0 0.0
      %1708 = vmatpush1.xpose.msra.mxu0 0.0
      %1709 = vmatprep.subr.mxu0 0.0
      %1710 = vmatpush1.xpose.msra.mxu0 0.0
      %1711 = vmatprep.subr.mxu0 0.0
      %1712 = vmatpush1.xpose.msra.mxu0 0.0
      %1713 = vmatprep.subr.mxu0 0.0
      %1714 = vmatpush1.xpose.msra.mxu0 0.0
      %1715 = vmatprep.subr.mxu0 0.0
      %1716 = vmatpush1.xpose.msra.mxu0 0.0
      %1717 = vmatprep.subr.mxu0 0.0
      %1718 = vmatpush1.xpose.msra.mxu0 0.0
      %1719 = vmatprep.subr.mxu0 0.0
      %1720 = vmatpush1.xpose.msra.mxu0 0.0
      %1721 = vmatprep.subr.mxu0 0.0
      %1722 = vmatpush1.xpose.msra.mxu0 0.0
      %1723 = vmatprep.subr.mxu0 0.0
      %1724 = vmatpush1.xpose.msra.mxu0 0.0
      %1725 = vmatprep.subr.mxu0 0.0
      %1726 = vmatpush1.xpose.msra.mxu0 0.0
      %1727 = vmatprep.subr.mxu0 0.0
      %1728 = vmatpush1.xpose.msra.mxu0 0.0
      %1729 = vmatprep.subr.mxu0 0.0
      %1730 = vmatpush1.xpose.msra.mxu0 0.0
      %1731 = vmatprep.subr.mxu0 0.0
      %1732 = vmatpush1.xpose.msra.mxu0 0.0
      %1733 = vmatprep.subr.mxu0 0.0
      %1734 = vmatpush1.xpose.msra.mxu0 0.0
      %1735 = vmatprep.subr.mxu0 0.0
      %1736 = vmatpush1.xpose.msra.mxu0 0.0
      %1737 = vmatprep.subr.mxu0 0.0
      %1738 = vmatpush1.xpose.msra.mxu0 0.0
      %1739 = vmatprep.mubr.f32.mxu0 0.0
      %1740 = vmatmul.mubr.f32.gmra.mrb[0].mxu0 %v1643
      %v1741 = vpop.f32.mrb[0].mxu0
      %v1742 = vadd.f32 %v1603, %v1741
      %v1743 = vpop.f32.mrb[0].mxu0
      %1744 = vmatprep.mubr.f32.mxu0 0.0
      %1745 = vmatmul.mubr.f32.gmra.mrb[0].mxu0 %v1645
      %v1746 = vpop.f32.mrb[0].mxu0
      %v1747 = vadd.f32 %v1604, %v1746
      %v1748 = vpop.f32.mrb[0].mxu0
      %1749 = vmatprep.mubr.f32.mxu0 0.0
      %1750 = vmatmul.mubr.f32.gmra.mrb[0].mxu0 %v1647
      %v1751 = vpop.f32.mrb[0].mxu0
      %v1752 = vadd.f32 %v1605, %v1751
      %v1753 = vpop.f32.mrb[0].mxu0
      %1754 = vmatprep.mubr.f32.mxu0 0.0
      %1755 = vmatmul.mubr.f32.gmra.mrb[0].mxu0 %v1649
      %v1756 = vpop.f32.mrb[0].mxu0
      %v1757 = vadd.f32 %v1606, %v1756
      %v1758 = vpop.f32.mrb[0].mxu0
      %1759 = vmatprep.mubr.f32.mxu0 0.0
      %1760 = vmatmul.mubr.f32.gmra.mrb[0].mxu0 %v1651
      %v1761 = vpop.f32.mrb[0].mxu0
      %v1762 = vadd.f32 %v1607, %v1761
      %v1763 = vpop.f32.mrb[0].mxu0
      %1764 = vmatprep.mubr.f32.mxu0 0.0
      %1765 = vmatmul.mubr.f32.gmra.mrb[0].mxu0 %v1653
      %v1766 = vpop.f32.mrb[0].mxu0
      %v1767 = vadd.f32 %v1608, %v1766
      %v1768 = vpop.f32.mrb[0].mxu0
      %1769 = vmatprep.mubr.f32.mxu0 0.0
      %1770 = vmatmul.mubr.f32.gmra.mrb[0].mxu0 %v1655
      %v1771 = vpop.f32.mrb[0].mxu0
      %v1772 = vadd.f32 %v1609, %v1771
      %v1773 = vpop.f32.mrb[0].mxu0
      %1774 = vmatprep.mubr.f32.mxu0 0.0
      %1775 = vmatmul.mubr.f32.gmra.mrb[0].mxu0 %v1657
      %v1776 = vpop.f32.mrb[0].mxu0
      %v1777 = vadd.f32 %v1610, %v1776
      %v1778 = vpop.f32.mrb[0].mxu0
      %1779 = vdwg.mxu0
      %v1780 = vsel %vm941, %v1742, -inf
      %1781 = vmax.xlane.f32.xlu0 %v1780
      %v1782 = vpop.xlane.xlu0 %1781
      %v1783 = vsel %vm941, %v1747, -inf
      %1784 = vmax.xlane.f32.xlu0 %v1783
      %v1785 = vpop.xlane.xlu0 %1784
      %v1786 = vsel %vm941, %v1752, -inf
      %1787 = vmax.xlane.f32.xlu0 %v1786
      %v1788 = vpop.xlane.xlu0 %1787
      %v1789 = vsel %vm941, %v1757, -inf
      %1790 = vmax.xlane.f32.xlu0 %v1789
      %v1791 = vpop.xlane.xlu0 %1790
      %v1792 = vsel %vm941, %v1762, -inf
      %1793 = vmax.xlane.f32.xlu0 %v1792
      %v1794 = vpop.xlane.xlu0 %1793
      %v1795 = vsel %vm941, %v1767, -inf
      %1796 = vmax.xlane.f32.xlu0 %v1795
      %v1797 = vpop.xlane.xlu0 %1796
      %v1798 = vsel %vm941, %v1772, -inf
      %1799 = vmax.xlane.f32.xlu0 %v1798
      %v1800 = vpop.xlane.xlu0 %1799
      %v1801 = vsel %vm941, %v1777, -inf
      %1802 = vmax.xlane.f32.xlu0 %v1801
      %v1803 = vpop.xlane.xlu0 %1802
      %v1804 = vsub.f32 %v1742, %v1782
      %v1805 = vsub.f32 %v1747, %v1785
      %v1806 = vsub.f32 %v1752, %v1788
      %v1807 = vsub.f32 %v1757, %v1791
      %v1808 = vsub.f32 %v1762, %v1794
      %v1809 = vsub.f32 %v1767, %v1797
      %v1810 = vsub.f32 %v1772, %v1800
      %v1811 = vsub.f32 %v1777, %v1803
      %v1812 = vmul.f32 %v1804, 1.442695
      %v1813 = vpow.pop %v1812
      %v1814 = vmul.f32 %v1805, 1.442695
      %v1815 = vpow.pop %v1814
      %v1816 = vmul.f32 %v1806, 1.442695
      %v1817 = vpow.pop %v1816
      %v1818 = vmul.f32 %v1807, 1.442695
      %v1819 = vpow.pop %v1818
      %v1820 = vmul.f32 %v1808, 1.442695
      %v1821 = vpow.pop %v1820
      %v1822 = vmul.f32 %v1809, 1.442695
      %v1823 = vpow.pop %v1822
      %v1824 = vmul.f32 %v1810, 1.442695
      %v1825 = vpow.pop %v1824
      %v1826 = vmul.f32 %v1811, 1.442695
      %v1827 = vpow.pop %v1826
      %v1828 = vsel %vm941, %v1813, 0.0
      %1829 = vadd.xlane.f32.xlu0 %v1828
      %v1830 = vpop.xlane.xlu0 %1829
      %v1831 = vsel %vm941, %v1815, 0.0
      %1832 = vadd.xlane.f32.xlu0 %v1831
      %v1833 = vpop.xlane.xlu0 %1832
      %v1834 = vsel %vm941, %v1817, 0.0
      %1835 = vadd.xlane.f32.xlu0 %v1834
      %v1836 = vpop.xlane.xlu0 %1835
      %v1837 = vsel %vm941, %v1819, 0.0
      %1838 = vadd.xlane.f32.xlu0 %v1837
      %v1839 = vpop.xlane.xlu0 %1838
      %v1840 = vsel %vm941, %v1821, 0.0
      %1841 = vadd.xlane.f32.xlu0 %v1840
      %v1842 = vpop.xlane.xlu0 %1841
      %v1843 = vsel %vm941, %v1823, 0.0
      %1844 = vadd.xlane.f32.xlu0 %v1843
      %v1845 = vpop.xlane.xlu0 %1844
      %v1846 = vsel %vm941, %v1825, 0.0
      %1847 = vadd.xlane.f32.xlu0 %v1846
      %v1848 = vpop.xlane.xlu0 %1847
      %v1849 = vsel %vm941, %v1827, 0.0
      %1850 = vadd.xlane.f32.xlu0 %v1849
      %v1851 = vpop.xlane.xlu0 %1850
      %v1852 = vrcp.pop %v1830
      %v1853 = vrcp.pop %v1833
      %v1854 = vrcp.pop %v1836
      %v1855 = vrcp.pop %v1839
      %v1856 = vrcp.pop %v1842
      %v1857 = vrcp.pop %v1845
      %v1858 = vrcp.pop %v1848
      %v1859 = vrcp.pop %v1851
      %v1860 = vmul.f32 %v1813, %v1852
      %v1861 = vmul.f32 %v1815, %v1853
      %v1862 = vmul.f32 %v1817, %v1854
      %v1863 = vmul.f32 %v1819, %v1855
      %v1864 = vmul.f32 %v1821, %v1856
      %v1865 = vmul.f32 %v1823, %v1857
      %v1866 = vmul.f32 %v1825, %v1858
      %v1867 = vmul.f32 %v1827, %v1859
      %1868 = vrot.lane.b32.xlu0 %v717, 48
      %v1869 = vpop.permute.xlu0 %1868
      %1870 = vrot.lane.b32.xlu0 %v722, 48
      %v1871 = vpop.permute.xlu0 %1870
      %1872 = vrot.lane.b32.xlu0 %v727, 48
      %v1873 = vpop.permute.xlu0 %1872
      %1874 = vrot.lane.b32.xlu0 %v732, 48
      %v1875 = vpop.permute.xlu0 %1874
      %1876 = vrot.lane.b32.xlu0 %v737, 48
      %v1877 = vpop.permute.xlu0 %1876
      %1878 = vrot.lane.b32.xlu0 %v742, 48
      %v1879 = vpop.permute.xlu0 %1878
      %1880 = vrot.lane.b32.xlu0 %v747, 48
      %v1881 = vpop.permute.xlu0 %1880
      %1882 = vrot.lane.b32.xlu0 %v752, 48
      %v1883 = vpop.permute.xlu0 %1882
      %v1893 = vsel %vm941, %v1860, 0
      %v1896 = vsel %vm941, %v1861, 0
      %v1899 = vsel %vm941, %v1862, 0
      %v1902 = vsel %vm941, %v1863, 0
      %v1905 = vsel %vm941, %v1864, 0
      %v1908 = vsel %vm941, %v1865, 0
      %v1911 = vsel %vm941, %v1866, 0
      %v1914 = vsel %vm941, %v1867, 0
      %1916 = vmatprep.subr.mxu0 0.0
      %1917 = vmatpush1.msra.mxu0 %v1869
      %1918 = vmatprep.subr.mxu0 0.0
      %1919 = vmatpush1.msra.mxu0 %v1871
      %1920 = vmatprep.subr.mxu0 0.0
      %1921 = vmatpush1.msra.mxu0 %v1873
      %1922 = vmatprep.subr.mxu0 0.0
      %1923 = vmatpush1.msra.mxu0 %v1875
      %1924 = vmatprep.subr.mxu0 0.0
      %1925 = vmatpush1.msra.mxu0 %v1877
      %1926 = vmatprep.subr.mxu0 0.0
      %1927 = vmatpush1.msra.mxu0 %v1879
      %1928 = vmatprep.subr.mxu0 0.0
      %1929 = vmatpush1.msra.mxu0 %v1881
      %1930 = vmatprep.subr.mxu0 0.0
      %1931 = vmatpush1.msra.mxu0 %v1883
      %1932 = vmatprep.subr.mxu0 0.0
      %1933 = vmatpush1.msra.mxu0 0.0
      %1934 = vmatprep.subr.mxu0 0.0
      %1935 = vmatpush1.msra.mxu0 0.0
      %1936 = vmatprep.subr.mxu0 0.0
      %1937 = vmatpush1.msra.mxu0 0.0
      %1938 = vmatprep.subr.mxu0 0.0
      %1939 = vmatpush1.msra.mxu0 0.0
      %1940 = vmatprep.subr.mxu0 0.0
      %1941 = vmatpush1.msra.mxu0 0.0
      %1942 = vmatprep.subr.mxu0 0.0
      %1943 = vmatpush1.msra.mxu0 0.0
      %1944 = vmatprep.subr.mxu0 0.0
      %1945 = vmatpush1.msra.mxu0 0.0
      %1946 = vmatprep.subr.mxu0 0.0
      %1947 = vmatpush1.msra.mxu0 0.0
      %1948 = vmatprep.subr.mxu0 0.0
      %1949 = vmatpush1.msra.mxu0 0.0
      %1950 = vmatprep.subr.mxu0 0.0
      %1951 = vmatpush1.msra.mxu0 0.0
      %1952 = vmatprep.subr.mxu0 0.0
      %1953 = vmatpush1.msra.mxu0 0.0
      %1954 = vmatprep.subr.mxu0 0.0
      %1955 = vmatpush1.msra.mxu0 0.0
      %1956 = vmatprep.subr.mxu0 0.0
      %1957 = vmatpush1.msra.mxu0 0.0
      %1958 = vmatprep.subr.mxu0 0.0
      %1959 = vmatpush1.msra.mxu0 0.0
      %1960 = vmatprep.subr.mxu0 0.0
      %1961 = vmatpush1.msra.mxu0 0.0
      %1962 = vmatprep.subr.mxu0 0.0
      %1963 = vmatpush1.msra.mxu0 0.0
      %1964 = vmatprep.subr.mxu0 0.0
      %1965 = vmatpush1.msra.mxu0 0.0
      %1966 = vmatprep.subr.mxu0 0.0
      %1967 = vmatpush1.msra.mxu0 0.0
      %1968 = vmatprep.subr.mxu0 0.0
      %1969 = vmatpush1.msra.mxu0 0.0
      %1970 = vmatprep.subr.mxu0 0.0
      %1971 = vmatpush1.msra.mxu0 0.0
      %1972 = vmatprep.subr.mxu0 0.0
      %1973 = vmatpush1.msra.mxu0 0.0
      %1974 = vmatprep.subr.mxu0 0.0
      %1975 = vmatpush1.msra.mxu0 0.0
      %1976 = vmatprep.subr.mxu0 0.0
      %1977 = vmatpush1.msra.mxu0 0.0
      %1978 = vmatprep.subr.mxu0 0.0
      %1979 = vmatpush1.msra.mxu0 0.0
      %1980 = vmatprep.mubr.f32.mxu0 0.0
      %1981 = vmatmul.mubr.f32.gmra.mrb[0].mxu0 %v1893
      %v1982 = vpop.f32.mrb[0].mxu0
      %v1983 = vadd.f32 0.0, %v1982
      %v1984 = vpop.f32.mrb[0].mxu0
      %1985 = vmatprep.mubr.f32.mxu0 0.0
      %1986 = vmatmul.mubr.f32.gmra.mrb[0].mxu0 %v1896
      %v1987 = vpop.f32.mrb[0].mxu0
      %v1988 = vadd.f32 0.0, %v1987
      %v1989 = vpop.f32.mrb[0].mxu0
      %1990 = vmatprep.mubr.f32.mxu0 0.0
      %1991 = vmatmul.mubr.f32.gmra.mrb[0].mxu0 %v1899
      %v1992 = vpop.f32.mrb[0].mxu0
      %v1993 = vadd.f32 0.0, %v1992
      %v1994 = vpop.f32.mrb[0].mxu0
      %1995 = vmatprep.mubr.f32.mxu0 0.0
      %1996 = vmatmul.mubr.f32.gmra.mrb[0].mxu0 %v1902
      %v1997 = vpop.f32.mrb[0].mxu0
      %v1998 = vadd.f32 0.0, %v1997
      %v1999 = vpop.f32.mrb[0].mxu0
      %2000 = vmatprep.mubr.f32.mxu0 0.0
      %2001 = vmatmul.mubr.f32.gmra.mrb[0].mxu0 %v1905
      %v2002 = vpop.f32.mrb[0].mxu0
      %v2003 = vadd.f32 0.0, %v2002
      %v2004 = vpop.f32.mrb[0].mxu0
      %2005 = vmatprep.mubr.f32.mxu0 0.0
      %2006 = vmatmul.mubr.f32.gmra.mrb[0].mxu0 %v1908
      %v2007 = vpop.f32.mrb[0].mxu0
      %v2008 = vadd.f32 0.0, %v2007
      %v2009 = vpop.f32.mrb[0].mxu0
      %2010 = vmatprep.mubr.f32.mxu0 0.0
      %2011 = vmatmul.mubr.f32.gmra.mrb[0].mxu0 %v1911
      %v2012 = vpop.f32.mrb[0].mxu0
      %v2013 = vadd.f32 0.0, %v2012
      %v2014 = vpop.f32.mrb[0].mxu0
      %2015 = vmatprep.mubr.f32.mxu0 0.0
      %2016 = vmatmul.mubr.f32.gmra.mrb[0].mxu0 %v1914
      %v2017 = vpop.f32.mrb[0].mxu0
      %v2018 = vadd.f32 0.0, %v2017
      %v2019 = vpop.f32.mrb[0].mxu0
      %2020 = vdwg.mxu0
      %s2021 = scalar_lea.vmem %s1, 192
      %v2022 = vld [vmem:[%s2021] sm:$0xff]
      %v2023 = vld [vmem:[%s2021 + $0x8] sm:$0xff]
      %v2024 = vld [vmem:[%s2021 + $0x10] sm:$0xff]
      %v2025 = vld [vmem:[%s2021 + $0x18] sm:$0xff]
      %v2026 = vld [vmem:[%s2021 + $0x20] sm:$0xff]
      %v2027 = vld [vmem:[%s2021 + $0x28] sm:$0xff]
      %v2028 = vld [vmem:[%s2021 + $0x30] sm:$0xff]
      %v2029 = vld [vmem:[%s2021 + $0x38] sm:$0xff]
      %2030 = vrot.lane.b32.xlu0 %v755, 104
      %v2031 = vpop.permute.xlu0 %2030
      %2032 = vrot.lane.b32.xlu0 %v756, 104
      %v2033 = vpop.permute.xlu0 %2032
      %2034 = vrot.lane.b32.xlu0 %v757, 104
      %v2035 = vpop.permute.xlu0 %2034
      %2036 = vrot.lane.b32.xlu0 %v758, 104
      %v2037 = vpop.permute.xlu0 %2036
      %2038 = vrot.lane.b32.xlu0 %v759, 104
      %v2039 = vpop.permute.xlu0 %2038
      %2040 = vrot.lane.b32.xlu0 %v760, 104
      %v2041 = vpop.permute.xlu0 %2040
      %2042 = vrot.lane.b32.xlu0 %v761, 104
      %v2043 = vpop.permute.xlu0 %2042
      %2044 = vrot.lane.b32.xlu0 %v762, 104
      %v2045 = vpop.permute.xlu0 %2044
      %2046 = vrot.lane.b32.xlu0 %v717, 72
      %v2047 = vpop.permute.xlu0 %2046
      %2048 = vrot.lane.b32.xlu0 %v722, 72
      %v2049 = vpop.permute.xlu0 %2048
      %2050 = vrot.lane.b32.xlu0 %v727, 72
      %v2051 = vpop.permute.xlu0 %2050
      %2052 = vrot.lane.b32.xlu0 %v732, 72
      %v2053 = vpop.permute.xlu0 %2052
      %2054 = vrot.lane.b32.xlu0 %v737, 72
      %v2055 = vpop.permute.xlu0 %2054
      %2056 = vrot.lane.b32.xlu0 %v742, 72
      %v2057 = vpop.permute.xlu0 %2056
      %2058 = vrot.lane.b32.xlu0 %v747, 72
      %v2059 = vpop.permute.xlu0 %2058
      %2060 = vrot.lane.b32.xlu0 %v752, 72
      %v2061 = vpop.permute.xlu0 %2060
      %v2062 = vsel %vm795, %v2031, 0
      %v2064 = vsel %vm795, %v2033, 0
      %v2066 = vsel %vm795, %v2035, 0
      %v2068 = vsel %vm795, %v2037, 0
      %v2070 = vsel %vm795, %v2039, 0
      %v2072 = vsel %vm795, %v2041, 0
      %v2074 = vsel %vm795, %v2043, 0
      %v2076 = vsel %vm795, %v2045, 0
      %v2078 = vsel %vm795, %v2047, 0
      %v2080 = vsel %vm795, %v2049, 0
      %v2082 = vsel %vm795, %v2051, 0
      %v2084 = vsel %vm795, %v2053, 0
      %v2086 = vsel %vm795, %v2055, 0
      %v2088 = vsel %vm795, %v2057, 0
      %v2090 = vsel %vm795, %v2059, 0
      %v2092 = vsel %vm795, %v2061, 0
      %2094 = vmatprep.subr.mxu0 0.0
      %2095 = vmatpush1.xpose.msra.mxu0 %v2078
      %2096 = vmatprep.subr.mxu0 0.0
      %2097 = vmatpush1.xpose.msra.mxu0 %v2080
      %2098 = vmatprep.subr.mxu0 0.0
      %2099 = vmatpush1.xpose.msra.mxu0 %v2082
      %2100 = vmatprep.subr.mxu0 0.0
      %2101 = vmatpush1.xpose.msra.mxu0 %v2084
      %2102 = vmatprep.subr.mxu0 0.0
      %2103 = vmatpush1.xpose.msra.mxu0 %v2086
      %2104 = vmatprep.subr.mxu0 0.0
      %2105 = vmatpush1.xpose.msra.mxu0 %v2088
      %2106 = vmatprep.subr.mxu0 0.0
      %2107 = vmatpush1.xpose.msra.mxu0 %v2090
      %2108 = vmatprep.subr.mxu0 0.0
      %2109 = vmatpush1.xpose.msra.mxu0 %v2092
      %2110 = vmatprep.subr.mxu0 0.0
      %2111 = vmatpush1.xpose.msra.mxu0 0.0
      %2112 = vmatprep.subr.mxu0 0.0
      %2113 = vmatpush1.xpose.msra.mxu0 0.0
      %2114 = vmatprep.subr.mxu0 0.0
      %2115 = vmatpush1.xpose.msra.mxu0 0.0
      %2116 = vmatprep.subr.mxu0 0.0
      %2117 = vmatpush1.xpose.msra.mxu0 0.0
      %2118 = vmatprep.subr.mxu0 0.0
      %2119 = vmatpush1.xpose.msra.mxu0 0.0
      %2120 = vmatprep.subr.mxu0 0.0
      %2121 = vmatpush1.xpose.msra.mxu0 0.0
      %2122 = vmatprep.subr.mxu0 0.0
      %2123 = vmatpush1.xpose.msra.mxu0 0.0
      %2124 = vmatprep.subr.mxu0 0.0
      %2125 = vmatpush1.xpose.msra.mxu0 0.0
      %2126 = vmatprep.subr.mxu0 0.0
      %2127 = vmatpush1.xpose.msra.mxu0 0.0
      %2128 = vmatprep.subr.mxu0 0.0
      %2129 = vmatpush1.xpose.msra.mxu0 0.0
      %2130 = vmatprep.subr.mxu0 0.0
      %2131 = vmatpush1.xpose.msra.mxu0 0.0
      %2132 = vmatprep.subr.mxu0 0.0
      %2133 = vmatpush1.xpose.msra.mxu0 0.0
      %2134 = vmatprep.subr.mxu0 0.0
      %2135 = vmatpush1.xpose.msra.mxu0 0.0
      %2136 = vmatprep.subr.mxu0 0.0
      %2137 = vmatpush1.xpose.msra.mxu0 0.0
      %2138 = vmatprep.subr.mxu0 0.0
      %2139 = vmatpush1.xpose.msra.mxu0 0.0
      %2140 = vmatprep.subr.mxu0 0.0
      %2141 = vmatpush1.xpose.msra.mxu0 0.0
      %2142 = vmatprep.subr.mxu0 0.0
      %2143 = vmatpush1.xpose.msra.mxu0 0.0
      %2144 = vmatprep.subr.mxu0 0.0
      %2145 = vmatpush1.xpose.msra.mxu0 0.0
      %2146 = vmatprep.subr.mxu0 0.0
      %2147 = vmatpush1.xpose.msra.mxu0 0.0
      %2148 = vmatprep.subr.mxu0 0.0
      %2149 = vmatpush1.xpose.msra.mxu0 0.0
      %2150 = vmatprep.subr.mxu0 0.0
      %2151 = vmatpush1.xpose.msra.mxu0 0.0
      %2152 = vmatprep.subr.mxu0 0.0
      %2153 = vmatpush1.xpose.msra.mxu0 0.0
      %2154 = vmatprep.subr.mxu0 0.0
      %2155 = vmatpush1.xpose.msra.mxu0 0.0
      %2156 = vmatprep.subr.mxu0 0.0
      %2157 = vmatpush1.xpose.msra.mxu0 0.0
      %2158 = vmatprep.mubr.f32.mxu0 0.0
      %2159 = vmatmul.mubr.f32.gmra.mrb[0].mxu0 %v2062
      %v2160 = vpop.f32.mrb[0].mxu0
      %v2161 = vadd.f32 %v2022, %v2160
      %v2162 = vpop.f32.mrb[0].mxu0
      %2163 = vmatprep.mubr.f32.mxu0 0.0
      %2164 = vmatmul.mubr.f32.gmra.mrb[0].mxu0 %v2064
      %v2165 = vpop.f32.mrb[0].mxu0
      %v2166 = vadd.f32 %v2023, %v2165
      %v2167 = vpop.f32.mrb[0].mxu0
      %2168 = vmatprep.mubr.f32.mxu0 0.0
      %2169 = vmatmul.mubr.f32.gmra.mrb[0].mxu0 %v2066
      %v2170 = vpop.f32.mrb[0].mxu0
      %v2171 = vadd.f32 %v2024, %v2170
      %v2172 = vpop.f32.mrb[0].mxu0
      %2173 = vmatprep.mubr.f32.mxu0 0.0
      %2174 = vmatmul.mubr.f32.gmra.mrb[0].mxu0 %v2068
      %v2175 = vpop.f32.mrb[0].mxu0
      %v2176 = vadd.f32 %v2025, %v2175
      %v2177 = vpop.f32.mrb[0].mxu0
      %2178 = vmatprep.mubr.f32.mxu0 0.0
      %2179 = vmatmul.mubr.f32.gmra.mrb[0].mxu0 %v2070
      %v2180 = vpop.f32.mrb[0].mxu0
      %v2181 = vadd.f32 %v2026, %v2180
      %v2182 = vpop.f32.mrb[0].mxu0
      %2183 = vmatprep.mubr.f32.mxu0 0.0
      %2184 = vmatmul.mubr.f32.gmra.mrb[0].mxu0 %v2072
      %v2185 = vpop.f32.mrb[0].mxu0
      %v2186 = vadd.f32 %v2027, %v2185
      %v2187 = vpop.f32.mrb[0].mxu0
      %2188 = vmatprep.mubr.f32.mxu0 0.0
      %2189 = vmatmul.mubr.f32.gmra.mrb[0].mxu0 %v2074
      %v2190 = vpop.f32.mrb[0].mxu0
      %v2191 = vadd.f32 %v2028, %v2190
      %v2192 = vpop.f32.mrb[0].mxu0
      %2193 = vmatprep.mubr.f32.mxu0 0.0
      %2194 = vmatmul.mubr.f32.gmra.mrb[0].mxu0 %v2076
      %v2195 = vpop.f32.mrb[0].mxu0
      %v2196 = vadd.f32 %v2029, %v2195
      %v2197 = vpop.f32.mrb[0].mxu0
      %2198 = vdwg.mxu0
      %v2199 = vsel %vm941, %v2161, -inf
      %2200 = vmax.xlane.f32.xlu0 %v2199
      %v2201 = vpop.xlane.xlu0 %2200
      %v2202 = vsel %vm941, %v2166, -inf
      %2203 = vmax.xlane.f32.xlu0 %v2202
      %v2204 = vpop.xlane.xlu0 %2203
      %v2205 = vsel %vm941, %v2171, -inf
      %2206 = vmax.xlane.f32.xlu0 %v2205
      %v2207 = vpop.xlane.xlu0 %2206
      %v2208 = vsel %vm941, %v2176, -inf
      %2209 = vmax.xlane.f32.xlu0 %v2208
      %v2210 = vpop.xlane.xlu0 %2209
      %v2211 = vsel %vm941, %v2181, -inf
      %2212 = vmax.xlane.f32.xlu0 %v2211
      %v2213 = vpop.xlane.xlu0 %2212
      %v2214 = vsel %vm941, %v2186, -inf
      %2215 = vmax.xlane.f32.xlu0 %v2214
      %v2216 = vpop.xlane.xlu0 %2215
      %v2217 = vsel %vm941, %v2191, -inf
      %2218 = vmax.xlane.f32.xlu0 %v2217
      %v2219 = vpop.xlane.xlu0 %2218
      %v2220 = vsel %vm941, %v2196, -inf
      %2221 = vmax.xlane.f32.xlu0 %v2220
      %v2222 = vpop.xlane.xlu0 %2221
      %v2223 = vsub.f32 %v2161, %v2201
      %v2224 = vsub.f32 %v2166, %v2204
      %v2225 = vsub.f32 %v2171, %v2207
      %v2226 = vsub.f32 %v2176, %v2210
      %v2227 = vsub.f32 %v2181, %v2213
      %v2228 = vsub.f32 %v2186, %v2216
      %v2229 = vsub.f32 %v2191, %v2219
      %v2230 = vsub.f32 %v2196, %v2222
      %v2231 = vmul.f32 %v2223, 1.442695
      %v2232 = vpow.pop %v2231
      %v2233 = vmul.f32 %v2224, 1.442695
      %v2234 = vpow.pop %v2233
      %v2235 = vmul.f32 %v2225, 1.442695
      %v2236 = vpow.pop %v2235
      %v2237 = vmul.f32 %v2226, 1.442695
      %v2238 = vpow.pop %v2237
      %v2239 = vmul.f32 %v2227, 1.442695
      %v2240 = vpow.pop %v2239
      %v2241 = vmul.f32 %v2228, 1.442695
      %v2242 = vpow.pop %v2241
      %v2243 = vmul.f32 %v2229, 1.442695
      %v2244 = vpow.pop %v2243
      %v2245 = vmul.f32 %v2230, 1.442695
      %v2246 = vpow.pop %v2245
      %v2247 = vsel %vm941, %v2232, 0.0
      %2248 = vadd.xlane.f32.xlu0 %v2247
      %v2249 = vpop.xlane.xlu0 %2248
      %v2250 = vsel %vm941, %v2234, 0.0
      %2251 = vadd.xlane.f32.xlu0 %v2250
      %v2252 = vpop.xlane.xlu0 %2251
      %v2253 = vsel %vm941, %v2236, 0.0
      %2254 = vadd.xlane.f32.xlu0 %v2253
      %v2255 = vpop.xlane.xlu0 %2254
      %v2256 = vsel %vm941, %v2238, 0.0
      %2257 = vadd.xlane.f32.xlu0 %v2256
      %v2258 = vpop.xlane.xlu0 %2257
      %v2259 = vsel %vm941, %v2240, 0.0
      %2260 = vadd.xlane.f32.xlu0 %v2259
      %v2261 = vpop.xlane.xlu0 %2260
      %v2262 = vsel %vm941, %v2242, 0.0
      %2263 = vadd.xlane.f32.xlu0 %v2262
      %v2264 = vpop.xlane.xlu0 %2263
      %v2265 = vsel %vm941, %v2244, 0.0
      %2266 = vadd.xlane.f32.xlu0 %v2265
      %v2267 = vpop.xlane.xlu0 %2266
      %v2268 = vsel %vm941, %v2246, 0.0
      %2269 = vadd.xlane.f32.xlu0 %v2268
      %v2270 = vpop.xlane.xlu0 %2269
      %v2271 = vrcp.pop %v2249
      %v2272 = vrcp.pop %v2252
      %v2273 = vrcp.pop %v2255
      %v2274 = vrcp.pop %v2258
      %v2275 = vrcp.pop %v2261
      %v2276 = vrcp.pop %v2264
      %v2277 = vrcp.pop %v2267
      %v2278 = vrcp.pop %v2270
      %v2279 = vmul.f32 %v2232, %v2271
      %v2280 = vmul.f32 %v2234, %v2272
      %v2281 = vmul.f32 %v2236, %v2273
      %v2282 = vmul.f32 %v2238, %v2274
      %v2283 = vmul.f32 %v2240, %v2275
      %v2284 = vmul.f32 %v2242, %v2276
      %v2285 = vmul.f32 %v2244, %v2277
      %v2286 = vmul.f32 %v2246, %v2278
      %2287 = vrot.lane.b32.xlu0 %v717, 40
      %v2288 = vpop.permute.xlu0 %2287
      %2289 = vrot.lane.b32.xlu0 %v722, 40
      %v2290 = vpop.permute.xlu0 %2289
      %2291 = vrot.lane.b32.xlu0 %v727, 40
      %v2292 = vpop.permute.xlu0 %2291
      %2293 = vrot.lane.b32.xlu0 %v732, 40
      %v2294 = vpop.permute.xlu0 %2293
      %2295 = vrot.lane.b32.xlu0 %v737, 40
      %v2296 = vpop.permute.xlu0 %2295
      %2297 = vrot.lane.b32.xlu0 %v742, 40
      %v2298 = vpop.permute.xlu0 %2297
      %2299 = vrot.lane.b32.xlu0 %v747, 40
      %v2300 = vpop.permute.xlu0 %2299
      %2301 = vrot.lane.b32.xlu0 %v752, 40
      %v2302 = vpop.permute.xlu0 %2301
      %v2312 = vsel %vm941, %v2279, 0
      %v2315 = vsel %vm941, %v2280, 0
      %v2318 = vsel %vm941, %v2281, 0
      %v2321 = vsel %vm941, %v2282, 0
      %v2324 = vsel %vm941, %v2283, 0
      %v2327 = vsel %vm941, %v2284, 0
      %v2330 = vsel %vm941, %v2285, 0
      %v2333 = vsel %vm941, %v2286, 0
      %2335 = vmatprep.subr.mxu0 0.0
      %2336 = vmatpush1.msra.mxu0 %v2288
      %2337 = vmatprep.subr.mxu0 0.0
      %2338 = vmatpush1.msra.mxu0 %v2290
      %2339 = vmatprep.subr.mxu0 0.0
      %2340 = vmatpush1.msra.mxu0 %v2292
      %2341 = vmatprep.subr.mxu0 0.0
      %2342 = vmatpush1.msra.mxu0 %v2294
      %2343 = vmatprep.subr.mxu0 0.0
      %2344 = vmatpush1.msra.mxu0 %v2296
      %2345 = vmatprep.subr.mxu0 0.0
      %2346 = vmatpush1.msra.mxu0 %v2298
      %2347 = vmatprep.subr.mxu0 0.0
      %2348 = vmatpush1.msra.mxu0 %v2300
      %2349 = vmatprep.subr.mxu0 0.0
      %2350 = vmatpush1.msra.mxu0 %v2302
      %2351 = vmatprep.subr.mxu0 0.0
      %2352 = vmatpush1.msra.mxu0 0.0
      %2353 = vmatprep.subr.mxu0 0.0
      %2354 = vmatpush1.msra.mxu0 0.0
      %2355 = vmatprep.subr.mxu0 0.0
      %2356 = vmatpush1.msra.mxu0 0.0
      %2357 = vmatprep.subr.mxu0 0.0
      %2358 = vmatpush1.msra.mxu0 0.0
      %2359 = vmatprep.subr.mxu0 0.0
      %2360 = vmatpush1.msra.mxu0 0.0
      %2361 = vmatprep.subr.mxu0 0.0
      %2362 = vmatpush1.msra.mxu0 0.0
      %2363 = vmatprep.subr.mxu0 0.0
      %2364 = vmatpush1.msra.mxu0 0.0
      %2365 = vmatprep.subr.mxu0 0.0
      %2366 = vmatpush1.msra.mxu0 0.0
      %2367 = vmatprep.subr.mxu0 0.0
      %2368 = vmatpush1.msra.mxu0 0.0
      %2369 = vmatprep.subr.mxu0 0.0
      %2370 = vmatpush1.msra.mxu0 0.0
      %2371 = vmatprep.subr.mxu0 0.0
      %2372 = vmatpush1.msra.mxu0 0.0
      %2373 = vmatprep.subr.mxu0 0.0
      %2374 = vmatpush1.msra.mxu0 0.0
      %2375 = vmatprep.subr.mxu0 0.0
      %2376 = vmatpush1.msra.mxu0 0.0
      %2377 = vmatprep.subr.mxu0 0.0
      %2378 = vmatpush1.msra.mxu0 0.0
      %2379 = vmatprep.subr.mxu0 0.0
      %2380 = vmatpush1.msra.mxu0 0.0
      %2381 = vmatprep.subr.mxu0 0.0
      %2382 = vmatpush1.msra.mxu0 0.0
      %2383 = vmatprep.subr.mxu0 0.0
      %2384 = vmatpush1.msra.mxu0 0.0
      %2385 = vmatprep.subr.mxu0 0.0
      %2386 = vmatpush1.msra.mxu0 0.0
      %2387 = vmatprep.subr.mxu0 0.0
      %2388 = vmatpush1.msra.mxu0 0.0
      %2389 = vmatprep.subr.mxu0 0.0
      %2390 = vmatpush1.msra.mxu0 0.0
      %2391 = vmatprep.subr.mxu0 0.0
      %2392 = vmatpush1.msra.mxu0 0.0
      %2393 = vmatprep.subr.mxu0 0.0
      %2394 = vmatpush1.msra.mxu0 0.0
      %2395 = vmatprep.subr.mxu0 0.0
      %2396 = vmatpush1.msra.mxu0 0.0
      %2397 = vmatprep.subr.mxu0 0.0
      %2398 = vmatpush1.msra.mxu0 0.0
      %2399 = vmatprep.mubr.f32.mxu0 0.0
      %2400 = vmatmul.mubr.f32.gmra.mrb[0].mxu0 %v2312
      %v2401 = vpop.f32.mrb[0].mxu0
      %v2402 = vadd.f32 0.0, %v2401
      %v2403 = vpop.f32.mrb[0].mxu0
      %2404 = vmatprep.mubr.f32.mxu0 0.0
      %2405 = vmatmul.mubr.f32.gmra.mrb[0].mxu0 %v2315
      %v2406 = vpop.f32.mrb[0].mxu0
      %v2407 = vadd.f32 0.0, %v2406
      %v2408 = vpop.f32.mrb[0].mxu0
      %2409 = vmatprep.mubr.f32.mxu0 0.0
      %2410 = vmatmul.mubr.f32.gmra.mrb[0].mxu0 %v2318
      %v2411 = vpop.f32.mrb[0].mxu0
      %v2412 = vadd.f32 0.0, %v2411
      %v2413 = vpop.f32.mrb[0].mxu0
      %2414 = vmatprep.mubr.f32.mxu0 0.0
      %2415 = vmatmul.mubr.f32.gmra.mrb[0].mxu0 %v2321
      %v2416 = vpop.f32.mrb[0].mxu0
      %v2417 = vadd.f32 0.0, %v2416
      %v2418 = vpop.f32.mrb[0].mxu0
      %2419 = vmatprep.mubr.f32.mxu0 0.0
      %2420 = vmatmul.mubr.f32.gmra.mrb[0].mxu0 %v2324
      %v2421 = vpop.f32.mrb[0].mxu0
      %v2422 = vadd.f32 0.0, %v2421
      %v2423 = vpop.f32.mrb[0].mxu0
      %2424 = vmatprep.mubr.f32.mxu0 0.0
      %2425 = vmatmul.mubr.f32.gmra.mrb[0].mxu0 %v2327
      %v2426 = vpop.f32.mrb[0].mxu0
      %v2427 = vadd.f32 0.0, %v2426
      %v2428 = vpop.f32.mrb[0].mxu0
      %2429 = vmatprep.mubr.f32.mxu0 0.0
      %2430 = vmatmul.mubr.f32.gmra.mrb[0].mxu0 %v2330
      %v2431 = vpop.f32.mrb[0].mxu0
      %v2432 = vadd.f32 0.0, %v2431
      %v2433 = vpop.f32.mrb[0].mxu0
      %2434 = vmatprep.mubr.f32.mxu0 0.0
      %2435 = vmatmul.mubr.f32.gmra.mrb[0].mxu0 %v2333
      %v2436 = vpop.f32.mrb[0].mxu0
      %v2437 = vadd.f32 0.0, %v2436
      %v2438 = vpop.f32.mrb[0].mxu0
      %2439 = vdwg.mxu0
      %2448 = vrot.lane.b32.xlu0 %v1564, 8
      %v2449 = vpop.permute.xlu0 %2448
      %2450 = vrot.lane.b32.xlu0 %v1569, 8
      %v2451 = vpop.permute.xlu0 %2450
      %2452 = vrot.lane.b32.xlu0 %v1574, 8
      %v2453 = vpop.permute.xlu0 %2452
      %2454 = vrot.lane.b32.xlu0 %v1579, 8
      %v2455 = vpop.permute.xlu0 %2454
      %2456 = vrot.lane.b32.xlu0 %v1584, 8
      %v2457 = vpop.permute.xlu0 %2456
      %2458 = vrot.lane.b32.xlu0 %v1589, 8
      %v2459 = vpop.permute.xlu0 %2458
      %2460 = vrot.lane.b32.xlu0 %v1594, 8
      %v2461 = vpop.permute.xlu0 %2460
      %2462 = vrot.lane.b32.xlu0 %v1599, 8
      %v2463 = vpop.permute.xlu0 %2462
      %2480 = vrot.lane.b32.xlu0 %v1983, 16
      %v2481 = vpop.permute.xlu0 %2480
      %2482 = vrot.lane.b32.xlu0 %v1988, 16
      %v2483 = vpop.permute.xlu0 %2482
      %2484 = vrot.lane.b32.xlu0 %v1993, 16
      %v2485 = vpop.permute.xlu0 %2484
      %2486 = vrot.lane.b32.xlu0 %v1998, 16
      %v2487 = vpop.permute.xlu0 %2486
      %2488 = vrot.lane.b32.xlu0 %v2003, 16
      %v2489 = vpop.permute.xlu0 %2488
      %2490 = vrot.lane.b32.xlu0 %v2008, 16
      %v2491 = vpop.permute.xlu0 %2490
      %2492 = vrot.lane.b32.xlu0 %v2013, 16
      %v2493 = vpop.permute.xlu0 %2492
      %2494 = vrot.lane.b32.xlu0 %v2018, 16
      %v2495 = vpop.permute.xlu0 %2494
      %2512 = vrot.lane.b32.xlu0 %v2402, 24
      %v2513 = vpop.permute.xlu0 %2512
      %2514 = vrot.lane.b32.xlu0 %v2407, 24
      %v2515 = vpop.permute.xlu0 %2514
      %2516 = vrot.lane.b32.xlu0 %v2412, 24
      %v2517 = vpop.permute.xlu0 %2516
      %2518 = vrot.lane.b32.xlu0 %v2417, 24
      %v2519 = vpop.permute.xlu0 %2518
      %2520 = vrot.lane.b32.xlu0 %v2422, 24
      %v2521 = vpop.permute.xlu0 %2520
      %2522 = vrot.lane.b32.xlu0 %v2427, 24
      %v2523 = vpop.permute.xlu0 %2522
      %2524 = vrot.lane.b32.xlu0 %v2432, 24
      %v2525 = vpop.permute.xlu0 %2524
      %2526 = vrot.lane.b32.xlu0 %v2437, 24
      %v2527 = vpop.permute.xlu0 %2526
      %v2536 = vsel %vm795, %v1145, %v2449
      %v2537 = vsel %vm795, %v1150, %v2451
      %v2538 = vsel %vm795, %v1155, %v2453
      %v2539 = vsel %vm795, %v1160, %v2455
      %v2540 = vsel %vm795, %v1165, %v2457
      %v2541 = vsel %vm795, %v1170, %v2459
      %v2542 = vsel %vm795, %v1175, %v2461
      %v2543 = vsel %vm795, %v1180, %v2463
      %vm2544 = vcmask 130048
      %v2545 = vsel %vm2544, %v2536, %v2481
      %v2546 = vsel %vm2544, %v2537, %v2483
      %v2547 = vsel %vm2544, %v2538, %v2485
      %v2548 = vsel %vm2544, %v2539, %v2487
      %v2549 = vsel %vm2544, %v2540, %v2489
      %v2550 = vsel %vm2544, %v2541, %v2491
      %v2551 = vsel %vm2544, %v2542, %v2493
      %v2552 = vsel %vm2544, %v2543, %v2495
      %vm2553 = vcmask 195584
      %v2554 = vsel %vm2553, %v2545, %v2513
      %v2555 = vsel %vm2553, %v2546, %v2515
      %v2556 = vsel %vm2553, %v2547, %v2517
      %v2557 = vsel %vm2553, %v2548, %v2519
      %v2558 = vsel %vm2553, %v2549, %v2521
      %v2559 = vsel %vm2553, %v2550, %v2523
      %v2560 = vsel %vm2553, %v2551, %v2525
      %v2561 = vsel %vm2553, %v2552, %v2527
      %v2562 = vld [vmem:[%s6] sm:$0xff]
      %v2563 = vld [vmem:[%s6 + $0x8] sm:$0xff]
      %v2564 = vld [vmem:[%s6 + $0x10] sm:$0xff]
      %v2565 = vld [vmem:[%s6 + $0x18] sm:$0xff]
      %v2566 = vld [vmem:[%s7] sm:$0x1]
      %v2568 = vlaneseq
      %v2569 = vshrl.u32 %v2568, 7
      %v2570 = vsub.s32 0, %v2569
      %v2571 = vrot.slane %v2566, %v2570
      %v2574 = vsel %vm481, %v2554, 0
      %v2577 = vsel %vm481, %v2555, 0
      %v2580 = vsel %vm481, %v2556, 0
      %v2583 = vsel %vm481, %v2557, 0
      %v2586 = vsel %vm481, %v2558, 0
      %v2589 = vsel %vm481, %v2559, 0
      %v2592 = vsel %vm481, %v2560, 0
      %v2595 = vsel %vm481, %v2561, 0
      %2597 = vmatprep.subr.mxu0 0.0
      %2598 = vmatpush1.msra.mxu0 %v2562
      %2599 = vmatprep.subr.mxu0 0.0
      %2600 = vmatpush1.msra.mxu0 %v2563
      %2601 = vmatprep.subr.mxu0 0.0
      %2602 = vmatpush1.msra.mxu0 %v2564
      %2603 = vmatprep.subr.mxu0 0.0
      %2604 = vmatpush1.msra.mxu0 %v2565
      %2605 = vmatprep.subr.mxu0 0.0
      %2606 = vmatpush1.msra.mxu0 0.0
      %2607 = vmatprep.subr.mxu0 0.0
      %2608 = vmatpush1.msra.mxu0 0.0
      %2609 = vmatprep.subr.mxu0 0.0
      %2610 = vmatpush1.msra.mxu0 0.0
      %2611 = vmatprep.subr.mxu0 0.0
      %2612 = vmatpush1.msra.mxu0 0.0
      %2613 = vmatprep.subr.mxu0 0.0
      %2614 = vmatpush1.msra.mxu0 0.0
      %2615 = vmatprep.subr.mxu0 0.0
      %2616 = vmatpush1.msra.mxu0 0.0
      %2617 = vmatprep.subr.mxu0 0.0
      %2618 = vmatpush1.msra.mxu0 0.0
      %2619 = vmatprep.subr.mxu0 0.0
      %2620 = vmatpush1.msra.mxu0 0.0
      %2621 = vmatprep.subr.mxu0 0.0
      %2622 = vmatpush1.msra.mxu0 0.0
      %2623 = vmatprep.subr.mxu0 0.0
      %2624 = vmatpush1.msra.mxu0 0.0
      %2625 = vmatprep.subr.mxu0 0.0
      %2626 = vmatpush1.msra.mxu0 0.0
      %2627 = vmatprep.subr.mxu0 0.0
      %2628 = vmatpush1.msra.mxu0 0.0
      %2629 = vmatprep.subr.mxu0 0.0
      %2630 = vmatpush1.msra.mxu0 0.0
      %2631 = vmatprep.subr.mxu0 0.0
      %2632 = vmatpush1.msra.mxu0 0.0
      %2633 = vmatprep.subr.mxu0 0.0
      %2634 = vmatpush1.msra.mxu0 0.0
      %2635 = vmatprep.subr.mxu0 0.0
      %2636 = vmatpush1.msra.mxu0 0.0
      %2637 = vmatprep.subr.mxu0 0.0
      %2638 = vmatpush1.msra.mxu0 0.0
      %2639 = vmatprep.subr.mxu0 0.0
      %2640 = vmatpush1.msra.mxu0 0.0
      %2641 = vmatprep.subr.mxu0 0.0
      %2642 = vmatpush1.msra.mxu0 0.0
      %2643 = vmatprep.subr.mxu0 0.0
      %2644 = vmatpush1.msra.mxu0 0.0
      %2645 = vmatprep.subr.mxu0 0.0
      %2646 = vmatpush1.msra.mxu0 0.0
      %2647 = vmatprep.subr.mxu0 0.0
      %2648 = vmatpush1.msra.mxu0 0.0
      %2649 = vmatprep.subr.mxu0 0.0
      %2650 = vmatpush1.msra.mxu0 0.0
      %2651 = vmatprep.subr.mxu0 0.0
      %2652 = vmatpush1.msra.mxu0 0.0
      %2653 = vmatprep.subr.mxu0 0.0
      %2654 = vmatpush1.msra.mxu0 0.0
      %2655 = vmatprep.subr.mxu0 0.0
      %2656 = vmatpush1.msra.mxu0 0.0
      %2657 = vmatprep.subr.mxu0 0.0
      %2658 = vmatpush1.msra.mxu0 0.0
      %2659 = vmatprep.subr.mxu0 0.0
      %2660 = vmatpush1.msra.mxu0 0.0
      %2661 = vmatprep.mubr.f32.mxu0 0.0
      %2662 = vmatmul.mubr.f32.gmra.mrb[0].mxu0 %v2574
      %v2663 = vpop.f32.mrb[0].mxu0
      %v2664 = vadd.f32 %v2571, %v2663
      %v2665 = vpop.f32.mrb[0].mxu0
      %2666 = vmatprep.mubr.f32.mxu0 0.0
      %2667 = vmatmul.mubr.f32.gmra.mrb[0].mxu0 %v2577
      %v2668 = vpop.f32.mrb[0].mxu0
      %v2669 = vadd.f32 %v2571, %v2668
      %v2670 = vpop.f32.mrb[0].mxu0
      %2671 = vmatprep.mubr.f32.mxu0 0.0
      %2672 = vmatmul.mubr.f32.gmra.mrb[0].mxu0 %v2580
      %v2673 = vpop.f32.mrb[0].mxu0
      %v2674 = vadd.f32 %v2571, %v2673
      %v2675 = vpop.f32.mrb[0].mxu0
      %2676 = vmatprep.mubr.f32.mxu0 0.0
      %2677 = vmatmul.mubr.f32.gmra.mrb[0].mxu0 %v2583
      %v2678 = vpop.f32.mrb[0].mxu0
      %v2679 = vadd.f32 %v2571, %v2678
      %v2680 = vpop.f32.mrb[0].mxu0
      %2681 = vmatprep.mubr.f32.mxu0 0.0
      %2682 = vmatmul.mubr.f32.gmra.mrb[0].mxu0 %v2586
      %v2683 = vpop.f32.mrb[0].mxu0
      %v2684 = vadd.f32 %v2571, %v2683
      %v2685 = vpop.f32.mrb[0].mxu0
      %2686 = vmatprep.mubr.f32.mxu0 0.0
      %2687 = vmatmul.mubr.f32.gmra.mrb[0].mxu0 %v2589
      %v2688 = vpop.f32.mrb[0].mxu0
      %v2689 = vadd.f32 %v2571, %v2688
      %v2690 = vpop.f32.mrb[0].mxu0
      %2691 = vmatprep.mubr.f32.mxu0 0.0
      %2692 = vmatmul.mubr.f32.gmra.mrb[0].mxu0 %v2592
      %v2693 = vpop.f32.mrb[0].mxu0
      %v2694 = vadd.f32 %v2571, %v2693
      %v2695 = vpop.f32.mrb[0].mxu0
      %2696 = vmatprep.mubr.f32.mxu0 0.0
      %2697 = vmatmul.mubr.f32.gmra.mrb[0].mxu0 %v2595
      %v2698 = vpop.f32.mrb[0].mxu0
      %v2699 = vadd.f32 %v2571, %v2698
      %v2700 = vpop.f32.mrb[0].mxu0
      %2701 = vdwg.mxu0
      %v2702 = vadd.f32 %v471, %v2664
      %v2703 = vadd.f32 %v472, %v2669
      %v2704 = vadd.f32 %v473, %v2674
      %v2705 = vadd.f32 %v474, %v2679
      %v2706 = vadd.f32 %v475, %v2684
      %v2707 = vadd.f32 %v476, %v2689
      %v2708 = vadd.f32 %v477, %v2694
      %v2709 = vadd.f32 %v478, %v2699
      %v2710 = vld [vmem:[%s8] sm:$0x1]
      %v2711 = vld [vmem:[%s9] sm:$0x1]
      %v2712 = vsel %vm481, %v2702, 0.0
      %2713 = vadd.xlane.f32.xlu0 %v2712
      %v2714 = vpop.xlane.xlu0 %2713
      %v2715 = vsel %vm481, %v2703, 0.0
      %2716 = vadd.xlane.f32.xlu0 %v2715
      %v2717 = vpop.xlane.xlu0 %2716
      %v2718 = vsel %vm481, %v2704, 0.0
      %2719 = vadd.xlane.f32.xlu0 %v2718
      %v2720 = vpop.xlane.xlu0 %2719
      %v2721 = vsel %vm481, %v2705, 0.0
      %2722 = vadd.xlane.f32.xlu0 %v2721
      %v2723 = vpop.xlane.xlu0 %2722
      %v2724 = vsel %vm481, %v2706, 0.0
      %2725 = vadd.xlane.f32.xlu0 %v2724
      %v2726 = vpop.xlane.xlu0 %2725
      %v2727 = vsel %vm481, %v2707, 0.0
      %2728 = vadd.xlane.f32.xlu0 %v2727
      %v2729 = vpop.xlane.xlu0 %2728
      %v2730 = vsel %vm481, %v2708, 0.0
      %2731 = vadd.xlane.f32.xlu0 %v2730
      %v2732 = vpop.xlane.xlu0 %2731
      %v2733 = vsel %vm481, %v2709, 0.0
      %2734 = vadd.xlane.f32.xlu0 %v2733
      %v2735 = vpop.xlane.xlu0 %2734
      %v2736 = vmul.f32 %v2714, %v506
      %v2737 = vmul.f32 %v2717, %v506
      %v2738 = vmul.f32 %v2720, %v506
      %v2739 = vmul.f32 %v2723, %v506
      %v2740 = vmul.f32 %v2726, %v506
      %v2741 = vmul.f32 %v2729, %v506
      %v2742 = vmul.f32 %v2732, %v506
      %v2743 = vmul.f32 %v2735, %v506
      %v2744 = vsub.f32 %v2702, %v2736
      %v2745 = vsub.f32 %v2703, %v2737
      %v2746 = vsub.f32 %v2704, %v2738
      %v2747 = vsub.f32 %v2705, %v2739
      %v2748 = vsub.f32 %v2706, %v2740
      %v2749 = vsub.f32 %v2707, %v2741
      %v2750 = vsub.f32 %v2708, %v2742
      %v2751 = vsub.f32 %v2709, %v2743
      %v2752 = vmul.f32 %v2744, %v2744
      %v2753 = vmul.f32 %v2745, %v2745
      %v2754 = vmul.f32 %v2746, %v2746
      %v2755 = vmul.f32 %v2747, %v2747
      %v2756 = vmul.f32 %v2748, %v2748
      %v2757 = vmul.f32 %v2749, %v2749
      %v2758 = vmul.f32 %v2750, %v2750
      %v2759 = vmul.f32 %v2751, %v2751
      %v2760 = vsel %vm481, %v2752, 0.0
      %2761 = vadd.xlane.f32.xlu0 %v2760
      %v2762 = vpop.xlane.xlu0 %2761
      %v2763 = vsel %vm481, %v2753, 0.0
      %2764 = vadd.xlane.f32.xlu0 %v2763
      %v2765 = vpop.xlane.xlu0 %2764
      %v2766 = vsel %vm481, %v2754, 0.0
      %2767 = vadd.xlane.f32.xlu0 %v2766
      %v2768 = vpop.xlane.xlu0 %2767
      %v2769 = vsel %vm481, %v2755, 0.0
      %2770 = vadd.xlane.f32.xlu0 %v2769
      %v2771 = vpop.xlane.xlu0 %2770
      %v2772 = vsel %vm481, %v2756, 0.0
      %2773 = vadd.xlane.f32.xlu0 %v2772
      %v2774 = vpop.xlane.xlu0 %2773
      %v2775 = vsel %vm481, %v2757, 0.0
      %2776 = vadd.xlane.f32.xlu0 %v2775
      %v2777 = vpop.xlane.xlu0 %2776
      %v2778 = vsel %vm481, %v2758, 0.0
      %2779 = vadd.xlane.f32.xlu0 %v2778
      %v2780 = vpop.xlane.xlu0 %2779
      %v2781 = vsel %vm481, %v2759, 0.0
      %2782 = vadd.xlane.f32.xlu0 %v2781
      %v2783 = vpop.xlane.xlu0 %2782
      %v2784 = vmul.f32 %v2762, %v506
      %v2785 = vmul.f32 %v2765, %v506
      %v2786 = vmul.f32 %v2768, %v506
      %v2787 = vmul.f32 %v2771, %v506
      %v2788 = vmul.f32 %v2774, %v506
      %v2789 = vmul.f32 %v2777, %v506
      %v2790 = vmul.f32 %v2780, %v506
      %v2791 = vmul.f32 %v2783, %v506
      %v2792 = vadd.f32 %v2784, 1e-05
      %v2793 = vadd.f32 %v2785, 1e-05
      %v2794 = vadd.f32 %v2786, 1e-05
      %v2795 = vadd.f32 %v2787, 1e-05
      %v2796 = vadd.f32 %v2788, 1e-05
      %v2797 = vadd.f32 %v2789, 1e-05
      %v2798 = vadd.f32 %v2790, 1e-05
      %v2799 = vadd.f32 %v2791, 1e-05
      %v2800 = vrsqrt.pop %v2792
      %v2801 = vrsqrt.pop %v2793
      %v2802 = vrsqrt.pop %v2794
      %v2803 = vrsqrt.pop %v2795
      %v2804 = vrsqrt.pop %v2796
      %v2805 = vrsqrt.pop %v2797
      %v2806 = vrsqrt.pop %v2798
      %v2807 = vrsqrt.pop %v2799
      %v2808 = vmul.f32 %v2744, %v2800
      %v2809 = vmul.f32 %v2745, %v2801
      %v2810 = vmul.f32 %v2746, %v2802
      %v2811 = vmul.f32 %v2747, %v2803
      %v2812 = vmul.f32 %v2748, %v2804
      %v2813 = vmul.f32 %v2749, %v2805
      %v2814 = vmul.f32 %v2750, %v2806
      %v2815 = vmul.f32 %v2751, %v2807
      %v2817 = vlaneseq
      %v2818 = vshrl.u32 %v2817, 7
      %v2819 = vsub.s32 0, %v2818
      %v2820 = vrot.slane %v2710, %v2819
      %v2822 = vmul.f32 %v2808, %v2820
      %v2823 = vmul.f32 %v2809, %v2820
      %v2824 = vmul.f32 %v2810, %v2820
      %v2825 = vmul.f32 %v2811, %v2820
      %v2826 = vmul.f32 %v2812, %v2820
      %v2827 = vmul.f32 %v2813, %v2820
      %v2828 = vmul.f32 %v2814, %v2820
      %v2829 = vmul.f32 %v2815, %v2820
      %v2831 = vlaneseq
      %v2832 = vshrl.u32 %v2831, 7
      %v2833 = vsub.s32 0, %v2832
      %v2834 = vrot.slane %v2711, %v2833
      %v2836 = vadd.f32 %v2822, %v2834
      %v2837 = vadd.f32 %v2823, %v2834
      %v2838 = vadd.f32 %v2824, %v2834
      %v2839 = vadd.f32 %v2825, %v2834
      %v2840 = vadd.f32 %v2826, %v2834
      %v2841 = vadd.f32 %v2827, %v2834
      %v2842 = vadd.f32 %v2828, %v2834
      %v2843 = vadd.f32 %v2829, %v2834
      %v2844 = vld [vmem:[%s10] sm:$0xff]
      %v2845 = vld [vmem:[%s10 + $0x8] sm:$0xff]
      %v2846 = vld [vmem:[%s10 + $0x10] sm:$0xff]
      %v2847 = vld [vmem:[%s10 + $0x18] sm:$0xff]
      %v2848 = vld [vmem:[%s11] sm:$0x1]
      %v2850 = vlaneseq
      %v2851 = vshrl.u32 %v2850, 7
      %v2852 = vsub.s32 0, %v2851
      %v2853 = vrot.slane %v2848, %v2852
      %v2856 = vsel %vm481, %v2836, 0
      %v2859 = vsel %vm481, %v2837, 0
      %v2862 = vsel %vm481, %v2838, 0
      %v2865 = vsel %vm481, %v2839, 0
      %v2868 = vsel %vm481, %v2840, 0
      %v2871 = vsel %vm481, %v2841, 0
      %v2874 = vsel %vm481, %v2842, 0
      %v2877 = vsel %vm481, %v2843, 0
      %2879 = vmatprep.subr.mxu0 0.0
      %2880 = vmatpush1.msra.mxu0 %v2844
      %2881 = vmatprep.subr.mxu0 0.0
      %2882 = vmatpush1.msra.mxu0 %v2845
      %2883 = vmatprep.subr.mxu0 0.0
      %2884 = vmatpush1.msra.mxu0 %v2846
      %2885 = vmatprep.subr.mxu0 0.0
      %2886 = vmatpush1.msra.mxu0 %v2847
      %2887 = vmatprep.subr.mxu0 0.0
      %2888 = vmatpush1.msra.mxu0 0.0
      %2889 = vmatprep.subr.mxu0 0.0
      %2890 = vmatpush1.msra.mxu0 0.0
      %2891 = vmatprep.subr.mxu0 0.0
      %2892 = vmatpush1.msra.mxu0 0.0
      %2893 = vmatprep.subr.mxu0 0.0
      %2894 = vmatpush1.msra.mxu0 0.0
      %2895 = vmatprep.subr.mxu0 0.0
      %2896 = vmatpush1.msra.mxu0 0.0
      %2897 = vmatprep.subr.mxu0 0.0
      %2898 = vmatpush1.msra.mxu0 0.0
      %2899 = vmatprep.subr.mxu0 0.0
      %2900 = vmatpush1.msra.mxu0 0.0
      %2901 = vmatprep.subr.mxu0 0.0
      %2902 = vmatpush1.msra.mxu0 0.0
      %2903 = vmatprep.subr.mxu0 0.0
      %2904 = vmatpush1.msra.mxu0 0.0
      %2905 = vmatprep.subr.mxu0 0.0
      %2906 = vmatpush1.msra.mxu0 0.0
      %2907 = vmatprep.subr.mxu0 0.0
      %2908 = vmatpush1.msra.mxu0 0.0
      %2909 = vmatprep.subr.mxu0 0.0
      %2910 = vmatpush1.msra.mxu0 0.0
      %2911 = vmatprep.subr.mxu0 0.0
      %2912 = vmatpush1.msra.mxu0 0.0
      %2913 = vmatprep.subr.mxu0 0.0
      %2914 = vmatpush1.msra.mxu0 0.0
      %2915 = vmatprep.subr.mxu0 0.0
      %2916 = vmatpush1.msra.mxu0 0.0
      %2917 = vmatprep.subr.mxu0 0.0
      %2918 = vmatpush1.msra.mxu0 0.0
      %2919 = vmatprep.subr.mxu0 0.0
      %2920 = vmatpush1.msra.mxu0 0.0
      %2921 = vmatprep.subr.mxu0 0.0
      %2922 = vmatpush1.msra.mxu0 0.0
      %2923 = vmatprep.subr.mxu0 0.0
      %2924 = vmatpush1.msra.mxu0 0.0
      %2925 = vmatprep.subr.mxu0 0.0
      %2926 = vmatpush1.msra.mxu0 0.0
      %2927 = vmatprep.subr.mxu0 0.0
      %2928 = vmatpush1.msra.mxu0 0.0
      %2929 = vmatprep.subr.mxu0 0.0
      %2930 = vmatpush1.msra.mxu0 0.0
      %2931 = vmatprep.subr.mxu0 0.0
      %2932 = vmatpush1.msra.mxu0 0.0
      %2933 = vmatprep.subr.mxu0 0.0
      %2934 = vmatpush1.msra.mxu0 0.0
      %2935 = vmatprep.subr.mxu0 0.0
      %2936 = vmatpush1.msra.mxu0 0.0
      %2937 = vmatprep.subr.mxu0 0.0
      %2938 = vmatpush1.msra.mxu0 0.0
      %2939 = vmatprep.subr.mxu0 0.0
      %2940 = vmatpush1.msra.mxu0 0.0
      %2941 = vmatprep.subr.mxu0 0.0
      %2942 = vmatpush1.msra.mxu0 0.0
      %2943 = vmatprep.mubr.f32.mxu0 0.0
      %2944 = vmatmul.mubr.f32.gmra.mrb[0].mxu0 %v2856
      %v2945 = vpop.f32.mrb[0].mxu0
      %v2946 = vadd.f32 %v2853, %v2945
      %v2947 = vpop.f32.mrb[0].mxu0
      %2948 = vmatprep.mubr.f32.mxu0 0.0
      %2949 = vmatmul.mubr.f32.gmra.mrb[0].mxu0 %v2859
      %v2950 = vpop.f32.mrb[0].mxu0
      %v2951 = vadd.f32 %v2853, %v2950
      %v2952 = vpop.f32.mrb[0].mxu0
      %2953 = vmatprep.mubr.f32.mxu0 0.0
      %2954 = vmatmul.mubr.f32.gmra.mrb[0].mxu0 %v2862
      %v2955 = vpop.f32.mrb[0].mxu0
      %v2956 = vadd.f32 %v2853, %v2955
      %v2957 = vpop.f32.mrb[0].mxu0
      %2958 = vmatprep.mubr.f32.mxu0 0.0
      %2959 = vmatmul.mubr.f32.gmra.mrb[0].mxu0 %v2865
      %v2960 = vpop.f32.mrb[0].mxu0
      %v2961 = vadd.f32 %v2853, %v2960
      %v2962 = vpop.f32.mrb[0].mxu0
      %2963 = vmatprep.mubr.f32.mxu0 0.0
      %2964 = vmatmul.mubr.f32.gmra.mrb[0].mxu0 %v2868
      %v2965 = vpop.f32.mrb[0].mxu0
      %v2966 = vadd.f32 %v2853, %v2965
      %v2967 = vpop.f32.mrb[0].mxu0
      %2968 = vmatprep.mubr.f32.mxu0 0.0
      %2969 = vmatmul.mubr.f32.gmra.mrb[0].mxu0 %v2871
      %v2970 = vpop.f32.mrb[0].mxu0
      %v2971 = vadd.f32 %v2853, %v2970
      %v2972 = vpop.f32.mrb[0].mxu0
      %2973 = vmatprep.mubr.f32.mxu0 0.0
      %2974 = vmatmul.mubr.f32.gmra.mrb[0].mxu0 %v2874
      %v2975 = vpop.f32.mrb[0].mxu0
      %v2976 = vadd.f32 %v2853, %v2975
      %v2977 = vpop.f32.mrb[0].mxu0
      %2978 = vmatprep.mubr.f32.mxu0 0.0
      %2979 = vmatmul.mubr.f32.gmra.mrb[0].mxu0 %v2877
      %v2980 = vpop.f32.mrb[0].mxu0
      %v2981 = vadd.f32 %v2853, %v2980
      %v2982 = vpop.f32.mrb[0].mxu0
      %2983 = vdwg.mxu0
      %v2984 = vmul.f32 %v2946, 0.5
      %v2985 = vmul.f32 %v2951, 0.5
      %v2986 = vmul.f32 %v2956, 0.5
      %v2987 = vmul.f32 %v2961, 0.5
      %v2988 = vmul.f32 %v2966, 0.5
      %v2989 = vmul.f32 %v2971, 0.5
      %v2990 = vmul.f32 %v2976, 0.5
      %v2991 = vmul.f32 %v2981, 0.5
      %v2992 = vmul.f32 %v2946, 0.70710677
      %v2993 = vmul.f32 %v2951, 0.70710677
      %v2994 = vmul.f32 %v2956, 0.70710677
      %v2995 = vmul.f32 %v2961, 0.70710677
      %v2996 = vmul.f32 %v2966, 0.70710677
      %v2997 = vmul.f32 %v2971, 0.70710677
      %v2998 = vmul.f32 %v2976, 0.70710677
      %v2999 = vmul.f32 %v2981, 0.70710677
      %v3000 = verf.f32.pop %v2992
      %v3001 = verf.f32.pop %v2993
      %v3002 = verf.f32.pop %v2994
      %v3003 = verf.f32.pop %v2995
      %v3004 = verf.f32.pop %v2996
      %v3005 = verf.f32.pop %v2997
      %v3006 = verf.f32.pop %v2998
      %v3007 = verf.f32.pop %v2999
      %v3008 = vadd.f32 %v3000, 1.0
      %v3009 = vadd.f32 %v3001, 1.0
      %v3010 = vadd.f32 %v3002, 1.0
      %v3011 = vadd.f32 %v3003, 1.0
      %v3012 = vadd.f32 %v3004, 1.0
      %v3013 = vadd.f32 %v3005, 1.0
      %v3014 = vadd.f32 %v3006, 1.0
      %v3015 = vadd.f32 %v3007, 1.0
      %v3016 = vmul.f32 %v2984, %v3008
      %v3017 = vmul.f32 %v2985, %v3009
      %v3018 = vmul.f32 %v2986, %v3010
      %v3019 = vmul.f32 %v2987, %v3011
      %v3020 = vmul.f32 %v2988, %v3012
      %v3021 = vmul.f32 %v2989, %v3013
      %v3022 = vmul.f32 %v2990, %v3014
      %v3023 = vmul.f32 %v2991, %v3015
      %v3024 = vld [vmem:[%s12] sm:$0xff]
      %v3025 = vld [vmem:[%s12 + $0x8] sm:$0xff]
      %v3026 = vld [vmem:[%s12 + $0x10] sm:$0xff]
      %v3027 = vld [vmem:[%s12 + $0x18] sm:$0xff]
      %v3028 = vld [vmem:[%s12 + $0x20] sm:$0xff]
      %v3029 = vld [vmem:[%s12 + $0x28] sm:$0xff]
      %v3030 = vld [vmem:[%s12 + $0x30] sm:$0xff]
      %v3031 = vld [vmem:[%s12 + $0x38] sm:$0xff]
      %v3032 = vld [vmem:[%s12 + $0x40] sm:$0xff]
      %v3033 = vld [vmem:[%s12 + $0x48] sm:$0xff]
      %v3034 = vld [vmem:[%s12 + $0x50] sm:$0xff]
      %v3035 = vld [vmem:[%s12 + $0x58] sm:$0xff]
      %v3036 = vld [vmem:[%s12 + $0x60] sm:$0xff]
      %v3037 = vld [vmem:[%s12 + $0x68] sm:$0xff]
      %v3038 = vld [vmem:[%s12 + $0x70] sm:$0xff]
      %v3039 = vld [vmem:[%s12 + $0x78] sm:$0xff]
      %3040 = vmatprep.subr.mxu0 0.0
      %3041 = vmatpush1.msra.mxu0 %v3024
      %3042 = vmatprep.subr.mxu0 0.0
      %3043 = vmatpush1.msra.mxu0 %v3025
      %3044 = vmatprep.subr.mxu0 0.0
      %3045 = vmatpush1.msra.mxu0 %v3026
      %3046 = vmatprep.subr.mxu0 0.0
      %3047 = vmatpush1.msra.mxu0 %v3027
      %3048 = vmatprep.subr.mxu0 0.0
      %3049 = vmatpush1.msra.mxu0 %v3028
      %3050 = vmatprep.subr.mxu0 0.0
      %3051 = vmatpush1.msra.mxu0 %v3029
      %3052 = vmatprep.subr.mxu0 0.0
      %3053 = vmatpush1.msra.mxu0 %v3030
      %3054 = vmatprep.subr.mxu0 0.0
      %3055 = vmatpush1.msra.mxu0 %v3031
      %3056 = vmatprep.subr.mxu0 0.0
      %3057 = vmatpush1.msra.mxu0 %v3032
      %3058 = vmatprep.subr.mxu0 0.0
      %3059 = vmatpush1.msra.mxu0 %v3033
      %3060 = vmatprep.subr.mxu0 0.0
      %3061 = vmatpush1.msra.mxu0 %v3034
      %3062 = vmatprep.subr.mxu0 0.0
      %3063 = vmatpush1.msra.mxu0 %v3035
      %3064 = vmatprep.subr.mxu0 0.0
      %3065 = vmatpush1.msra.mxu0 %v3036
      %3066 = vmatprep.subr.mxu0 0.0
      %3067 = vmatpush1.msra.mxu0 %v3037
      %3068 = vmatprep.subr.mxu0 0.0
      %3069 = vmatpush1.msra.mxu0 %v3038
      %3070 = vmatprep.subr.mxu0 0.0
      %3071 = vmatpush1.msra.mxu0 %v3039
      %3072 = vmatprep.subr.mxu0 0.0
      %3073 = vmatpush1.msra.mxu0 0.0
      %3074 = vmatprep.subr.mxu0 0.0
      %3075 = vmatpush1.msra.mxu0 0.0
      %3076 = vmatprep.subr.mxu0 0.0
      %3077 = vmatpush1.msra.mxu0 0.0
      %3078 = vmatprep.subr.mxu0 0.0
      %3079 = vmatpush1.msra.mxu0 0.0
      %3080 = vmatprep.subr.mxu0 0.0
      %3081 = vmatpush1.msra.mxu0 0.0
      %3082 = vmatprep.subr.mxu0 0.0
      %3083 = vmatpush1.msra.mxu0 0.0
      %3084 = vmatprep.subr.mxu0 0.0
      %3085 = vmatpush1.msra.mxu0 0.0
      %3086 = vmatprep.subr.mxu0 0.0
      %3087 = vmatpush1.msra.mxu0 0.0
      %3088 = vmatprep.subr.mxu0 0.0
      %3089 = vmatpush1.msra.mxu0 0.0
      %3090 = vmatprep.subr.mxu0 0.0
      %3091 = vmatpush1.msra.mxu0 0.0
      %3092 = vmatprep.subr.mxu0 0.0
      %3093 = vmatpush1.msra.mxu0 0.0
      %3094 = vmatprep.subr.mxu0 0.0
      %3095 = vmatpush1.msra.mxu0 0.0
      %3096 = vmatprep.subr.mxu0 0.0
      %3097 = vmatpush1.msra.mxu0 0.0
      %3098 = vmatprep.subr.mxu0 0.0
      %3099 = vmatpush1.msra.mxu0 0.0
      %3100 = vmatprep.subr.mxu0 0.0
      %3101 = vmatpush1.msra.mxu0 0.0
      %3102 = vmatprep.subr.mxu0 0.0
      %3103 = vmatpush1.msra.mxu0 0.0
      %3104 = vmatprep.mubr.f32.mxu0 0.0
      %3105 = vmatmul.mubr.f32.gmra.mrb[0].mxu0 %v3016
      %v3106 = vpop.f32.mrb[0].mxu0
      %v3107 = vadd.f32 0.0, %v3106
      %v3108 = vpop.f32.mrb[0].mxu0
      %3109 = vmatprep.mubr.f32.mxu0 0.0
      %3110 = vmatmul.mubr.f32.gmra.mrb[0].mxu0 %v3017
      %v3111 = vpop.f32.mrb[0].mxu0
      %v3112 = vadd.f32 0.0, %v3111
      %v3113 = vpop.f32.mrb[0].mxu0
      %3114 = vmatprep.mubr.f32.mxu0 0.0
      %3115 = vmatmul.mubr.f32.gmra.mrb[0].mxu0 %v3018
      %v3116 = vpop.f32.mrb[0].mxu0
      %v3117 = vadd.f32 0.0, %v3116
      %v3118 = vpop.f32.mrb[0].mxu0
      %3119 = vmatprep.mubr.f32.mxu0 0.0
      %3120 = vmatmul.mubr.f32.gmra.mrb[0].mxu0 %v3019
      %v3121 = vpop.f32.mrb[0].mxu0
      %v3122 = vadd.f32 0.0, %v3121
      %v3123 = vpop.f32.mrb[0].mxu0
      %3124 = vmatprep.mubr.f32.mxu0 0.0
      %3125 = vmatmul.mubr.f32.gmra.mrb[0].mxu0 %v3020
      %v3126 = vpop.f32.mrb[0].mxu0
      %v3127 = vadd.f32 0.0, %v3126
      %v3128 = vpop.f32.mrb[0].mxu0
      %3129 = vmatprep.mubr.f32.mxu0 0.0
      %3130 = vmatmul.mubr.f32.gmra.mrb[0].mxu0 %v3021
      %v3131 = vpop.f32.mrb[0].mxu0
      %v3132 = vadd.f32 0.0, %v3131
      %v3133 = vpop.f32.mrb[0].mxu0
      %3134 = vmatprep.mubr.f32.mxu0 0.0
      %3135 = vmatmul.mubr.f32.gmra.mrb[0].mxu0 %v3022
      %v3136 = vpop.f32.mrb[0].mxu0
      %v3137 = vadd.f32 0.0, %v3136
      %v3138 = vpop.f32.mrb[0].mxu0
      %3139 = vmatprep.mubr.f32.mxu0 0.0
      %3140 = vmatmul.mubr.f32.gmra.mrb[0].mxu0 %v3023
      %v3141 = vpop.f32.mrb[0].mxu0
      %v3142 = vadd.f32 0.0, %v3141
      %v3143 = vpop.f32.mrb[0].mxu0
      %3144 = vdwg.mxu0
      %v3145 = vadd.f32 %v2702, %v3107
      %v3146 = vadd.f32 %v2703, %v3112
      %v3147 = vadd.f32 %v2704, %v3117
      %v3148 = vadd.f32 %v2705, %v3122
      %v3149 = vadd.f32 %v2706, %v3127
      %v3150 = vadd.f32 %v2707, %v3132
      %v3151 = vadd.f32 %v2708, %v3137
      %v3152 = vadd.f32 %v2709, %v3142
      %v3153 = vld [vmem:[%s13] sm:$0x1]
      %v3155 = vlaneseq
      %v3156 = vshrl.u32 %v3155, 7
      %v3157 = vsub.s32 0, %v3156
      %v3158 = vrot.slane %v3153, %v3157
      %v3160 = vadd.f32 %v3145, %v3158
      %v3161 = vadd.f32 %v3146, %v3158
      %v3162 = vadd.f32 %v3147, %v3158
      %v3163 = vadd.f32 %v3148, %v3158
      %v3164 = vadd.f32 %v3149, %v3158
      %v3165 = vadd.f32 %v3150, %v3158
      %v3166 = vadd.f32 %v3151, %v3158
      %v3167 = vadd.f32 %v3152, %v3158
      %3168 = vst.msk [vmem:[%s469] sm:$0xff] %vm481, %v3160
      %3169 = vst.msk [vmem:[%s469 + $0x8] sm:$0xff] %vm481, %v3161
      %3170 = vst.msk [vmem:[%s469 + $0x10] sm:$0xff] %vm481, %v3162
      %3171 = vst.msk [vmem:[%s469 + $0x18] sm:$0xff] %vm481, %v3163
      %3172 = vst.msk [vmem:[%s469 + $0x20] sm:$0xff] %vm481, %v3164
      %3173 = vst.msk [vmem:[%s469 + $0x28] sm:$0xff] %vm481, %v3165
      %3174 = vst.msk [vmem:[%s469 + $0x30] sm:$0xff] %vm481, %v3166
      %3175 = vst.msk [vmem:[%s469 + $0x38] sm:$0xff] %vm481, %v3167
      %s3176 = smul.u32 8, %s25
      %p3177 = scmp.lt.s32.totalorder %s3176, 15
      %s3178 = scalar_select %p3177, %s3176, 15
      %s3179 = smul.addr %s3178, 8
      %s3180 = scalar_lea.vmem %s14, %s3179
      // Predicated region
      $region77: #{swin_block_forward.1} parent=75 // pred_check
        %p3181 = pneg %p342
      $region78: #{swin_block_forward.1} parent=75 // pred_check_branch
        %3183 = sbr.rel (%p3181) target = $region80
      $region79: #{swin_block_forward.1} parent=75 // pred_region
        %s3184 = smul.u32 8, %s25
      $region80: #{swin_block_forward.1} parent=75 // pred_fallthru
        _
    $region76: #{swin_block_forward.1} parent=5 // pred_fallthru
      _
    %p3185 = scmp.le.s32.totalorder 2, %s20
    // Predicated region
    $region81: #{swin_block_forward.1} parent=5 // pred_check
      %p3186 = pneg %p3185
    $region82: #{swin_block_forward.1} parent=5 // pred_check_branch
      %3188 = sbr.rel (%p3186) target = $region84
    $region83: #{swin_block_forward.1} parent=5 // pred_region
      %s3189 = ssub.s32 %s20, 2
      // Predicated region
      $region85: #{swin_block_forward.1} parent=83 // pred_check
        %p3190 = pneg %p348
      $region86: #{swin_block_forward.1} parent=83 // pred_check_branch
        %3192 = sbr.rel (%p3190) target = $region88
      $region87: #{swin_block_forward.1} parent=83 // pred_region
        %s3193 = smul.u32 8, %s26
        %p3194 = scmp.lt.s32.totalorder %s3193, 15
        %s3195 = scalar_select %p3194, %s3193, 15
        %s3196 = smul.addr %s3195, 8
        %s3197 = scalar_lea.vmem %s14, %s3196
      $region88: #{swin_block_forward.1} parent=83 // pred_fallthru
        _
    $region84: #{swin_block_forward.1} parent=5 // pred_fallthru
      _
  $region6: #{swin_block_forward.1} parent=0 // loop_footer
    %s24 = sadd.s32 1, %s20
  $region7: #{swin_block_forward.1} parent=0 // loop_footer_branch
    %19 = sbr.rel target = $region3
  $region8: #{swin_block_forward.1} parent=0 // loop_exit
    _

</llo_original>
